<compile_context>
chip_gen: v7x
topology: tpu7x:2x2x1
jax: 0.10.0
libtpu: 0.0.40
codegen_flags: <defaults>
</compile_context>

<pallas_src>
import numpy as np

import jax
import jax.numpy as jnp
from jax.experimental import pallas as pl
from jax.experimental.pallas import tpu as pltpu


# ---------------------------------------------------------------------------
# Model geometry (implied by Linear(in_features=768) = 12 * 8 * 8).
# ---------------------------------------------------------------------------
H0 = W0 = 18                  # input spatial size
C0, C1, C2 = 3, 12, 12        # channels
K = 5                         # conv kernel size (both convs)
PAD1, STR1 = 1, 1             # conv1
PAD2, STR2 = 2, 2             # conv2
OH1 = (H0 + 2 * PAD1 - K) // STR1 + 1        # 16
OH2 = (OH1 + 2 * PAD2 - K) // STR2 + 1       # 8
NCLS = 10
FC_IN = C2 * OH2 * OH2                       # 768

# Kernel layout constants.
B = 16                        # samples per grid step (multiple of 16: bf16 tile)
HP1 = H0 + 2 * PAD1           # 20: padded input height (conv1 frame)
HP2 = OH1 + 2 * PAD2          # 20: padded conv1-output height (conv2 frame)
EO = HP2 // 2                 # 10: number of even (= odd) padded conv2 rows
CPITCH = 32                   # lane pitch per input channel in staged input
LANES = 128                   # staged-input lane width == conv1 contraction K
WCOL = OH1 + 2 * PAD2         # 20: per-channel column pitch of conv1 output
A1W = 256                     # conv1 output lanes (C1*WCOL = 240, padded to 256)
A2W = 128                     # conv2 output / fc lanes (C2*OH2 = 96 -> 128)


# ---------------------------------------------------------------------------
# One-time parameter preprocessing: width-Toeplitz matrices that let each conv
# run as 5 plain MXU matmuls (padding / stride / flatten all folded in).
# ---------------------------------------------------------------------------
def build_constants(w1, w2, w_fc, b_fc):
    w1 = np.asarray(w1, np.float32)          # (12, 3, 5, 5)
    w2 = np.asarray(w2, np.float32)          # (12, 12, 5, 5)
    w_fc = np.asarray(w_fc, np.float32)      # (10, 768)
    b_fc = np.asarray(b_fc, np.float32)      # (10,)

    # conv1 width-Toeplitz.  Staged input lane = c*CPITCH + (x1 + j) where
    # (x1 + j) is the pad-1 column index; output lane = o*WCOL + x1 + PAD2
    # (conv2's column zero-padding folded in; lanes 240..255 stay zero).
    t1 = np.zeros((K, LANES, A1W), np.float32)
    for i in range(K):
        for c in range(C0):
            for o in range(C1):
                for x1 in range(OH1):
                    for j in range(K):
                        t1[i, c * CPITCH + x1 + j, o * WCOL + x1 + PAD2] = w1[o, c, i, j]

    # conv2 width-Toeplitz (stride-2 column selection folded in).  Input lane
    # = c*WCOL + (2*x2 + j) in the pad-2 frame; output lane = o*OH2 + x2.
    t2 = np.zeros((K, A1W, A2W), np.float32)
    for i in range(K):
        for c in range(C1):
            for o in range(C2):
                for x2 in range(OH2):
                    for j in range(K):
                        t2[i, c * WCOL + 2 * x2 + j, o * OH2 + x2] = w2[o, c, i, j]

    # FC weight split per conv2 output row y2 and laid out to match the
    # (o, x2) lane order of the conv2 activation; classes padded to 128 lanes.
    wfcy = np.zeros((OH2, A2W, A2W), np.float32)
    for y2 in range(OH2):
        for o in range(C2):
            for x2 in range(OH2):
                wfcy[y2, o * OH2 + x2, :NCLS] = w_fc[:, o * OH2 * OH2 + y2 * OH2 + x2]

    bfc = np.zeros((1, A2W), np.float32)
    bfc[0, :NCLS] = b_fc

    return dict(
        t1=jnp.asarray(t1, jnp.bfloat16),
        t2=jnp.asarray(t2, jnp.bfloat16),
        wfcy=jnp.asarray(wfcy, jnp.bfloat16),
        bfc=jnp.asarray(bfc, jnp.float32),
    )


# ---------------------------------------------------------------------------
# Fused kernel: conv1 -> tanh -> conv2 -> tanh -> fc for a block of B samples.
#
# Staged input rows are interleaved as (padded_row, sample): row = r*B + b, so
# conv1 kernel-row i is the contiguous slice x_ref[i*B:(i+16)*B]. The conv1
# activation is scattered into even/odd padded-row scratches (row = e*B + b),
# so conv2 kernel-row i is again a contiguous slice.  All matmul M-rows stay
# ordered (output_row, sample) throughout.
# ---------------------------------------------------------------------------
def _fused_cnn_kernel(x_ref, t1_ref, t2_ref, wfc_ref, b_ref, o_ref,
                      a1e_ref, a1o_ref):
    f32 = jnp.float32
    bf16 = jnp.bfloat16

    # Zero the four padding row-blocks of the conv2 staging scratches.
    # (Unconditional every step: 8 vector stores, and safe under megacore
    # splitting of the "parallel" batch axis.)
    zpad = jnp.zeros((B, A1W), bf16)
    a1e_ref[0:B, :] = zpad
    a1e_ref[(EO - 1) * B:EO * B, :] = zpad
    a1o_ref[0:B, :] = zpad
    a1o_ref[(EO - 1) * B:EO * B, :] = zpad

    # conv1 (5x5, s=1, p=1): 5 kernel-row MXU matmuls, M = OH1*B = 256.
    p = [jnp.dot(x_ref[i * B:(i + OH1) * B, :], t1_ref[i],
                 preferred_element_type=f32) for i in range(K)]
    a1 = jnp.tanh((p[0] + p[1]) + (p[2] + p[3]) + p[4]).astype(bf16)  # (OH1*B, 256)

    # Scatter conv1 rows (ordered (y1, b)) into even/odd padded-row scratches.
    # padded_row2 = y1 + 2  ->  even/odd index = y1//2 + 1 for both parities.
    for y1 in range(OH1):
        dst = a1e_ref if (y1 % 2 == 0) else a1o_ref
        e = y1 // 2 + 1
        dst[e * B:(e + 1) * B, :] = a1[y1 * B:(y1 + 1) * B, :]

    # conv2 (5x5, s=2, p=2): 5 kernel-row MXU matmuls, M = OH2*B = 128.
    q = []
    for i in range(K):
        src = a1e_ref if (i % 2 == 0) else a1o_ref
        s = i // 2
        q.append(jnp.dot(src[s * B:(s + OH2) * B, :], t2_ref[i],
                         preferred_element_type=f32))
    a2 = jnp.tanh((q[0] + q[1]) + (q[2] + q[3]) + q[4]).astype(bf16)  # (OH2*B, 128)

    # fc: Linear(768 -> 10), identity activation.  One matmul per conv2 row
    # y2 with M = B, balanced-tree combine; output lanes padded to 128.
    r = [jnp.dot(a2[y2 * B:(y2 + 1) * B, :], wfc_ref[y2],
                 preferred_element_type=f32) for y2 in range(OH2)]
    logits = ((r[0] + r[1]) + (r[2] + r[3])) + ((r[4] + r[5]) + (r[6] + r[7]))
    o_ref[...] = logits + b_ref[...]


# ---------------------------------------------------------------------------
# Wrapper-side staging (layout plumbing only) + pallas_call.
# ---------------------------------------------------------------------------
def _stage_inputs(x, g, npad):
    """(N,3,18,18) f32 -> (g*HP1*B, 128) bf16, row = ((blk*HP1 + r)*B + b)."""
    n = x.shape[0]
    xp = jnp.pad(x.astype(jnp.float32), ((0, npad - n), (0, 0), (0, 0), (0, 0)))
    xp = jnp.pad(xp, ((0, 0), (0, 0), (PAD1, PAD1), (PAD1, PAD1)))      # (npad,3,20,20)
    xp = jnp.pad(xp, ((0, 0), (0, 0), (0, 0), (0, CPITCH - (W0 + 2 * PAD1))))
    xp = jnp.transpose(xp, (0, 2, 1, 3)).reshape(npad, HP1, C0 * CPITCH)  # (npad,20,96)
    xp = jnp.pad(xp, ((0, 0), (0, 0), (0, LANES - C0 * CPITCH)))          # (npad,20,128)
    xp = xp.reshape(g, B, HP1, LANES).transpose(0, 2, 1, 3)               # (g,20,B,128)
    return xp.reshape(g * HP1 * B, LANES).astype(jnp.bfloat16)


def cnn3_c5_forward(x, consts):
    n = x.shape[0]
    assert x.shape[1:] == (C0, H0, W0), x.shape
    assert B % 16 == 0  # bf16 sublane-tile alignment for the row-pitch slices

    g = -(-n // B)
    npad = g * B
    xs = _stage_inputs(x, g, npad)

    out = pl.pallas_call(
        _fused_cnn_kernel,
        out_shape=jax.ShapeDtypeStruct((npad, A2W), jnp.float32),
        grid=(g,),
        in_specs=[
            pl.BlockSpec((HP1 * B, LANES), lambda i: (i, 0)),      # staged input
            pl.BlockSpec((K, LANES, A1W), lambda i: (0, 0, 0)),    # t1 (resident)
            pl.BlockSpec((K, A1W, A2W), lambda i: (0, 0, 0)),      # t2 (resident)
            pl.BlockSpec((OH2, A2W, A2W), lambda i: (0, 0, 0)),    # wfcy (resident)
            pl.BlockSpec((1, A2W), lambda i: (0, 0)),              # bias (resident)
        ],
        out_specs=pl.BlockSpec((B, A2W), lambda i: (i, 0)),
        scratch_shapes=[
            pltpu.VMEM((EO * B, A1W), jnp.bfloat16),   # even padded conv1 rows
            pltpu.VMEM((EO * B, A1W), jnp.bfloat16),   # odd padded conv1 rows
        ],
        compiler_params=pltpu.CompilerParams(
            dimension_semantics=("parallel",)),
    )(xs, consts["t1"], consts["t2"], consts["wfcy"], consts["bfc"])

    logits = out[:n, :NCLS]
    x_shape = [(n, C1, OH1, OH1), (n, C2, OH2, OH2), (n, NCLS)]
    return logits, x_shape


# ---------------------------------------------------------------------------
# Pure-JAX reference for the correctness check.
# ---------------------------------------------------------------------------
def _reference_forward(x, w1, w2, w_fc, b_fc):
    dn = ("NCHW", "OIHW", "NCHW")
    hi = jax.lax.Precision.HIGHEST
    a1 = jnp.tanh(jax.lax.conv_general_dilated(
        x, w1, window_strides=(1, 1), padding=((PAD1, PAD1), (PAD1, PAD1)),
        dimension_numbers=dn, precision=hi))
    a2 = jnp.tanh(jax.lax.conv_general_dilated(
        a1, w2, window_strides=(2, 2), padding=((PAD2, PAD2), (PAD2, PAD2)),
        dimension_numbers=dn, precision=hi))
    flat = a2.reshape(a2.shape[0], -1)
    return jnp.dot(flat, w_fc.T, precision=hi) + b_fc


if __name__ == "__main__":
    key = jax.random.PRNGKey(0)
    kx, k1, k2, k3, k4 = jax.random.split(key, 5)

    n = 20                                    # exercises 2 grid steps + padding
    x = jax.random.normal(kx, (n, C0, H0, W0), dtype=jnp.float32)
    w1 = jax.random.normal(k1, (C1, C0, K, K), dtype=jnp.float32) * 0.1
    w2 = jax.random.normal(k2, (C2, C1, K, K), dtype=jnp.float32) * 0.05
    w_fc = jax.random.normal(k3, (NCLS, FC_IN), dtype=jnp.float32) * 0.05
    b_fc = jax.random.normal(k4, (NCLS,), dtype=jnp.float32) * 0.05

    consts = build_constants(w1, w2, w_fc, b_fc)
    out, shapes = cnn3_c5_forward(x, consts)
    out = jax.block_until_ready(out)

    assert out.shape == (n, NCLS)
    assert shapes == [(n, C1, OH1, OH1), (n, C2, OH2, OH2), (n, NCLS)]
    assert bool(jnp.all(jnp.isfinite(out)))

    ref = _reference_forward(x, w1, w2, w_fc, b_fc)
    np.testing.assert_allclose(np.asarray(out), np.asarray(ref),
                               rtol=2e-2, atol=2e-2)
    print("KERNEL_OK")
</pallas_src>

<mosaic_0001>
module attributes {stable_mosaic.version = 11 : i64} {
  func.func @_fused_cnn_kernel(%arg0: i32, %arg1: memref<320x128xbf16, #tpu.memory_space<vmem>>, %arg2: memref<5x128x256xbf16, #tpu.memory_space<vmem>>, %arg3: memref<5x256x128xbf16, #tpu.memory_space<vmem>>, %arg4: memref<8x128x128xbf16, #tpu.memory_space<vmem>>, %arg5: memref<1x128xf32, #tpu.memory_space<vmem>>, %arg6: memref<16x128xf32, #tpu.memory_space<vmem>>, %arg7: memref<160x256xbf16, #tpu.memory_space<vmem>>, %arg8: memref<160x256xbf16, #tpu.memory_space<vmem>>) attributes {dimension_semantics = [#tpu.dimension_semantics<parallel>], iteration_bounds = array<i64: 2>, scalar_prefetch = 0 : i64, scratch_operands = 2 : i64, tpu.core_type = #tpu.core_type<tc>, window_params = [{transform_indices = @transform_0, window_bounds = array<i64: 320, 128>}, {pipeline_mode = #tpu.pipeline_mode<synchronous>, transform_indices = @transform_1, window_bounds = array<i64: 5, 128, 256>}, {pipeline_mode = #tpu.pipeline_mode<synchronous>, transform_indices = @transform_2, window_bounds = array<i64: 5, 256, 128>}, {pipeline_mode = #tpu.pipeline_mode<synchronous>, transform_indices = @transform_3, window_bounds = array<i64: 8, 128, 128>}, {pipeline_mode = #tpu.pipeline_mode<synchronous>, transform_indices = @transform_4, window_bounds = array<i64: 1, 128>}, {transform_indices = @transform_5, window_bounds = array<i64: 16, 128>}]} {
    %cst = arith.constant 0.000000e+00 : bf16
    %0 = vector.broadcast %cst : bf16 to vector<16x256xbf16>
    %c0 = arith.constant 0 : index
    %c0_0 = arith.constant 0 : index
    %1 = vector.load %arg7[%c0, %c0_0] : memref<160x256xbf16, #tpu.memory_space<vmem>>, vector<16x256xbf16>
    tpu.vector_store %arg7[%c0, %c0_0], %0 {strides = array<i32>} : memref<160x256xbf16, #tpu.memory_space<vmem>>, vector<16x256xbf16>,
    %c144 = arith.constant 144 : index
    %c0_1 = arith.constant 0 : index
    %2 = vector.load %arg7[%c144, %c0_1] : memref<160x256xbf16, #tpu.memory_space<vmem>>, vector<16x256xbf16>
    tpu.vector_store %arg7[%c144, %c0_1], %0 {strides = array<i32>} : memref<160x256xbf16, #tpu.memory_space<vmem>>, vector<16x256xbf16>,
    %c0_2 = arith.constant 0 : index
    %c0_3 = arith.constant 0 : index
    %3 = vector.load %arg8[%c0_2, %c0_3] : memref<160x256xbf16, #tpu.memory_space<vmem>>, vector<16x256xbf16>
    tpu.vector_store %arg8[%c0_2, %c0_3], %0 {strides = array<i32>} : memref<160x256xbf16, #tpu.memory_space<vmem>>, vector<16x256xbf16>,
    %c144_4 = arith.constant 144 : index
    %c0_5 = arith.constant 0 : index
    %4 = vector.load %arg8[%c144_4, %c0_5] : memref<160x256xbf16, #tpu.memory_space<vmem>>, vector<16x256xbf16>
    tpu.vector_store %arg8[%c144_4, %c0_5], %0 {strides = array<i32>} : memref<160x256xbf16, #tpu.memory_space<vmem>>, vector<16x256xbf16>,
    %c0_6 = arith.constant 0 : index
    %c0_7 = arith.constant 0 : index
    %5 = vector.load %arg1[%c0_6, %c0_7] : memref<320x128xbf16, #tpu.memory_space<vmem>>, vector<256x128xbf16>
    %c0_8 = arith.constant 0 : index
    %c0_9 = arith.constant 0 : index
    %c0_10 = arith.constant 0 : index
    %6 = vector.load %arg2[%c0_8, %c0_9, %c0_10] : memref<5x128x256xbf16, #tpu.memory_space<vmem>>, vector<1x128x256xbf16>
    %7 = vector.shape_cast %6 : vector<1x128x256xbf16> to vector<128x256xbf16>
    %cst_11 = arith.constant dense<0.000000e+00> : vector<256x256xf32>
    %8 = tpu.matmul %5, %7, %cst_11 {dimension_numbers = #tpu.dot_dimension_numbers<[1], [0], [0], [1], [0, 0, 1, 1], [], []>} : vector<256x128xbf16>, vector<128x256xbf16>, vector<256x256xf32> -> vector<256x256xf32>
    %c16 = arith.constant 16 : index
    %c0_12 = arith.constant 0 : index
    %9 = vector.load %arg1[%c16, %c0_12] : memref<320x128xbf16, #tpu.memory_space<vmem>>, vector<256x128xbf16>
    %c1 = arith.constant 1 : index
    %c0_13 = arith.constant 0 : index
    %c0_14 = arith.constant 0 : index
    %10 = vector.load %arg2[%c1, %c0_13, %c0_14] : memref<5x128x256xbf16, #tpu.memory_space<vmem>>, vector<1x128x256xbf16>
    %11 = vector.shape_cast %10 : vector<1x128x256xbf16> to vector<128x256xbf16>
    %cst_15 = arith.constant dense<0.000000e+00> : vector<256x256xf32>
    %12 = tpu.matmul %9, %11, %cst_15 {dimension_numbers = #tpu.dot_dimension_numbers<[1], [0], [0], [1], [0, 0, 1, 1], [], []>} : vector<256x128xbf16>, vector<128x256xbf16>, vector<256x256xf32> -> vector<256x256xf32>
    %c32 = arith.constant 32 : index
    %c0_16 = arith.constant 0 : index
    %13 = vector.load %arg1[%c32, %c0_16] : memref<320x128xbf16, #tpu.memory_space<vmem>>, vector<256x128xbf16>
    %c2 = arith.constant 2 : index
    %c0_17 = arith.constant 0 : index
    %c0_18 = arith.constant 0 : index
    %14 = vector.load %arg2[%c2, %c0_17, %c0_18] : memref<5x128x256xbf16, #tpu.memory_space<vmem>>, vector<1x128x256xbf16>
    %15 = vector.shape_cast %14 : vector<1x128x256xbf16> to vector<128x256xbf16>
    %cst_19 = arith.constant dense<0.000000e+00> : vector<256x256xf32>
    %16 = tpu.matmul %13, %15, %cst_19 {dimension_numbers = #tpu.dot_dimension_numbers<[1], [0], [0], [1], [0, 0, 1, 1], [], []>} : vector<256x128xbf16>, vector<128x256xbf16>, vector<256x256xf32> -> vector<256x256xf32>
    %c48 = arith.constant 48 : index
    %c0_20 = arith.constant 0 : index
    %17 = vector.load %arg1[%c48, %c0_20] : memref<320x128xbf16, #tpu.memory_space<vmem>>, vector<256x128xbf16>
    %c3 = arith.constant 3 : index
    %c0_21 = arith.constant 0 : index
    %c0_22 = arith.constant 0 : index
    %18 = vector.load %arg2[%c3, %c0_21, %c0_22] : memref<5x128x256xbf16, #tpu.memory_space<vmem>>, vector<1x128x256xbf16>
    %19 = vector.shape_cast %18 : vector<1x128x256xbf16> to vector<128x256xbf16>
    %cst_23 = arith.constant dense<0.000000e+00> : vector<256x256xf32>
    %20 = tpu.matmul %17, %19, %cst_23 {dimension_numbers = #tpu.dot_dimension_numbers<[1], [0], [0], [1], [0, 0, 1, 1], [], []>} : vector<256x128xbf16>, vector<128x256xbf16>, vector<256x256xf32> -> vector<256x256xf32>
    %c64 = arith.constant 64 : index
    %c0_24 = arith.constant 0 : index
    %21 = vector.load %arg1[%c64, %c0_24] : memref<320x128xbf16, #tpu.memory_space<vmem>>, vector<256x128xbf16>
    %c4 = arith.constant 4 : index
    %c0_25 = arith.constant 0 : index
    %c0_26 = arith.constant 0 : index
    %22 = vector.load %arg2[%c4, %c0_25, %c0_26] : memref<5x128x256xbf16, #tpu.memory_space<vmem>>, vector<1x128x256xbf16>
    %23 = vector.shape_cast %22 : vector<1x128x256xbf16> to vector<128x256xbf16>
    %cst_27 = arith.constant dense<0.000000e+00> : vector<256x256xf32>
    %24 = tpu.matmul %21, %23, %cst_27 {dimension_numbers = #tpu.dot_dimension_numbers<[1], [0], [0], [1], [0, 0, 1, 1], [], []>} : vector<256x128xbf16>, vector<128x256xbf16>, vector<256x256xf32> -> vector<256x256xf32>
    %25 = arith.addf %8, %12 : vector<256x256xf32>
    %26 = arith.addf %16, %20 : vector<256x256xf32>
    %27 = arith.addf %25, %26 : vector<256x256xf32>
    %28 = arith.addf %27, %24 : vector<256x256xf32>
    %29 = math.tanh %28 : vector<256x256xf32>
    %30 = arith.truncf %29 : vector<256x256xf32> to vector<256x256xbf16>
    %31 = vector.extract_strided_slice %30 {offsets = [0, 0], sizes = [16, 256], strides = [1, 1]} : vector<256x256xbf16> to vector<16x256xbf16>
    %c16_28 = arith.constant 16 : index
    %c0_29 = arith.constant 0 : index
    %32 = vector.load %arg7[%c16_28, %c0_29] : memref<160x256xbf16, #tpu.memory_space<vmem>>, vector<16x256xbf16>
    tpu.vector_store %arg7[%c16_28, %c0_29], %31 {strides = array<i32>} : memref<160x256xbf16, #tpu.memory_space<vmem>>, vector<16x256xbf16>,
    %33 = vector.extract_strided_slice %30 {offsets = [16, 0], sizes = [16, 256], strides = [1, 1]} : vector<256x256xbf16> to vector<16x256xbf16>
    %c16_30 = arith.constant 16 : index
    %c0_31 = arith.constant 0 : index
    %34 = vector.load %arg8[%c16_30, %c0_31] : memref<160x256xbf16, #tpu.memory_space<vmem>>, vector<16x256xbf16>
    tpu.vector_store %arg8[%c16_30, %c0_31], %33 {strides = array<i32>} : memref<160x256xbf16, #tpu.memory_space<vmem>>, vector<16x256xbf16>,
    %35 = vector.extract_strided_slice %30 {offsets = [32, 0], sizes = [16, 256], strides = [1, 1]} : vector<256x256xbf16> to vector<16x256xbf16>
    %c32_32 = arith.constant 32 : index
    %c0_33 = arith.constant 0 : index
    %36 = vector.load %arg7[%c32_32, %c0_33] : memref<160x256xbf16, #tpu.memory_space<vmem>>, vector<16x256xbf16>
    tpu.vector_store %arg7[%c32_32, %c0_33], %35 {strides = array<i32>} : memref<160x256xbf16, #tpu.memory_space<vmem>>, vector<16x256xbf16>,
    %37 = vector.extract_strided_slice %30 {offsets = [48, 0], sizes = [16, 256], strides = [1, 1]} : vector<256x256xbf16> to vector<16x256xbf16>
    %c32_34 = arith.constant 32 : index
    %c0_35 = arith.constant 0 : index
    %38 = vector.load %arg8[%c32_34, %c0_35] : memref<160x256xbf16, #tpu.memory_space<vmem>>, vector<16x256xbf16>
    tpu.vector_store %arg8[%c32_34, %c0_35], %37 {strides = array<i32>} : memref<160x256xbf16, #tpu.memory_space<vmem>>, vector<16x256xbf16>,
    %39 = vector.extract_strided_slice %30 {offsets = [64, 0], sizes = [16, 256], strides = [1, 1]} : vector<256x256xbf16> to vector<16x256xbf16>
    %c48_36 = arith.constant 48 : index
    %c0_37 = arith.constant 0 : index
    %40 = vector.load %arg7[%c48_36, %c0_37] : memref<160x256xbf16, #tpu.memory_space<vmem>>, vector<16x256xbf16>
    tpu.vector_store %arg7[%c48_36, %c0_37], %39 {strides = array<i32>} : memref<160x256xbf16, #tpu.memory_space<vmem>>, vector<16x256xbf16>,
    %41 = vector.extract_strided_slice %30 {offsets = [80, 0], sizes = [16, 256], strides = [1, 1]} : vector<256x256xbf16> to vector<16x256xbf16>
    %c48_38 = arith.constant 48 : index
    %c0_39 = arith.constant 0 : index
    %42 = vector.load %arg8[%c48_38, %c0_39] : memref<160x256xbf16, #tpu.memory_space<vmem>>, vector<16x256xbf16>
    tpu.vector_store %arg8[%c48_38, %c0_39], %41 {strides = array<i32>} : memref<160x256xbf16, #tpu.memory_space<vmem>>, vector<16x256xbf16>,
    %43 = vector.extract_strided_slice %30 {offsets = [96, 0], sizes = [16, 256], strides = [1, 1]} : vector<256x256xbf16> to vector<16x256xbf16>
    %c64_40 = arith.constant 64 : index
    %c0_41 = arith.constant 0 : index
    %44 = vector.load %arg7[%c64_40, %c0_41] : memref<160x256xbf16, #tpu.memory_space<vmem>>, vector<16x256xbf16>
    tpu.vector_store %arg7[%c64_40, %c0_41], %43 {strides = array<i32>} : memref<160x256xbf16, #tpu.memory_space<vmem>>, vector<16x256xbf16>,
    %45 = vector.extract_strided_slice %30 {offsets = [112, 0], sizes = [16, 256], strides = [1, 1]} : vector<256x256xbf16> to vector<16x256xbf16>
    %c64_42 = arith.constant 64 : index
    %c0_43 = arith.constant 0 : index
    %46 = vector.load %arg8[%c64_42, %c0_43] : memref<160x256xbf16, #tpu.memory_space<vmem>>, vector<16x256xbf16>
    tpu.vector_store %arg8[%c64_42, %c0_43], %45 {strides = array<i32>} : memref<160x256xbf16, #tpu.memory_space<vmem>>, vector<16x256xbf16>,
    %47 = vector.extract_strided_slice %30 {offsets = [128, 0], sizes = [16, 256], strides = [1, 1]} : vector<256x256xbf16> to vector<16x256xbf16>
    %c80 = arith.constant 80 : index
    %c0_44 = arith.constant 0 : index
    %48 = vector.load %arg7[%c80, %c0_44] : memref<160x256xbf16, #tpu.memory_space<vmem>>, vector<16x256xbf16>
    tpu.vector_store %arg7[%c80, %c0_44], %47 {strides = array<i32>} : memref<160x256xbf16, #tpu.memory_space<vmem>>, vector<16x256xbf16>,
    %49 = vector.extract_strided_slice %30 {offsets = [144, 0], sizes = [16, 256], strides = [1, 1]} : vector<256x256xbf16> to vector<16x256xbf16>
    %c80_45 = arith.constant 80 : index
    %c0_46 = arith.constant 0 : index
    %50 = vector.load %arg8[%c80_45, %c0_46] : memref<160x256xbf16, #tpu.memory_space<vmem>>, vector<16x256xbf16>
    tpu.vector_store %arg8[%c80_45, %c0_46], %49 {strides = array<i32>} : memref<160x256xbf16, #tpu.memory_space<vmem>>, vector<16x256xbf16>,
    %51 = vector.extract_strided_slice %30 {offsets = [160, 0], sizes = [16, 256], strides = [1, 1]} : vector<256x256xbf16> to vector<16x256xbf16>
    %c96 = arith.constant 96 : index
    %c0_47 = arith.constant 0 : index
    %52 = vector.load %arg7[%c96, %c0_47] : memref<160x256xbf16, #tpu.memory_space<vmem>>, vector<16x256xbf16>
    tpu.vector_store %arg7[%c96, %c0_47], %51 {strides = array<i32>} : memref<160x256xbf16, #tpu.memory_space<vmem>>, vector<16x256xbf16>,
    %53 = vector.extract_strided_slice %30 {offsets = [176, 0], sizes = [16, 256], strides = [1, 1]} : vector<256x256xbf16> to vector<16x256xbf16>
    %c96_48 = arith.constant 96 : index
    %c0_49 = arith.constant 0 : index
    %54 = vector.load %arg8[%c96_48, %c0_49] : memref<160x256xbf16, #tpu.memory_space<vmem>>, vector<16x256xbf16>
    tpu.vector_store %arg8[%c96_48, %c0_49], %53 {strides = array<i32>} : memref<160x256xbf16, #tpu.memory_space<vmem>>, vector<16x256xbf16>,
    %55 = vector.extract_strided_slice %30 {offsets = [192, 0], sizes = [16, 256], strides = [1, 1]} : vector<256x256xbf16> to vector<16x256xbf16>
    %c112 = arith.constant 112 : index
    %c0_50 = arith.constant 0 : index
    %56 = vector.load %arg7[%c112, %c0_50] : memref<160x256xbf16, #tpu.memory_space<vmem>>, vector<16x256xbf16>
    tpu.vector_store %arg7[%c112, %c0_50], %55 {strides = array<i32>} : memref<160x256xbf16, #tpu.memory_space<vmem>>, vector<16x256xbf16>,
    %57 = vector.extract_strided_slice %30 {offsets = [208, 0], sizes = [16, 256], strides = [1, 1]} : vector<256x256xbf16> to vector<16x256xbf16>
    %c112_51 = arith.constant 112 : index
    %c0_52 = arith.constant 0 : index
    %58 = vector.load %arg8[%c112_51, %c0_52] : memref<160x256xbf16, #tpu.memory_space<vmem>>, vector<16x256xbf16>
    tpu.vector_store %arg8[%c112_51, %c0_52], %57 {strides = array<i32>} : memref<160x256xbf16, #tpu.memory_space<vmem>>, vector<16x256xbf16>,
    %59 = vector.extract_strided_slice %30 {offsets = [224, 0], sizes = [16, 256], strides = [1, 1]} : vector<256x256xbf16> to vector<16x256xbf16>
    %c128 = arith.constant 128 : index
    %c0_53 = arith.constant 0 : index
    %60 = vector.load %arg7[%c128, %c0_53] : memref<160x256xbf16, #tpu.memory_space<vmem>>, vector<16x256xbf16>
    tpu.vector_store %arg7[%c128, %c0_53], %59 {strides = array<i32>} : memref<160x256xbf16, #tpu.memory_space<vmem>>, vector<16x256xbf16>,
    %61 = vector.extract_strided_slice %30 {offsets = [240, 0], sizes = [16, 256], strides = [1, 1]} : vector<256x256xbf16> to vector<16x256xbf16>
    %c128_54 = arith.constant 128 : index
    %c0_55 = arith.constant 0 : index
    %62 = vector.load %arg8[%c128_54, %c0_55] : memref<160x256xbf16, #tpu.memory_space<vmem>>, vector<16x256xbf16>
    tpu.vector_store %arg8[%c128_54, %c0_55], %61 {strides = array<i32>} : memref<160x256xbf16, #tpu.memory_space<vmem>>, vector<16x256xbf16>,
    %c0_56 = arith.constant 0 : index
    %c0_57 = arith.constant 0 : index
    %63 = vector.load %arg7[%c0_56, %c0_57] : memref<160x256xbf16, #tpu.memory_space<vmem>>, vector<128x256xbf16>
    %c0_58 = arith.constant 0 : index
    %c0_59 = arith.constant 0 : index
    %c0_60 = arith.constant 0 : index
    %64 = vector.load %arg3[%c0_58, %c0_59, %c0_60] : memref<5x256x128xbf16, #tpu.memory_space<vmem>>, vector<1x256x128xbf16>
    %65 = vector.shape_cast %64 : vector<1x256x128xbf16> to vector<256x128xbf16>
    %cst_61 = arith.constant dense<0.000000e+00> : vector<128x128xf32>
    %66 = tpu.matmul %63, %65, %cst_61 {dimension_numbers = #tpu.dot_dimension_numbers<[1], [0], [0], [1], [0, 0, 1, 1], [], []>} : vector<128x256xbf16>, vector<256x128xbf16>, vector<128x128xf32> -> vector<128x128xf32>
    %c0_62 = arith.constant 0 : index
    %c0_63 = arith.constant 0 : index
    %67 = vector.load %arg8[%c0_62, %c0_63] : memref<160x256xbf16, #tpu.memory_space<vmem>>, vector<128x256xbf16>
    %c1_64 = arith.constant 1 : index
    %c0_65 = arith.constant 0 : index
    %c0_66 = arith.constant 0 : index
    %68 = vector.load %arg3[%c1_64, %c0_65, %c0_66] : memref<5x256x128xbf16, #tpu.memory_space<vmem>>, vector<1x256x128xbf16>
    %69 = vector.shape_cast %68 : vector<1x256x128xbf16> to vector<256x128xbf16>
    %cst_67 = arith.constant dense<0.000000e+00> : vector<128x128xf32>
    %70 = tpu.matmul %67, %69, %cst_67 {dimension_numbers = #tpu.dot_dimension_numbers<[1], [0], [0], [1], [0, 0, 1, 1], [], []>} : vector<128x256xbf16>, vector<256x128xbf16>, vector<128x128xf32> -> vector<128x128xf32>
    %c16_68 = arith.constant 16 : index
    %c0_69 = arith.constant 0 : index
    %71 = vector.load %arg7[%c16_68, %c0_69] : memref<160x256xbf16, #tpu.memory_space<vmem>>, vector<128x256xbf16>
    %c2_70 = arith.constant 2 : index
    %c0_71 = arith.constant 0 : index
    %c0_72 = arith.constant 0 : index
    %72 = vector.load %arg3[%c2_70, %c0_71, %c0_72] : memref<5x256x128xbf16, #tpu.memory_space<vmem>>, vector<1x256x128xbf16>
    %73 = vector.shape_cast %72 : vector<1x256x128xbf16> to vector<256x128xbf16>
    %cst_73 = arith.constant dense<0.000000e+00> : vector<128x128xf32>
    %74 = tpu.matmul %71, %73, %cst_73 {dimension_numbers = #tpu.dot_dimension_numbers<[1], [0], [0], [1], [0, 0, 1, 1], [], []>} : vector<128x256xbf16>, vector<256x128xbf16>, vector<128x128xf32> -> vector<128x128xf32>
    %c16_74 = arith.constant 16 : index
    %c0_75 = arith.constant 0 : index
    %75 = vector.load %arg8[%c16_74, %c0_75] : memref<160x256xbf16, #tpu.memory_space<vmem>>, vector<128x256xbf16>
    %c3_76 = arith.constant 3 : index
    %c0_77 = arith.constant 0 : index
    %c0_78 = arith.constant 0 : index
    %76 = vector.load %arg3[%c3_76, %c0_77, %c0_78] : memref<5x256x128xbf16, #tpu.memory_space<vmem>>, vector<1x256x128xbf16>
    %77 = vector.shape_cast %76 : vector<1x256x128xbf16> to vector<256x128xbf16>
    %cst_79 = arith.constant dense<0.000000e+00> : vector<128x128xf32>
    %78 = tpu.matmul %75, %77, %cst_79 {dimension_numbers = #tpu.dot_dimension_numbers<[1], [0], [0], [1], [0, 0, 1, 1], [], []>} : vector<128x256xbf16>, vector<256x128xbf16>, vector<128x128xf32> -> vector<128x128xf32>
    %c32_80 = arith.constant 32 : index
    %c0_81 = arith.constant 0 : index
    %79 = vector.load %arg7[%c32_80, %c0_81] : memref<160x256xbf16, #tpu.memory_space<vmem>>, vector<128x256xbf16>
    %c4_82 = arith.constant 4 : index
    %c0_83 = arith.constant 0 : index
    %c0_84 = arith.constant 0 : index
    %80 = vector.load %arg3[%c4_82, %c0_83, %c0_84] : memref<5x256x128xbf16, #tpu.memory_space<vmem>>, vector<1x256x128xbf16>
    %81 = vector.shape_cast %80 : vector<1x256x128xbf16> to vector<256x128xbf16>
    %cst_85 = arith.constant dense<0.000000e+00> : vector<128x128xf32>
    %82 = tpu.matmul %79, %81, %cst_85 {dimension_numbers = #tpu.dot_dimension_numbers<[1], [0], [0], [1], [0, 0, 1, 1], [], []>} : vector<128x256xbf16>, vector<256x128xbf16>, vector<128x128xf32> -> vector<128x128xf32>
    %83 = arith.addf %66, %70 : vector<128x128xf32>
    %84 = arith.addf %74, %78 : vector<128x128xf32>
    %85 = arith.addf %83, %84 : vector<128x128xf32>
    %86 = arith.addf %85, %82 : vector<128x128xf32>
    %87 = math.tanh %86 : vector<128x128xf32>
    %88 = arith.truncf %87 : vector<128x128xf32> to vector<128x128xbf16>
    %89 = vector.extract_strided_slice %88 {offsets = [0, 0], sizes = [16, 128], strides = [1, 1]} : vector<128x128xbf16> to vector<16x128xbf16>
    %c0_86 = arith.constant 0 : index
    %c0_87 = arith.constant 0 : index
    %c0_88 = arith.constant 0 : index
    %90 = vector.load %arg4[%c0_86, %c0_87, %c0_88] : memref<8x128x128xbf16, #tpu.memory_space<vmem>>, vector<1x128x128xbf16>
    %91 = vector.shape_cast %90 : vector<1x128x128xbf16> to vector<128x128xbf16>
    %cst_89 = arith.constant dense<0.000000e+00> : vector<16x128xf32>
    %92 = tpu.matmul %89, %91, %cst_89 {dimension_numbers = #tpu.dot_dimension_numbers<[1], [0], [0], [1], [0, 0, 1, 1], [], []>} : vector<16x128xbf16>, vector<128x128xbf16>, vector<16x128xf32> -> vector<16x128xf32>
    %93 = vector.extract_strided_slice %88 {offsets = [16, 0], sizes = [16, 128], strides = [1, 1]} : vector<128x128xbf16> to vector<16x128xbf16>
    %c1_90 = arith.constant 1 : index
    %c0_91 = arith.constant 0 : index
    %c0_92 = arith.constant 0 : index
    %94 = vector.load %arg4[%c1_90, %c0_91, %c0_92] : memref<8x128x128xbf16, #tpu.memory_space<vmem>>, vector<1x128x128xbf16>
    %95 = vector.shape_cast %94 : vector<1x128x128xbf16> to vector<128x128xbf16>
    %cst_93 = arith.constant dense<0.000000e+00> : vector<16x128xf32>
    %96 = tpu.matmul %93, %95, %cst_93 {dimension_numbers = #tpu.dot_dimension_numbers<[1], [0], [0], [1], [0, 0, 1, 1], [], []>} : vector<16x128xbf16>, vector<128x128xbf16>, vector<16x128xf32> -> vector<16x128xf32>
    %97 = vector.extract_strided_slice %88 {offsets = [32, 0], sizes = [16, 128], strides = [1, 1]} : vector<128x128xbf16> to vector<16x128xbf16>
    %c2_94 = arith.constant 2 : index
    %c0_95 = arith.constant 0 : index
    %c0_96 = arith.constant 0 : index
    %98 = vector.load %arg4[%c2_94, %c0_95, %c0_96] : memref<8x128x128xbf16, #tpu.memory_space<vmem>>, vector<1x128x128xbf16>
    %99 = vector.shape_cast %98 : vector<1x128x128xbf16> to vector<128x128xbf16>
    %cst_97 = arith.constant dense<0.000000e+00> : vector<16x128xf32>
    %100 = tpu.matmul %97, %99, %cst_97 {dimension_numbers = #tpu.dot_dimension_numbers<[1], [0], [0], [1], [0, 0, 1, 1], [], []>} : vector<16x128xbf16>, vector<128x128xbf16>, vector<16x128xf32> -> vector<16x128xf32>
    %101 = vector.extract_strided_slice %88 {offsets = [48, 0], sizes = [16, 128], strides = [1, 1]} : vector<128x128xbf16> to vector<16x128xbf16>
    %c3_98 = arith.constant 3 : index
    %c0_99 = arith.constant 0 : index
    %c0_100 = arith.constant 0 : index
    %102 = vector.load %arg4[%c3_98, %c0_99, %c0_100] : memref<8x128x128xbf16, #tpu.memory_space<vmem>>, vector<1x128x128xbf16>
    %103 = vector.shape_cast %102 : vector<1x128x128xbf16> to vector<128x128xbf16>
    %cst_101 = arith.constant dense<0.000000e+00> : vector<16x128xf32>
    %104 = tpu.matmul %101, %103, %cst_101 {dimension_numbers = #tpu.dot_dimension_numbers<[1], [0], [0], [1], [0, 0, 1, 1], [], []>} : vector<16x128xbf16>, vector<128x128xbf16>, vector<16x128xf32> -> vector<16x128xf32>
    %105 = vector.extract_strided_slice %88 {offsets = [64, 0], sizes = [16, 128], strides = [1, 1]} : vector<128x128xbf16> to vector<16x128xbf16>
    %c4_102 = arith.constant 4 : index
    %c0_103 = arith.constant 0 : index
    %c0_104 = arith.constant 0 : index
    %106 = vector.load %arg4[%c4_102, %c0_103, %c0_104] : memref<8x128x128xbf16, #tpu.memory_space<vmem>>, vector<1x128x128xbf16>
    %107 = vector.shape_cast %106 : vector<1x128x128xbf16> to vector<128x128xbf16>
    %cst_105 = arith.constant dense<0.000000e+00> : vector<16x128xf32>
    %108 = tpu.matmul %105, %107, %cst_105 {dimension_numbers = #tpu.dot_dimension_numbers<[1], [0], [0], [1], [0, 0, 1, 1], [], []>} : vector<16x128xbf16>, vector<128x128xbf16>, vector<16x128xf32> -> vector<16x128xf32>
    %109 = vector.extract_strided_slice %88 {offsets = [80, 0], sizes = [16, 128], strides = [1, 1]} : vector<128x128xbf16> to vector<16x128xbf16>
    %c5 = arith.constant 5 : index
    %c0_106 = arith.constant 0 : index
    %c0_107 = arith.constant 0 : index
    %110 = vector.load %arg4[%c5, %c0_106, %c0_107] : memref<8x128x128xbf16, #tpu.memory_space<vmem>>, vector<1x128x128xbf16>
    %111 = vector.shape_cast %110 : vector<1x128x128xbf16> to vector<128x128xbf16>
    %cst_108 = arith.constant dense<0.000000e+00> : vector<16x128xf32>
    %112 = tpu.matmul %109, %111, %cst_108 {dimension_numbers = #tpu.dot_dimension_numbers<[1], [0], [0], [1], [0, 0, 1, 1], [], []>} : vector<16x128xbf16>, vector<128x128xbf16>, vector<16x128xf32> -> vector<16x128xf32>
    %113 = vector.extract_strided_slice %88 {offsets = [96, 0], sizes = [16, 128], strides = [1, 1]} : vector<128x128xbf16> to vector<16x128xbf16>
    %c6 = arith.constant 6 : index
    %c0_109 = arith.constant 0 : index
    %c0_110 = arith.constant 0 : index
    %114 = vector.load %arg4[%c6, %c0_109, %c0_110] : memref<8x128x128xbf16, #tpu.memory_space<vmem>>, vector<1x128x128xbf16>
    %115 = vector.shape_cast %114 : vector<1x128x128xbf16> to vector<128x128xbf16>
    %cst_111 = arith.constant dense<0.000000e+00> : vector<16x128xf32>
    %116 = tpu.matmul %113, %115, %cst_111 {dimension_numbers = #tpu.dot_dimension_numbers<[1], [0], [0], [1], [0, 0, 1, 1], [], []>} : vector<16x128xbf16>, vector<128x128xbf16>, vector<16x128xf32> -> vector<16x128xf32>
    %117 = vector.extract_strided_slice %88 {offsets = [112, 0], sizes = [16, 128], strides = [1, 1]} : vector<128x128xbf16> to vector<16x128xbf16>
    %c7 = arith.constant 7 : index
    %c0_112 = arith.constant 0 : index
    %c0_113 = arith.constant 0 : index
    %118 = vector.load %arg4[%c7, %c0_112, %c0_113] : memref<8x128x128xbf16, #tpu.memory_space<vmem>>, vector<1x128x128xbf16>
    %119 = vector.shape_cast %118 : vector<1x128x128xbf16> to vector<128x128xbf16>
    %cst_114 = arith.constant dense<0.000000e+00> : vector<16x128xf32>
    %120 = tpu.matmul %117, %119, %cst_114 {dimension_numbers = #tpu.dot_dimension_numbers<[1], [0], [0], [1], [0, 0, 1, 1], [], []>} : vector<16x128xbf16>, vector<128x128xbf16>, vector<16x128xf32> -> vector<16x128xf32>
    %121 = arith.addf %92, %96 : vector<16x128xf32>
    %122 = arith.addf %100, %104 : vector<16x128xf32>
    %123 = arith.addf %121, %122 : vector<16x128xf32>
    %124 = arith.addf %108, %112 : vector<16x128xf32>
    %125 = arith.addf %116, %120 : vector<16x128xf32>
    %126 = arith.addf %124, %125 : vector<16x128xf32>
    %127 = arith.addf %123, %126 : vector<16x128xf32>
    %c0_115 = arith.constant 0 : index
    %c0_116 = arith.constant 0 : index
    %128 = vector.load %arg5[%c0_115, %c0_116] : memref<1x128xf32, #tpu.memory_space<vmem>>, vector<1x128xf32>
    %129 = vector.broadcast %128 : vector<1x128xf32> to vector<16x128xf32>
    %130 = arith.addf %127, %129 : vector<16x128xf32>
    %c0_117 = arith.constant 0 : index
    %c0_118 = arith.constant 0 : index
    %131 = vector.load %arg6[%c0_117, %c0_118] : memref<16x128xf32, #tpu.memory_space<vmem>>, vector<16x128xf32>
    tpu.vector_store %arg6[%c0_117, %c0_118], %130 {strides = array<i32>} : memref<16x128xf32, #tpu.memory_space<vmem>>, vector<16x128xf32>,
    return
  }
  func.func @transform_0(%arg0: i32) -> (i32, i32) {
    %c0_i32 = arith.constant 0 : i32
    %c0_i32_0 = arith.constant 0 : i32
    return %arg0, %c0_i32 : i32, i32
  }
  func.func @transform_1(%arg0: i32) -> (i32, i32, i32) {
    %c0_i32 = arith.constant 0 : i32
    %c0_i32_0 = arith.constant 0 : i32
    %c0_i32_1 = arith.constant 0 : i32
    %c0_i32_2 = arith.constant 0 : i32
    return %c0_i32, %c0_i32_0, %c0_i32_1 : i32, i32, i32
  }
  func.func @transform_2(%arg0: i32) -> (i32, i32, i32) {
    %c0_i32 = arith.constant 0 : i32
    %c0_i32_0 = arith.constant 0 : i32
    %c0_i32_1 = arith.constant 0 : i32
    %c0_i32_2 = arith.constant 0 : i32
    return %c0_i32, %c0_i32_0, %c0_i32_1 : i32, i32, i32
  }
  func.func @transform_3(%arg0: i32) -> (i32, i32, i32) {
    %c0_i32 = arith.constant 0 : i32
    %c0_i32_0 = arith.constant 0 : i32
    %c0_i32_1 = arith.constant 0 : i32
    %c0_i32_2 = arith.constant 0 : i32
    return %c0_i32, %c0_i32_0, %c0_i32_1 : i32, i32, i32
  }
  func.func @transform_4(%arg0: i32) -> (i32, i32) {
    %c0_i32 = arith.constant 0 : i32
    %c0_i32_0 = arith.constant 0 : i32
    %c0_i32_1 = arith.constant 0 : i32
    return %c0_i32, %c0_i32_0 : i32, i32
  }
  func.func @transform_5(%arg0: i32) -> (i32, i32) {
    %c0_i32 = arith.constant 0 : i32
    %c0_i32_0 = arith.constant 0 : i32
    return %arg0, %c0_i32 : i32, i32
  }
}

</mosaic_0001>

<llo_original>
// kernel: tpu_custom_call.1
$region0: #{tpu_custom_call.1}
  #allocation0 [shape = 'u32[]', space=smem, size = 0x4, offset = 0x4, fixed_abs, tag = 'smem constant byte address 0x4 - core index']
  #allocation1 [shape = 'u32[144,128]{1,0:T(1,128)}', space=vmem, size = 0x12000, scoped, tag = 'internal scratch']
  #allocation2 [shape = 'bf16[160,256]{1,0:T(16,128)(2,1)}', space=vmem, size = 0x14000, scoped, tag = 'scratch operand']
  #allocation3 [shape = 'bf16[160,256]{1,0:T(16,128)(2,1)}', space=vmem, size = 0x14000, scoped, tag = 'scratch operand']
  %s0 = inlined_call_operand.hbm [shape: bf16[640,128], index: 0, kind: input, shape index: {}]
  %s1 = inlined_call_operand.hbm [shape: bf16[5,128,256], index: 1, kind: input, shape index: {}]
  %s2 = inlined_call_operand.hbm [shape: bf16[5,256,128], index: 2, kind: input, shape index: {}]
  %s3 = inlined_call_operand.hbm [shape: bf16[8,128,128], index: 3, kind: input, shape index: {}]
  %s4 = inlined_call_operand.vmem [shape: f32[1,128], index: 4, kind: input, shape index: {}]
  %s5 = inlined_call_operand.hbm [shape: f32[32,128], index: 5, kind: output, shape index: {}]
  %s6 = sld [smem:[#allocation0]]
  $region69: #{tpu_custom_call.1} parent=0
    _
  %s8 = ssub.s32 1, %s6
  %s9 = scalar_select 0, %s8, %s6
  $region1: #{tpu_custom_call.1} parent=0
    #allocation4 [shape = 'u8[163840]{0}', space=vmem, size = 0x28000, scoped, tag = 'input window, operand 0']
    #allocation5 [shape = 's32[2]{0}', space=sflag, size = 0x8, scoped, tag = 'scoped memory for tpu_custom_call.1']
    #allocation6 [shape = 's32[2]{0}', space=sflag, size = 0x8, scoped, tag = 'scoped memory for tpu_custom_call.1']
    #allocation7 [shape = 'u8[327680]{0}', space=vmem, size = 0x50000, scoped, tag = 'input window, operand 1, single buffered']
    #allocation8 [shape = 's32[1]{0}', space=sflag, size = 0x4, scoped, tag = 'scoped memory for tpu_custom_call.1']
    #allocation9 [shape = 'u8[327680]{0}', space=vmem, size = 0x50000, scoped, tag = 'input window, operand 2, single buffered']
    #allocation10 [shape = 'u8[262144]{0}', space=vmem, size = 0x40000, scoped, tag = 'input window, operand 3, single buffered']
    #allocation11 [shape = 's32[1]{0}', space=sflag, size = 0x4, scoped, tag = 'scoped memory for tpu_custom_call.1']
    #allocation12 [shape = 'u8[16384]{0}', space=vmem, size = 0x4000, scoped, tag = 'output window, operand 0']
    %10 = vsyncpa [#allocation5], 0
    %s11 = scalar_lea.sflag [#allocation5], 1
    %12 = vsyncpa %s11, 0
    %13 = vsyncpa [#allocation8], 0
    %14 = vsyncpa [#allocation11], 0
    %15 = vsyncpa [#allocation6], 0
    %s16 = scalar_lea.sflag [#allocation6], 1
    %17 = vsyncpa %s16, 0
    loop: start=0, step=1, limit=4
    $region2: #{tpu_custom_call.1} parent=1 // loop_pre_header
      _
    $region3: #{tpu_custom_call.1} parent=1 // loop_header
      %s19 = sphi 0, %s23
      %p20 = scmp.ge.s32.totalorder %s19, 4
      %s29 = sphi 0, %s31
      %s32 = sphi 0, %s29
      %s33 = sphi 0, %s32
      %s49 = sphi 0, %s33
      %s53 = sphi 0, %s53
      %s55 = sphi 0, %s53
      %s56 = sphi 0, %s55
      %s70 = sphi 0, %s56
      %s74 = sphi 0, %s74
      %s76 = sphi 0, %s74
      %s77 = sphi 0, %s76
      %s91 = sphi 0, %s77
      %s95 = sphi 0, %s95
      %s97 = sphi 0, %s95
      %s98 = sphi 0, %s97
      %s112 = sphi 0, %s98
      %s116 = sphi 0, %s116
      %s118 = sphi 0, %s116
      %s119 = sphi 0, %s118
      %s133 = sphi 0, %s119
      %s139 = sphi 0, %s141
      %s142 = sphi 0, %s139
      %s143 = sphi 0, %s142
      %s159 = sphi 0, %s143
    $region4: #{tpu_custom_call.1} parent=1 // loop_header_branch
      %22 = sbr.rel (%p20) target = $region8
    $region5: #{tpu_custom_call.1} parent=1 // loop_body
      %s24 = ssub.s32 %s19, 1
      %s25 = ssub.s32 %s19, 2
      %s26 = sadd.s32 %s19, 1
      %s27 = ssub.s32 %s19, %s26
      %p28 = scmp.eq.s32.totalorder %s27, 0
      %s30 = sadd.s32 %s29, 1
      %s31 = scalar_select %p28, %s29, %s30
      %p34 = pneg %p28
      %p35 = scmp.eq.s32.totalorder %s19, 1
      %p36 = por %p34, %p35
      %p37 = scmp.ne.s32.totalorder %s29, %s32
      %p38 = scmp.eq.s32.totalorder %s19, 0
      %p39 = por %p37, %p38
      %p40 = scmp.ne.s32.totalorder %s29, %s32
      %p41 = scmp.eq.s32.totalorder %s24, 1
      %p42 = por %p40, %p41
      %p43 = scmp.ne.s32.totalorder %s32, %s33
      %p44 = scmp.eq.s32.totalorder %s24, 0
      %p45 = por %p43, %p44
      %p46 = scmp.ne.s32.totalorder %s32, %s33
      %p47 = scmp.eq.s32.totalorder %s25, 1
      %p48 = por %p46, %p47
      %p50 = scmp.ne.s32.totalorder %s33, %s49
      %p51 = scmp.eq.s32.totalorder %s25, 0
      %p52 = por %p50, %p51
      %s54 = sadd.s32 %s53, 1
      %p57 = scmp.eq.s32.totalorder %s19, 1
      %p58 = scmp.ne.s32.totalorder %s53, %s55
      %p59 = scmp.eq.s32.totalorder %s19, 0
      %p60 = por %p58, %p59
      %p61 = scmp.ne.s32.totalorder %s53, %s55
      %p62 = scmp.eq.s32.totalorder %s24, 1
      %p63 = por %p61, %p62
      %p64 = scmp.ne.s32.totalorder %s55, %s56
      %p65 = scmp.eq.s32.totalorder %s24, 0
      %p66 = por %p64, %p65
      %p67 = scmp.ne.s32.totalorder %s55, %s56
      %p68 = scmp.eq.s32.totalorder %s25, 1
      %p69 = por %p67, %p68
      %p71 = scmp.ne.s32.totalorder %s56, %s70
      %p72 = scmp.eq.s32.totalorder %s25, 0
      %p73 = por %p71, %p72
      %s75 = sadd.s32 %s74, 1
      %p78 = scmp.eq.s32.totalorder %s19, 1
      %p79 = scmp.ne.s32.totalorder %s74, %s76
      %p80 = scmp.eq.s32.totalorder %s19, 0
      %p81 = por %p79, %p80
      %p82 = scmp.ne.s32.totalorder %s74, %s76
      %p83 = scmp.eq.s32.totalorder %s24, 1
      %p84 = por %p82, %p83
      %p85 = scmp.ne.s32.totalorder %s76, %s77
      %p86 = scmp.eq.s32.totalorder %s24, 0
      %p87 = por %p85, %p86
      %p88 = scmp.ne.s32.totalorder %s76, %s77
      %p89 = scmp.eq.s32.totalorder %s25, 1
      %p90 = por %p88, %p89
      %p92 = scmp.ne.s32.totalorder %s77, %s91
      %p93 = scmp.eq.s32.totalorder %s25, 0
      %p94 = por %p92, %p93
      %s96 = sadd.s32 %s95, 1
      %p99 = scmp.eq.s32.totalorder %s19, 1
      %p100 = scmp.ne.s32.totalorder %s95, %s97
      %p101 = scmp.eq.s32.totalorder %s19, 0
      %p102 = por %p100, %p101
      %p103 = scmp.ne.s32.totalorder %s95, %s97
      %p104 = scmp.eq.s32.totalorder %s24, 1
      %p105 = por %p103, %p104
      %p106 = scmp.ne.s32.totalorder %s97, %s98
      %p107 = scmp.eq.s32.totalorder %s24, 0
      %p108 = por %p106, %p107
      %p109 = scmp.ne.s32.totalorder %s97, %s98
      %p110 = scmp.eq.s32.totalorder %s25, 1
      %p111 = por %p109, %p110
      %p113 = scmp.ne.s32.totalorder %s98, %s112
      %p114 = scmp.eq.s32.totalorder %s25, 0
      %p115 = por %p113, %p114
      %s117 = sadd.s32 %s116, 1
      %p120 = scmp.eq.s32.totalorder %s19, 1
      %p121 = scmp.ne.s32.totalorder %s116, %s118
      %p122 = scmp.eq.s32.totalorder %s19, 0
      %p123 = por %p121, %p122
      %p124 = scmp.ne.s32.totalorder %s116, %s118
      %p125 = scmp.eq.s32.totalorder %s24, 1
      %p126 = por %p124, %p125
      %p127 = scmp.ne.s32.totalorder %s118, %s119
      %p128 = scmp.eq.s32.totalorder %s24, 0
      %p129 = por %p127, %p128
      %p130 = scmp.ne.s32.totalorder %s118, %s119
      %p131 = scmp.eq.s32.totalorder %s25, 1
      %p132 = por %p130, %p131
      %p134 = scmp.ne.s32.totalorder %s119, %s133
      %p135 = scmp.eq.s32.totalorder %s25, 0
      %p136 = por %p134, %p135
      %s137 = ssub.s32 %s19, %s26
      %p138 = scmp.eq.s32.totalorder %s137, 0
      %s140 = sadd.s32 %s139, 1
      %s141 = scalar_select %p138, %s139, %s140
      %p144 = pneg %p138
      %p145 = scmp.eq.s32.totalorder %s19, 1
      %p146 = por %p144, %p145
      %p147 = scmp.ne.s32.totalorder %s139, %s142
      %p148 = scmp.eq.s32.totalorder %s19, 0
      %p149 = por %p147, %p148
      %p150 = scmp.ne.s32.totalorder %s139, %s142
      %p151 = scmp.eq.s32.totalorder %s24, 1
      %p152 = por %p150, %p151
      %p153 = scmp.ne.s32.totalorder %s142, %s143
      %p154 = scmp.eq.s32.totalorder %s24, 0
      %p155 = por %p153, %p154
      %p156 = scmp.ne.s32.totalorder %s142, %s143
      %p157 = scmp.eq.s32.totalorder %s25, 1
      %p158 = por %p156, %p157
      %p160 = scmp.ne.s32.totalorder %s143, %s159
      %p161 = scmp.eq.s32.totalorder %s25, 0
      %p162 = por %p160, %p161
      %p163 = scmp.le.s32.totalorder 1, %s19
      %p164 = scmp.lt.s32.totalorder %s19, 3
      %p165 = pnand %p163, %p164
      %p166 = pneg %p165
      // Predicated region
      $region9: #{tpu_custom_call.1} parent=5 // pred_check
        _
      $region10: #{tpu_custom_call.1} parent=5 // pred_check_branch
        %168 = sbr.rel (%p165) target = $region12
      $region11: #{tpu_custom_call.1} parent=5 // pred_region
        %s169 = ssub.s32 %s19, 1
        // Predicated region
        $region13: #{tpu_custom_call.1} parent=11 // pred_check
          %p170 = pneg %p66
        $region14: #{tpu_custom_call.1} parent=11 // pred_check_branch
          %172 = sbr.rel (%p170) target = $region16
        $region15: #{tpu_custom_call.1} parent=11 // pred_region
          %s174 = ssub.s32 10240, 10240
          %175 = vsyncadd [#allocation8], %s174
          %s176 = sshll.u32 [#allocation7], 4
          %s177 = int_to_ptr.vmem [resolvable:$true] %s176
          %182 = dma.hbm_to_vmem [thread:$0]  %s1, 10240, %s177, [#allocation8], 128, 128, 8
        $region16: #{tpu_custom_call.1} parent=11 // pred_fallthru
          _
        // Predicated region
        $region17: #{tpu_custom_call.1} parent=11 // pred_check
          %p183 = pneg %p87
        $region18: #{tpu_custom_call.1} parent=11 // pred_check_branch
          %185 = sbr.rel (%p183) target = $region20
        $region19: #{tpu_custom_call.1} parent=11 // pred_region
          %s187 = ssub.s32 10240, 10240
          %188 = vsyncadd [#allocation8], %s187
          %s189 = sshll.u32 [#allocation9], 4
          %s190 = int_to_ptr.vmem [resolvable:$true] %s189
          %195 = dma.hbm_to_vmem [thread:$0]  %s2, 10240, %s190, [#allocation8], 64, 64, 4
        $region20: #{tpu_custom_call.1} parent=11 // pred_fallthru
          _
        // Predicated region
        $region21: #{tpu_custom_call.1} parent=11 // pred_check
          %p196 = pneg %p108
        $region22: #{tpu_custom_call.1} parent=11 // pred_check_branch
          %198 = sbr.rel (%p196) target = $region24
        $region23: #{tpu_custom_call.1} parent=11 // pred_region
          %s200 = ssub.s32 8192, 8192
          %201 = vsyncadd [#allocation11], %s200
          %s202 = sshll.u32 [#allocation10], 4
          %s203 = int_to_ptr.vmem [resolvable:$true] %s202
          %208 = dma.hbm_to_vmem [thread:$0]  %s3, 8192, %s203, [#allocation11], 64, 64, 4
        $region24: #{tpu_custom_call.1} parent=11 // pred_fallthru
          _
        // Predicated region
        $region25: #{tpu_custom_call.1} parent=11 // pred_check
          %p209 = pneg %p129
        $region26: #{tpu_custom_call.1} parent=11 // pred_check_branch
          %211 = sbr.rel (%p209) target = $region28
        $region27: #{tpu_custom_call.1} parent=11 // pred_region
          _
        $region28: #{tpu_custom_call.1} parent=11 // pred_fallthru
          _
      $region12: #{tpu_custom_call.1} parent=5 // pred_fallthru
        _
      %p212 = scmp.lt.s32.totalorder %s19, 2
      // Predicated region
      $region29: #{tpu_custom_call.1} parent=5 // pred_check
        %p213 = pneg %p212
      $region30: #{tpu_custom_call.1} parent=5 // pred_check_branch
        %215 = sbr.rel (%p213) target = $region32
      $region31: #{tpu_custom_call.1} parent=5 // pred_region
        // Predicated region
        $region33: #{tpu_custom_call.1} parent=31 // pred_check
          %p216 = pneg %p39
        $region34: #{tpu_custom_call.1} parent=31 // pred_check_branch
          %218 = sbr.rel (%p216) target = $region36
        $region35: #{tpu_custom_call.1} parent=31 // pred_region
          %s219 = sand.u32 %s29, 1
          %s220 = scalar_lea.sflag [#allocation5], %s219
          %s221 = sand.u32 %s29, 1
          %s222 = smul.addr %s221, 160
          %s223 = scalar_lea.vmem [#allocation4], %s222
          %s224 = smul.u32 40, %s19
          %s226 = ssub.s32 2560, 2560
          %227 = vsyncadd %s220, %s226
          %s228 = smul.addr %s224, 64
          %s229 = scalar_lea.hbm %s0, %s228
          %s230 = sshll.u32 %s223, 4
          %s231 = int_to_ptr.vmem [resolvable:$true] %s230
          %236 = dma.hbm_to_vmem [thread:$0]  %s229, 2560, %s231, %s220, 64, 64, 4
        $region36: #{tpu_custom_call.1} parent=31 // pred_fallthru
          _
      $region32: #{tpu_custom_call.1} parent=5 // pred_fallthru
        _
      %p237 = scmp.le.s32.totalorder 1, %s19
      %p238 = scmp.lt.s32.totalorder %s19, 3
      %p239 = pnand %p237, %p238
      %p240 = pneg %p239
      // Predicated region
      $region37: #{tpu_custom_call.1} parent=5 // pred_check
        _
      $region38: #{tpu_custom_call.1} parent=5 // pred_check_branch
        %242 = sbr.rel (%p239) target = $region40
      $region39: #{tpu_custom_call.1} parent=5 // pred_region
        %s243 = ssub.s32 %s19, 1
        %s244 = sand.u32 %s32, 1
        %s245 = scalar_lea.sflag [#allocation5], %s244
        %s246 = sand.u32 %s32, 1
        %s247 = smul.addr %s246, 160
        %s248 = scalar_lea.vmem [#allocation4], %s247
        // Predicated region
        $region41: #{tpu_custom_call.1} parent=39 // pred_check
          %p249 = pneg %p45
        $region42: #{tpu_custom_call.1} parent=39 // pred_check_branch
          %251 = sbr.rel (%p249) target = $region44
        $region43: #{tpu_custom_call.1} parent=39 // pred_region
          %252 = dma.done %s245, 2560
        $region44: #{tpu_custom_call.1} parent=39 // pred_fallthru
          _
        // Predicated region
        $region45: #{tpu_custom_call.1} parent=39 // pred_check
          %p253 = pneg %p66
        $region46: #{tpu_custom_call.1} parent=39 // pred_check_branch
          %255 = sbr.rel (%p253) target = $region48
        $region47: #{tpu_custom_call.1} parent=39 // pred_region
          %256 = dma.done [#allocation8], 10240
        $region48: #{tpu_custom_call.1} parent=39 // pred_fallthru
          _
        // Predicated region
        $region49: #{tpu_custom_call.1} parent=39 // pred_check
          %p257 = pneg %p87
        $region50: #{tpu_custom_call.1} parent=39 // pred_check_branch
          %259 = sbr.rel (%p257) target = $region52
        $region51: #{tpu_custom_call.1} parent=39 // pred_region
          %260 = dma.done [#allocation8], 10240
        $region52: #{tpu_custom_call.1} parent=39 // pred_fallthru
          _
        // Predicated region
        $region53: #{tpu_custom_call.1} parent=39 // pred_check
          %p261 = pneg %p108
        $region54: #{tpu_custom_call.1} parent=39 // pred_check_branch
          %263 = sbr.rel (%p261) target = $region56
        $region55: #{tpu_custom_call.1} parent=39 // pred_region
          %264 = dma.done [#allocation11], 8192
        $region56: #{tpu_custom_call.1} parent=39 // pred_fallthru
          _
        %s265 = sand.u32 %s32, 1
        %s266 = scalar_lea.sflag [#allocation5], %s265
        %s267 = sand.u32 %s32, 1
        %s268 = smul.addr %s267, 160
        %s269 = scalar_lea.vmem [#allocation4], %s268
        %p270 = pneg %p45
        %p271 = pneg %p42
        %p272 = pneg %p66
        %p273 = pneg %p63
        %p274 = pneg %p87
        %p275 = pneg %p84
        %p276 = pneg %p108
        %p277 = pneg %p105
        %p278 = pneg %p129
        %p279 = pneg %p126
        %p280 = pneg %p155
        %p281 = pneg %p152
        %s282 = sand.u32 %s142, 1
        %s283 = scalar_lea.sflag [#allocation6], %s282
        %s284 = sand.u32 %s142, 1
        %s285 = smul.addr %s284, 16
        %s286 = scalar_lea.vmem [#allocation12], %s285
        %s287 = smul.u32 40, %s24
        %s288 = smul.u32 2, %s24
        %290 = vst [vmem:[#allocation2] sm:$0xff] 0
        %291 = vst [vmem:[#allocation2 + $0x8] sm:$0xff] 0
        %292 = vst [vmem:[#allocation2 + $0x90] sm:$0xff] 0
        %293 = vst [vmem:[#allocation2 + $0x98] sm:$0xff] 0
        %294 = vst [vmem:[#allocation3] sm:$0xff] 0
        %295 = vst [vmem:[#allocation3 + $0x8] sm:$0xff] 0
        %296 = vst [vmem:[#allocation3 + $0x90] sm:$0xff] 0
        %297 = vst [vmem:[#allocation3 + $0x98] sm:$0xff] 0
        %v298 = vld [vmem:[%s248] sm:$0xf]
        %v299 = vld [vmem:[%s248 + $0x4] sm:$0xf]
        %v300 = vld [vmem:[%s248 + $0x8] sm:$0xf]
        %v301 = vld [vmem:[%s248 + $0xc] sm:$0xf]
        %v302 = vld [vmem:[%s248 + $0x10] sm:$0xf]
        %v303 = vld [vmem:[%s248 + $0x14] sm:$0xf]
        %v304 = vld [vmem:[%s248 + $0x18] sm:$0xf]
        %v305 = vld [vmem:[%s248 + $0x1c] sm:$0xf]
        %v306 = vld [vmem:[%s248 + $0x20] sm:$0xf]
        %v307 = vld [vmem:[%s248 + $0x24] sm:$0xf]
        %v308 = vld [vmem:[%s248 + $0x28] sm:$0xf]
        %v309 = vld [vmem:[%s248 + $0x2c] sm:$0xf]
        %v310 = vld [vmem:[%s248 + $0x30] sm:$0xf]
        %v311 = vld [vmem:[%s248 + $0x34] sm:$0xf]
        %v312 = vld [vmem:[%s248 + $0x38] sm:$0xf]
        %v313 = vld [vmem:[%s248 + $0x3c] sm:$0xf]
        %v314 = vld [vmem:[%s248 + $0x40] sm:$0xf]
        %v315 = vld [vmem:[%s248 + $0x44] sm:$0xf]
        %v316 = vld [vmem:[%s248 + $0x48] sm:$0xf]
        %v317 = vld [vmem:[%s248 + $0x4c] sm:$0xf]
        %v318 = vld [vmem:[%s248 + $0x50] sm:$0xf]
        %v319 = vld [vmem:[%s248 + $0x54] sm:$0xf]
        %v320 = vld [vmem:[%s248 + $0x58] sm:$0xf]
        %v321 = vld [vmem:[%s248 + $0x5c] sm:$0xf]
        %v322 = vld [vmem:[%s248 + $0x60] sm:$0xf]
        %v323 = vld [vmem:[%s248 + $0x64] sm:$0xf]
        %v324 = vld [vmem:[%s248 + $0x68] sm:$0xf]
        %v325 = vld [vmem:[%s248 + $0x6c] sm:$0xf]
        %v326 = vld [vmem:[%s248 + $0x70] sm:$0xf]
        %v327 = vld [vmem:[%s248 + $0x74] sm:$0xf]
        %v328 = vld [vmem:[%s248 + $0x78] sm:$0xf]
        %v329 = vld [vmem:[%s248 + $0x7c] sm:$0xf]
        %v330 = vld [vmem:[#allocation7] sm:$0xff]
        %v331 = vld [vmem:[#allocation7 + $0x8] sm:$0xff]
        %v332 = vld [vmem:[#allocation7 + $0x10] sm:$0xff]
        %v333 = vld [vmem:[#allocation7 + $0x18] sm:$0xff]
        %v334 = vld [vmem:[#allocation7 + $0x20] sm:$0xff]
        %v335 = vld [vmem:[#allocation7 + $0x28] sm:$0xff]
        %v336 = vld [vmem:[#allocation7 + $0x30] sm:$0xff]
        %v337 = vld [vmem:[#allocation7 + $0x38] sm:$0xff]
        %v338 = vld [vmem:[#allocation7 + $0x40] sm:$0xff]
        %v339 = vld [vmem:[#allocation7 + $0x48] sm:$0xff]
        %v340 = vld [vmem:[#allocation7 + $0x50] sm:$0xff]
        %v341 = vld [vmem:[#allocation7 + $0x58] sm:$0xff]
        %v342 = vld [vmem:[#allocation7 + $0x60] sm:$0xff]
        %v343 = vld [vmem:[#allocation7 + $0x68] sm:$0xff]
        %v344 = vld [vmem:[#allocation7 + $0x70] sm:$0xff]
        %v345 = vld [vmem:[#allocation7 + $0x78] sm:$0xff]
        %v346 = vld [vmem:[%s248 + $0x80] sm:$0xf]
        %v347 = vld [vmem:[%s248 + $0x84] sm:$0xf]
        %s348 = scalar_lea.vmem [#allocation7], 128
        %v349 = vld [vmem:[%s348] sm:$0xff]
        %v350 = vld [vmem:[%s348 + $0x8] sm:$0xff]
        %v351 = vld [vmem:[%s348 + $0x10] sm:$0xff]
        %v352 = vld [vmem:[%s348 + $0x18] sm:$0xff]
        %v353 = vld [vmem:[%s348 + $0x20] sm:$0xff]
        %v354 = vld [vmem:[%s348 + $0x28] sm:$0xff]
        %v355 = vld [vmem:[%s348 + $0x30] sm:$0xff]
        %v356 = vld [vmem:[%s348 + $0x38] sm:$0xff]
        %v357 = vld [vmem:[%s348 + $0x40] sm:$0xff]
        %v358 = vld [vmem:[%s348 + $0x48] sm:$0xff]
        %v359 = vld [vmem:[%s348 + $0x50] sm:$0xff]
        %v360 = vld [vmem:[%s348 + $0x58] sm:$0xff]
        %v361 = vld [vmem:[%s348 + $0x60] sm:$0xff]
        %v362 = vld [vmem:[%s348 + $0x68] sm:$0xff]
        %v363 = vld [vmem:[%s348 + $0x70] sm:$0xff]
        %v364 = vld [vmem:[%s348 + $0x78] sm:$0xff]
        %v397 = vunpack.c.l.b16 %v300
        %v398 = vunpack.c.l.b16 %v301
        %v399 = vunpack.c.l.b16 %v302
        %v400 = vunpack.c.l.b16 %v303
        %v401 = vunpack.c.l.b16 %v304
        %v402 = vunpack.c.l.b16 %v305
        %v403 = vunpack.c.l.b16 %v306
        %v404 = vunpack.c.l.b16 %v307
        %v405 = vunpack.c.l.b16 %v308
        %v406 = vunpack.c.l.b16 %v309
        %v407 = vunpack.c.l.b16 %v310
        %v408 = vunpack.c.l.b16 %v311
        %v409 = vunpack.c.l.b16 %v312
        %v410 = vunpack.c.l.b16 %v313
        %v411 = vunpack.c.l.b16 %v314
        %v412 = vunpack.c.l.b16 %v315
        %v413 = vunpack.c.l.b16 %v316
        %v414 = vunpack.c.l.b16 %v317
        %v415 = vunpack.c.l.b16 %v318
        %v416 = vunpack.c.l.b16 %v319
        %v417 = vunpack.c.l.b16 %v320
        %v418 = vunpack.c.l.b16 %v321
        %v419 = vunpack.c.l.b16 %v322
        %v420 = vunpack.c.l.b16 %v323
        %v421 = vunpack.c.l.b16 %v324
        %v422 = vunpack.c.l.b16 %v325
        %v423 = vunpack.c.l.b16 %v326
        %v424 = vunpack.c.l.b16 %v327
        %v425 = vunpack.c.l.b16 %v328
        %v426 = vunpack.c.l.b16 %v329
        %v427 = vunpack.c.l.b16 %v346
        %v428 = vunpack.c.l.b16 %v347
        %v429 = vpack.c.b16 %v398, %v397
        %v430 = vpack.c.b16 %v400, %v399
        %v431 = vpack.c.b16 %v402, %v401
        %v432 = vpack.c.b16 %v404, %v403
        %v433 = vpack.c.b16 %v406, %v405
        %v434 = vpack.c.b16 %v408, %v407
        %v435 = vpack.c.b16 %v410, %v409
        %v436 = vpack.c.b16 %v412, %v411
        %v437 = vpack.c.b16 %v414, %v413
        %v438 = vpack.c.b16 %v416, %v415
        %v439 = vpack.c.b16 %v418, %v417
        %v440 = vpack.c.b16 %v420, %v419
        %v441 = vpack.c.b16 %v422, %v421
        %v442 = vpack.c.b16 %v424, %v423
        %v443 = vpack.c.b16 %v426, %v425
        %v444 = vpack.c.b16 %v428, %v427
        %v477 = vunpack.c.l.b16 %v349
        %v478 = vunpack.c.h.b16 %v349
        %v479 = vunpack.c.l.b16 %v350
        %v480 = vunpack.c.h.b16 %v350
        %v481 = vunpack.c.l.b16 %v351
        %v482 = vunpack.c.h.b16 %v351
        %v483 = vunpack.c.l.b16 %v352
        %v484 = vunpack.c.h.b16 %v352
        %v485 = vunpack.c.l.b16 %v353
        %v486 = vunpack.c.h.b16 %v353
        %v487 = vunpack.c.l.b16 %v354
        %v488 = vunpack.c.h.b16 %v354
        %v489 = vunpack.c.l.b16 %v355
        %v490 = vunpack.c.h.b16 %v355
        %v491 = vunpack.c.l.b16 %v356
        %v492 = vunpack.c.h.b16 %v356
        %v493 = vunpack.c.l.b16 %v357
        %v494 = vunpack.c.h.b16 %v357
        %v495 = vunpack.c.l.b16 %v358
        %v496 = vunpack.c.h.b16 %v358
        %v497 = vunpack.c.l.b16 %v359
        %v498 = vunpack.c.h.b16 %v359
        %v499 = vunpack.c.l.b16 %v360
        %v500 = vunpack.c.h.b16 %v360
        %v501 = vunpack.c.l.b16 %v361
        %v502 = vunpack.c.h.b16 %v361
        %v503 = vunpack.c.l.b16 %v362
        %v504 = vunpack.c.h.b16 %v362
        %v505 = vunpack.c.l.b16 %v363
        %v506 = vunpack.c.h.b16 %v363
        %v507 = vunpack.c.l.b16 %v364
        %v508 = vunpack.c.h.b16 %v364
        %v509 = vpack.c.b16 %v479, %v477
        %v510 = vpack.c.b16 %v480, %v478
        %v511 = vpack.c.b16 %v483, %v481
        %v512 = vpack.c.b16 %v484, %v482
        %v513 = vpack.c.b16 %v487, %v485
        %v514 = vpack.c.b16 %v488, %v486
        %v515 = vpack.c.b16 %v491, %v489
        %v516 = vpack.c.b16 %v492, %v490
        %v517 = vpack.c.b16 %v495, %v493
        %v518 = vpack.c.b16 %v496, %v494
        %v519 = vpack.c.b16 %v499, %v497
        %v520 = vpack.c.b16 %v500, %v498
        %v521 = vpack.c.b16 %v503, %v501
        %v522 = vpack.c.b16 %v504, %v502
        %v523 = vpack.c.b16 %v507, %v505
        %v524 = vpack.c.b16 %v508, %v506
        %541 = vmatprep.subr.bf16.mxu0 %v510
        %542 = vmatpush1.bf16.msra.mxu0 %v509
        %543 = vmatprep.subr.bf16.mxu0 %v512
        %544 = vmatpush1.bf16.msra.mxu0 %v511
        %545 = vmatprep.subr.bf16.mxu0 %v514
        %546 = vmatpush1.bf16.msra.mxu0 %v513
        %547 = vmatprep.subr.bf16.mxu0 %v516
        %548 = vmatpush1.bf16.msra.mxu0 %v515
        %549 = vmatprep.subr.bf16.mxu0 %v518
        %550 = vmatpush1.bf16.msra.mxu0 %v517
        %551 = vmatprep.subr.bf16.mxu0 %v520
        %552 = vmatpush1.bf16.msra.mxu0 %v519
        %553 = vmatprep.subr.bf16.mxu0 %v522
        %554 = vmatpush1.bf16.msra.mxu0 %v521
        %555 = vmatprep.subr.bf16.mxu0 %v524
        %556 = vmatpush1.bf16.msra.mxu0 %v523
        %557 = vmatprep.subr.bf16.mxu0 0
        %558 = vmatpush1.bf16.msra.mxu0 0
        %559 = vmatprep.subr.bf16.mxu0 0
        %560 = vmatpush1.bf16.msra.mxu0 0
        %561 = vmatprep.subr.bf16.mxu0 0
        %562 = vmatpush1.bf16.msra.mxu0 0
        %563 = vmatprep.subr.bf16.mxu0 0
        %564 = vmatpush1.bf16.msra.mxu0 0
        %565 = vmatprep.subr.bf16.mxu0 0
        %566 = vmatpush1.bf16.msra.mxu0 0
        %567 = vmatprep.subr.bf16.mxu0 0
        %568 = vmatpush1.bf16.msra.mxu0 0
        %569 = vmatprep.subr.bf16.mxu0 0
        %570 = vmatpush1.bf16.msra.mxu0 0
        %571 = vmatprep.subr.bf16.mxu0 0
        %572 = vmatpush1.bf16.msra.mxu0 0
        %573 = vmatprep.mubr.bf16.mxu0 0
        %574 = vmatmul.mubr.bf16.gmra.mrb[0].mxu0 %v429
        %v575 = vpop.f32.mrb[0].mxu0
        %v576 = vadd.f32 0.0, %v575
        %v577 = vpop.f32.mrb[0].mxu0
        %v578 = vadd.f32 0.0, %v577
        %v579 = vpop.f32.mrb[0].mxu0
        %v580 = vadd.f32 0.0, %v579
        %v581 = vpop.f32.mrb[0].mxu0
        %v582 = vadd.f32 0.0, %v581
        %583 = vmatprep.mubr.bf16.mxu0 0
        %584 = vmatmul.mubr.bf16.gmra.mrb[0].mxu0 %v430
        %v585 = vpop.f32.mrb[0].mxu0
        %v586 = vadd.f32 0.0, %v585
        %v587 = vpop.f32.mrb[0].mxu0
        %v588 = vadd.f32 0.0, %v587
        %v589 = vpop.f32.mrb[0].mxu0
        %v590 = vadd.f32 0.0, %v589
        %v591 = vpop.f32.mrb[0].mxu0
        %v592 = vadd.f32 0.0, %v591
        %593 = vmatprep.mubr.bf16.mxu0 0
        %594 = vmatmul.mubr.bf16.gmra.mrb[0].mxu0 %v431
        %v595 = vpop.f32.mrb[0].mxu0
        %v596 = vadd.f32 0.0, %v595
        %v597 = vpop.f32.mrb[0].mxu0
        %v598 = vadd.f32 0.0, %v597
        %v599 = vpop.f32.mrb[0].mxu0
        %v600 = vadd.f32 0.0, %v599
        %v601 = vpop.f32.mrb[0].mxu0
        %v602 = vadd.f32 0.0, %v601
        %603 = vmatprep.mubr.bf16.mxu0 0
        %604 = vmatmul.mubr.bf16.gmra.mrb[0].mxu0 %v432
        %v605 = vpop.f32.mrb[0].mxu0
        %v606 = vadd.f32 0.0, %v605
        %v607 = vpop.f32.mrb[0].mxu0
        %v608 = vadd.f32 0.0, %v607
        %v609 = vpop.f32.mrb[0].mxu0
        %v610 = vadd.f32 0.0, %v609
        %v611 = vpop.f32.mrb[0].mxu0
        %v612 = vadd.f32 0.0, %v611
        %613 = vmatprep.mubr.bf16.mxu0 0
        %614 = vmatmul.mubr.bf16.gmra.mrb[0].mxu0 %v433
        %v615 = vpop.f32.mrb[0].mxu0
        %v616 = vadd.f32 0.0, %v615
        %v617 = vpop.f32.mrb[0].mxu0
        %v618 = vadd.f32 0.0, %v617
        %v619 = vpop.f32.mrb[0].mxu0
        %v620 = vadd.f32 0.0, %v619
        %v621 = vpop.f32.mrb[0].mxu0
        %v622 = vadd.f32 0.0, %v621
        %623 = vmatprep.mubr.bf16.mxu0 0
        %624 = vmatmul.mubr.bf16.gmra.mrb[0].mxu0 %v434
        %v625 = vpop.f32.mrb[0].mxu0
        %v626 = vadd.f32 0.0, %v625
        %v627 = vpop.f32.mrb[0].mxu0
        %v628 = vadd.f32 0.0, %v627
        %v629 = vpop.f32.mrb[0].mxu0
        %v630 = vadd.f32 0.0, %v629
        %v631 = vpop.f32.mrb[0].mxu0
        %v632 = vadd.f32 0.0, %v631
        %633 = vmatprep.mubr.bf16.mxu0 0
        %634 = vmatmul.mubr.bf16.gmra.mrb[0].mxu0 %v435
        %v635 = vpop.f32.mrb[0].mxu0
        %v636 = vadd.f32 0.0, %v635
        %v637 = vpop.f32.mrb[0].mxu0
        %v638 = vadd.f32 0.0, %v637
        %v639 = vpop.f32.mrb[0].mxu0
        %v640 = vadd.f32 0.0, %v639
        %v641 = vpop.f32.mrb[0].mxu0
        %v642 = vadd.f32 0.0, %v641
        %643 = vmatprep.mubr.bf16.mxu0 0
        %644 = vmatmul.mubr.bf16.gmra.mrb[0].mxu0 %v436
        %v645 = vpop.f32.mrb[0].mxu0
        %v646 = vadd.f32 0.0, %v645
        %v647 = vpop.f32.mrb[0].mxu0
        %v648 = vadd.f32 0.0, %v647
        %v649 = vpop.f32.mrb[0].mxu0
        %v650 = vadd.f32 0.0, %v649
        %v651 = vpop.f32.mrb[0].mxu0
        %v652 = vadd.f32 0.0, %v651
        %653 = vmatprep.mubr.bf16.mxu0 0
        %654 = vmatmul.mubr.bf16.gmra.mrb[0].mxu0 %v437
        %v655 = vpop.f32.mrb[0].mxu0
        %v656 = vadd.f32 0.0, %v655
        %v657 = vpop.f32.mrb[0].mxu0
        %v658 = vadd.f32 0.0, %v657
        %v659 = vpop.f32.mrb[0].mxu0
        %v660 = vadd.f32 0.0, %v659
        %v661 = vpop.f32.mrb[0].mxu0
        %v662 = vadd.f32 0.0, %v661
        %663 = vmatprep.mubr.bf16.mxu0 0
        %664 = vmatmul.mubr.bf16.gmra.mrb[0].mxu0 %v438
        %v665 = vpop.f32.mrb[0].mxu0
        %v666 = vadd.f32 0.0, %v665
        %v667 = vpop.f32.mrb[0].mxu0
        %v668 = vadd.f32 0.0, %v667
        %v669 = vpop.f32.mrb[0].mxu0
        %v670 = vadd.f32 0.0, %v669
        %v671 = vpop.f32.mrb[0].mxu0
        %v672 = vadd.f32 0.0, %v671
        %673 = vmatprep.mubr.bf16.mxu0 0
        %674 = vmatmul.mubr.bf16.gmra.mrb[0].mxu0 %v439
        %v675 = vpop.f32.mrb[0].mxu0
        %v676 = vadd.f32 0.0, %v675
        %v677 = vpop.f32.mrb[0].mxu0
        %v678 = vadd.f32 0.0, %v677
        %v679 = vpop.f32.mrb[0].mxu0
        %v680 = vadd.f32 0.0, %v679
        %v681 = vpop.f32.mrb[0].mxu0
        %v682 = vadd.f32 0.0, %v681
        %683 = vmatprep.mubr.bf16.mxu0 0
        %684 = vmatmul.mubr.bf16.gmra.mrb[0].mxu0 %v440
        %v685 = vpop.f32.mrb[0].mxu0
        %v686 = vadd.f32 0.0, %v685
        %v687 = vpop.f32.mrb[0].mxu0
        %v688 = vadd.f32 0.0, %v687
        %v689 = vpop.f32.mrb[0].mxu0
        %v690 = vadd.f32 0.0, %v689
        %v691 = vpop.f32.mrb[0].mxu0
        %v692 = vadd.f32 0.0, %v691
        %693 = vmatprep.mubr.bf16.mxu0 0
        %694 = vmatmul.mubr.bf16.gmra.mrb[0].mxu0 %v441
        %v695 = vpop.f32.mrb[0].mxu0
        %v696 = vadd.f32 0.0, %v695
        %v697 = vpop.f32.mrb[0].mxu0
        %v698 = vadd.f32 0.0, %v697
        %v699 = vpop.f32.mrb[0].mxu0
        %v700 = vadd.f32 0.0, %v699
        %v701 = vpop.f32.mrb[0].mxu0
        %v702 = vadd.f32 0.0, %v701
        %703 = vmatprep.mubr.bf16.mxu0 0
        %704 = vmatmul.mubr.bf16.gmra.mrb[0].mxu0 %v442
        %v705 = vpop.f32.mrb[0].mxu0
        %v706 = vadd.f32 0.0, %v705
        %v707 = vpop.f32.mrb[0].mxu0
        %v708 = vadd.f32 0.0, %v707
        %v709 = vpop.f32.mrb[0].mxu0
        %v710 = vadd.f32 0.0, %v709
        %v711 = vpop.f32.mrb[0].mxu0
        %v712 = vadd.f32 0.0, %v711
        %713 = vmatprep.mubr.bf16.mxu0 0
        %714 = vmatmul.mubr.bf16.gmra.mrb[0].mxu0 %v443
        %v715 = vpop.f32.mrb[0].mxu0
        %v716 = vadd.f32 0.0, %v715
        %v717 = vpop.f32.mrb[0].mxu0
        %v718 = vadd.f32 0.0, %v717
        %v719 = vpop.f32.mrb[0].mxu0
        %v720 = vadd.f32 0.0, %v719
        %v721 = vpop.f32.mrb[0].mxu0
        %v722 = vadd.f32 0.0, %v721
        %723 = vmatprep.mubr.bf16.mxu0 0
        %724 = vmatmul.mubr.bf16.gmra.mrb[0].mxu0 %v444
        %v725 = vpop.f32.mrb[0].mxu0
        %v726 = vadd.f32 0.0, %v725
        %v727 = vpop.f32.mrb[0].mxu0
        %v728 = vadd.f32 0.0, %v727
        %v729 = vpop.f32.mrb[0].mxu0
        %v730 = vadd.f32 0.0, %v729
        %v731 = vpop.f32.mrb[0].mxu0
        %v732 = vadd.f32 0.0, %v731
        %733 = vdwg.mxu0
        %v734 = vld [vmem:[%s248 + $0x10] sm:$0xf]
        %v735 = vld [vmem:[%s248 + $0x14] sm:$0xf]
        %v736 = vld [vmem:[%s248 + $0x18] sm:$0xf]
        %v737 = vld [vmem:[%s248 + $0x1c] sm:$0xf]
        %v738 = vld [vmem:[%s248 + $0x20] sm:$0xf]
        %v739 = vld [vmem:[%s248 + $0x24] sm:$0xf]
        %v740 = vld [vmem:[%s248 + $0x28] sm:$0xf]
        %v741 = vld [vmem:[%s248 + $0x2c] sm:$0xf]
        %v742 = vld [vmem:[%s248 + $0x30] sm:$0xf]
        %v743 = vld [vmem:[%s248 + $0x34] sm:$0xf]
        %v744 = vld [vmem:[%s248 + $0x38] sm:$0xf]
        %v745 = vld [vmem:[%s248 + $0x3c] sm:$0xf]
        %v746 = vld [vmem:[%s248 + $0x40] sm:$0xf]
        %v747 = vld [vmem:[%s248 + $0x44] sm:$0xf]
        %v748 = vld [vmem:[%s248 + $0x48] sm:$0xf]
        %v749 = vld [vmem:[%s248 + $0x4c] sm:$0xf]
        %v750 = vld [vmem:[%s248 + $0x50] sm:$0xf]
        %v751 = vld [vmem:[%s248 + $0x54] sm:$0xf]
        %v752 = vld [vmem:[%s248 + $0x58] sm:$0xf]
        %v753 = vld [vmem:[%s248 + $0x5c] sm:$0xf]
        %v754 = vld [vmem:[%s248 + $0x60] sm:$0xf]
        %v755 = vld [vmem:[%s248 + $0x64] sm:$0xf]
        %v756 = vld [vmem:[%s248 + $0x68] sm:$0xf]
        %v757 = vld [vmem:[%s248 + $0x6c] sm:$0xf]
        %v758 = vld [vmem:[%s248 + $0x70] sm:$0xf]
        %v759 = vld [vmem:[%s248 + $0x74] sm:$0xf]
        %v760 = vld [vmem:[%s248 + $0x78] sm:$0xf]
        %v761 = vld [vmem:[%s248 + $0x7c] sm:$0xf]
        %v762 = vld [vmem:[%s248 + $0x80] sm:$0xf]
        %v763 = vld [vmem:[%s248 + $0x84] sm:$0xf]
        %v764 = vld [vmem:[%s248 + $0x88] sm:$0xf]
        %v765 = vld [vmem:[%s248 + $0x8c] sm:$0xf]
        %s766 = scalar_lea.vmem [#allocation7], 256
        %v767 = vld [vmem:[%s766] sm:$0xff]
        %v768 = vld [vmem:[%s766 + $0x8] sm:$0xff]
        %v769 = vld [vmem:[%s766 + $0x10] sm:$0xff]
        %v770 = vld [vmem:[%s766 + $0x18] sm:$0xff]
        %v771 = vld [vmem:[%s766 + $0x20] sm:$0xff]
        %v772 = vld [vmem:[%s766 + $0x28] sm:$0xff]
        %v773 = vld [vmem:[%s766 + $0x30] sm:$0xff]
        %v774 = vld [vmem:[%s766 + $0x38] sm:$0xff]
        %v775 = vld [vmem:[%s766 + $0x40] sm:$0xff]
        %v776 = vld [vmem:[%s766 + $0x48] sm:$0xff]
        %v777 = vld [vmem:[%s766 + $0x50] sm:$0xff]
        %v778 = vld [vmem:[%s766 + $0x58] sm:$0xff]
        %v779 = vld [vmem:[%s766 + $0x60] sm:$0xff]
        %v780 = vld [vmem:[%s766 + $0x68] sm:$0xff]
        %v781 = vld [vmem:[%s766 + $0x70] sm:$0xff]
        %v782 = vld [vmem:[%s766 + $0x78] sm:$0xff]
        %v783 = vld [vmem:[%s248 + $0x90] sm:$0xf]
        %v784 = vld [vmem:[%s248 + $0x94] sm:$0xf]
        %s785 = scalar_lea.vmem [#allocation7], 384
        %v786 = vld [vmem:[%s785] sm:$0xff]
        %v787 = vld [vmem:[%s785 + $0x8] sm:$0xff]
        %v788 = vld [vmem:[%s785 + $0x10] sm:$0xff]
        %v789 = vld [vmem:[%s785 + $0x18] sm:$0xff]
        %v790 = vld [vmem:[%s785 + $0x20] sm:$0xff]
        %v791 = vld [vmem:[%s785 + $0x28] sm:$0xff]
        %v792 = vld [vmem:[%s785 + $0x30] sm:$0xff]
        %v793 = vld [vmem:[%s785 + $0x38] sm:$0xff]
        %v794 = vld [vmem:[%s785 + $0x40] sm:$0xff]
        %v795 = vld [vmem:[%s785 + $0x48] sm:$0xff]
        %v796 = vld [vmem:[%s785 + $0x50] sm:$0xff]
        %v797 = vld [vmem:[%s785 + $0x58] sm:$0xff]
        %v798 = vld [vmem:[%s785 + $0x60] sm:$0xff]
        %v799 = vld [vmem:[%s785 + $0x68] sm:$0xff]
        %v800 = vld [vmem:[%s785 + $0x70] sm:$0xff]
        %v801 = vld [vmem:[%s785 + $0x78] sm:$0xff]
        %v834 = vunpack.c.l.b16 %v736
        %v835 = vunpack.c.l.b16 %v737
        %v836 = vunpack.c.l.b16 %v738
        %v837 = vunpack.c.l.b16 %v739
        %v838 = vunpack.c.l.b16 %v740
        %v839 = vunpack.c.l.b16 %v741
        %v840 = vunpack.c.l.b16 %v742
        %v841 = vunpack.c.l.b16 %v743
        %v842 = vunpack.c.l.b16 %v744
        %v843 = vunpack.c.l.b16 %v745
        %v844 = vunpack.c.l.b16 %v746
        %v845 = vunpack.c.l.b16 %v747
        %v846 = vunpack.c.l.b16 %v748
        %v847 = vunpack.c.l.b16 %v749
        %v848 = vunpack.c.l.b16 %v750
        %v849 = vunpack.c.l.b16 %v751
        %v850 = vunpack.c.l.b16 %v752
        %v851 = vunpack.c.l.b16 %v753
        %v852 = vunpack.c.l.b16 %v754
        %v853 = vunpack.c.l.b16 %v755
        %v854 = vunpack.c.l.b16 %v756
        %v855 = vunpack.c.l.b16 %v757
        %v856 = vunpack.c.l.b16 %v758
        %v857 = vunpack.c.l.b16 %v759
        %v858 = vunpack.c.l.b16 %v760
        %v859 = vunpack.c.l.b16 %v761
        %v860 = vunpack.c.l.b16 %v762
        %v861 = vunpack.c.l.b16 %v763
        %v862 = vunpack.c.l.b16 %v764
        %v863 = vunpack.c.l.b16 %v765
        %v864 = vunpack.c.l.b16 %v783
        %v865 = vunpack.c.l.b16 %v784
        %v866 = vpack.c.b16 %v835, %v834
        %v867 = vpack.c.b16 %v837, %v836
        %v868 = vpack.c.b16 %v839, %v838
        %v869 = vpack.c.b16 %v841, %v840
        %v870 = vpack.c.b16 %v843, %v842
        %v871 = vpack.c.b16 %v845, %v844
        %v872 = vpack.c.b16 %v847, %v846
        %v873 = vpack.c.b16 %v849, %v848
        %v874 = vpack.c.b16 %v851, %v850
        %v875 = vpack.c.b16 %v853, %v852
        %v876 = vpack.c.b16 %v855, %v854
        %v877 = vpack.c.b16 %v857, %v856
        %v878 = vpack.c.b16 %v859, %v858
        %v879 = vpack.c.b16 %v861, %v860
        %v880 = vpack.c.b16 %v863, %v862
        %v881 = vpack.c.b16 %v865, %v864
        %v914 = vunpack.c.l.b16 %v786
        %v915 = vunpack.c.h.b16 %v786
        %v916 = vunpack.c.l.b16 %v787
        %v917 = vunpack.c.h.b16 %v787
        %v918 = vunpack.c.l.b16 %v788
        %v919 = vunpack.c.h.b16 %v788
        %v920 = vunpack.c.l.b16 %v789
        %v921 = vunpack.c.h.b16 %v789
        %v922 = vunpack.c.l.b16 %v790
        %v923 = vunpack.c.h.b16 %v790
        %v924 = vunpack.c.l.b16 %v791
        %v925 = vunpack.c.h.b16 %v791
        %v926 = vunpack.c.l.b16 %v792
        %v927 = vunpack.c.h.b16 %v792
        %v928 = vunpack.c.l.b16 %v793
        %v929 = vunpack.c.h.b16 %v793
        %v930 = vunpack.c.l.b16 %v794
        %v931 = vunpack.c.h.b16 %v794
        %v932 = vunpack.c.l.b16 %v795
        %v933 = vunpack.c.h.b16 %v795
        %v934 = vunpack.c.l.b16 %v796
        %v935 = vunpack.c.h.b16 %v796
        %v936 = vunpack.c.l.b16 %v797
        %v937 = vunpack.c.h.b16 %v797
        %v938 = vunpack.c.l.b16 %v798
        %v939 = vunpack.c.h.b16 %v798
        %v940 = vunpack.c.l.b16 %v799
        %v941 = vunpack.c.h.b16 %v799
        %v942 = vunpack.c.l.b16 %v800
        %v943 = vunpack.c.h.b16 %v800
        %v944 = vunpack.c.l.b16 %v801
        %v945 = vunpack.c.h.b16 %v801
        %v946 = vpack.c.b16 %v916, %v914
        %v947 = vpack.c.b16 %v917, %v915
        %v948 = vpack.c.b16 %v920, %v918
        %v949 = vpack.c.b16 %v921, %v919
        %v950 = vpack.c.b16 %v924, %v922
        %v951 = vpack.c.b16 %v925, %v923
        %v952 = vpack.c.b16 %v928, %v926
        %v953 = vpack.c.b16 %v929, %v927
        %v954 = vpack.c.b16 %v932, %v930
        %v955 = vpack.c.b16 %v933, %v931
        %v956 = vpack.c.b16 %v936, %v934
        %v957 = vpack.c.b16 %v937, %v935
        %v958 = vpack.c.b16 %v940, %v938
        %v959 = vpack.c.b16 %v941, %v939
        %v960 = vpack.c.b16 %v944, %v942
        %v961 = vpack.c.b16 %v945, %v943
        %978 = vmatprep.subr.bf16.mxu0 %v947
        %979 = vmatpush1.bf16.msra.mxu0 %v946
        %980 = vmatprep.subr.bf16.mxu0 %v949
        %981 = vmatpush1.bf16.msra.mxu0 %v948
        %982 = vmatprep.subr.bf16.mxu0 %v951
        %983 = vmatpush1.bf16.msra.mxu0 %v950
        %984 = vmatprep.subr.bf16.mxu0 %v953
        %985 = vmatpush1.bf16.msra.mxu0 %v952
        %986 = vmatprep.subr.bf16.mxu0 %v955
        %987 = vmatpush1.bf16.msra.mxu0 %v954
        %988 = vmatprep.subr.bf16.mxu0 %v957
        %989 = vmatpush1.bf16.msra.mxu0 %v956
        %990 = vmatprep.subr.bf16.mxu0 %v959
        %991 = vmatpush1.bf16.msra.mxu0 %v958
        %992 = vmatprep.subr.bf16.mxu0 %v961
        %993 = vmatpush1.bf16.msra.mxu0 %v960
        %994 = vmatprep.subr.bf16.mxu0 0
        %995 = vmatpush1.bf16.msra.mxu0 0
        %996 = vmatprep.subr.bf16.mxu0 0
        %997 = vmatpush1.bf16.msra.mxu0 0
        %998 = vmatprep.subr.bf16.mxu0 0
        %999 = vmatpush1.bf16.msra.mxu0 0
        %1000 = vmatprep.subr.bf16.mxu0 0
        %1001 = vmatpush1.bf16.msra.mxu0 0
        %1002 = vmatprep.subr.bf16.mxu0 0
        %1003 = vmatpush1.bf16.msra.mxu0 0
        %1004 = vmatprep.subr.bf16.mxu0 0
        %1005 = vmatpush1.bf16.msra.mxu0 0
        %1006 = vmatprep.subr.bf16.mxu0 0
        %1007 = vmatpush1.bf16.msra.mxu0 0
        %1008 = vmatprep.subr.bf16.mxu0 0
        %1009 = vmatpush1.bf16.msra.mxu0 0
        %1010 = vmatprep.mubr.bf16.mxu0 0
        %1011 = vmatmul.mubr.bf16.gmra.mrb[0].mxu0 %v866
        %v1012 = vpop.f32.mrb[0].mxu0
        %v1013 = vadd.f32 0.0, %v1012
        %v1014 = vpop.f32.mrb[0].mxu0
        %v1015 = vadd.f32 0.0, %v1014
        %v1016 = vpop.f32.mrb[0].mxu0
        %v1017 = vadd.f32 0.0, %v1016
        %v1018 = vpop.f32.mrb[0].mxu0
        %v1019 = vadd.f32 0.0, %v1018
        %1020 = vmatprep.mubr.bf16.mxu0 0
        %1021 = vmatmul.mubr.bf16.gmra.mrb[0].mxu0 %v867
        %v1022 = vpop.f32.mrb[0].mxu0
        %v1023 = vadd.f32 0.0, %v1022
        %v1024 = vpop.f32.mrb[0].mxu0
        %v1025 = vadd.f32 0.0, %v1024
        %v1026 = vpop.f32.mrb[0].mxu0
        %v1027 = vadd.f32 0.0, %v1026
        %v1028 = vpop.f32.mrb[0].mxu0
        %v1029 = vadd.f32 0.0, %v1028
        %1030 = vmatprep.mubr.bf16.mxu0 0
        %1031 = vmatmul.mubr.bf16.gmra.mrb[0].mxu0 %v868
        %v1032 = vpop.f32.mrb[0].mxu0
        %v1033 = vadd.f32 0.0, %v1032
        %v1034 = vpop.f32.mrb[0].mxu0
        %v1035 = vadd.f32 0.0, %v1034
        %v1036 = vpop.f32.mrb[0].mxu0
        %v1037 = vadd.f32 0.0, %v1036
        %v1038 = vpop.f32.mrb[0].mxu0
        %v1039 = vadd.f32 0.0, %v1038
        %1040 = vmatprep.mubr.bf16.mxu0 0
        %1041 = vmatmul.mubr.bf16.gmra.mrb[0].mxu0 %v869
        %v1042 = vpop.f32.mrb[0].mxu0
        %v1043 = vadd.f32 0.0, %v1042
        %v1044 = vpop.f32.mrb[0].mxu0
        %v1045 = vadd.f32 0.0, %v1044
        %v1046 = vpop.f32.mrb[0].mxu0
        %v1047 = vadd.f32 0.0, %v1046
        %v1048 = vpop.f32.mrb[0].mxu0
        %v1049 = vadd.f32 0.0, %v1048
        %1050 = vmatprep.mubr.bf16.mxu0 0
        %1051 = vmatmul.mubr.bf16.gmra.mrb[0].mxu0 %v870
        %v1052 = vpop.f32.mrb[0].mxu0
        %v1053 = vadd.f32 0.0, %v1052
        %v1054 = vpop.f32.mrb[0].mxu0
        %v1055 = vadd.f32 0.0, %v1054
        %v1056 = vpop.f32.mrb[0].mxu0
        %v1057 = vadd.f32 0.0, %v1056
        %v1058 = vpop.f32.mrb[0].mxu0
        %v1059 = vadd.f32 0.0, %v1058
        %1060 = vmatprep.mubr.bf16.mxu0 0
        %1061 = vmatmul.mubr.bf16.gmra.mrb[0].mxu0 %v871
        %v1062 = vpop.f32.mrb[0].mxu0
        %v1063 = vadd.f32 0.0, %v1062
        %v1064 = vpop.f32.mrb[0].mxu0
        %v1065 = vadd.f32 0.0, %v1064
        %v1066 = vpop.f32.mrb[0].mxu0
        %v1067 = vadd.f32 0.0, %v1066
        %v1068 = vpop.f32.mrb[0].mxu0
        %v1069 = vadd.f32 0.0, %v1068
        %1070 = vmatprep.mubr.bf16.mxu0 0
        %1071 = vmatmul.mubr.bf16.gmra.mrb[0].mxu0 %v872
        %v1072 = vpop.f32.mrb[0].mxu0
        %v1073 = vadd.f32 0.0, %v1072
        %v1074 = vpop.f32.mrb[0].mxu0
        %v1075 = vadd.f32 0.0, %v1074
        %v1076 = vpop.f32.mrb[0].mxu0
        %v1077 = vadd.f32 0.0, %v1076
        %v1078 = vpop.f32.mrb[0].mxu0
        %v1079 = vadd.f32 0.0, %v1078
        %1080 = vmatprep.mubr.bf16.mxu0 0
        %1081 = vmatmul.mubr.bf16.gmra.mrb[0].mxu0 %v873
        %v1082 = vpop.f32.mrb[0].mxu0
        %v1083 = vadd.f32 0.0, %v1082
        %v1084 = vpop.f32.mrb[0].mxu0
        %v1085 = vadd.f32 0.0, %v1084
        %v1086 = vpop.f32.mrb[0].mxu0
        %v1087 = vadd.f32 0.0, %v1086
        %v1088 = vpop.f32.mrb[0].mxu0
        %v1089 = vadd.f32 0.0, %v1088
        %1090 = vmatprep.mubr.bf16.mxu0 0
        %1091 = vmatmul.mubr.bf16.gmra.mrb[0].mxu0 %v874
        %v1092 = vpop.f32.mrb[0].mxu0
        %v1093 = vadd.f32 0.0, %v1092
        %v1094 = vpop.f32.mrb[0].mxu0
        %v1095 = vadd.f32 0.0, %v1094
        %v1096 = vpop.f32.mrb[0].mxu0
        %v1097 = vadd.f32 0.0, %v1096
        %v1098 = vpop.f32.mrb[0].mxu0
        %v1099 = vadd.f32 0.0, %v1098
        %1100 = vmatprep.mubr.bf16.mxu0 0
        %1101 = vmatmul.mubr.bf16.gmra.mrb[0].mxu0 %v875
        %v1102 = vpop.f32.mrb[0].mxu0
        %v1103 = vadd.f32 0.0, %v1102
        %v1104 = vpop.f32.mrb[0].mxu0
        %v1105 = vadd.f32 0.0, %v1104
        %v1106 = vpop.f32.mrb[0].mxu0
        %v1107 = vadd.f32 0.0, %v1106
        %v1108 = vpop.f32.mrb[0].mxu0
        %v1109 = vadd.f32 0.0, %v1108
        %1110 = vmatprep.mubr.bf16.mxu0 0
        %1111 = vmatmul.mubr.bf16.gmra.mrb[0].mxu0 %v876
        %v1112 = vpop.f32.mrb[0].mxu0
        %v1113 = vadd.f32 0.0, %v1112
        %v1114 = vpop.f32.mrb[0].mxu0
        %v1115 = vadd.f32 0.0, %v1114
        %v1116 = vpop.f32.mrb[0].mxu0
        %v1117 = vadd.f32 0.0, %v1116
        %v1118 = vpop.f32.mrb[0].mxu0
        %v1119 = vadd.f32 0.0, %v1118
        %1120 = vmatprep.mubr.bf16.mxu0 0
        %1121 = vmatmul.mubr.bf16.gmra.mrb[0].mxu0 %v877
        %v1122 = vpop.f32.mrb[0].mxu0
        %v1123 = vadd.f32 0.0, %v1122
        %v1124 = vpop.f32.mrb[0].mxu0
        %v1125 = vadd.f32 0.0, %v1124
        %v1126 = vpop.f32.mrb[0].mxu0
        %v1127 = vadd.f32 0.0, %v1126
        %v1128 = vpop.f32.mrb[0].mxu0
        %v1129 = vadd.f32 0.0, %v1128
        %1130 = vmatprep.mubr.bf16.mxu0 0
        %1131 = vmatmul.mubr.bf16.gmra.mrb[0].mxu0 %v878
        %v1132 = vpop.f32.mrb[0].mxu0
        %v1133 = vadd.f32 0.0, %v1132
        %v1134 = vpop.f32.mrb[0].mxu0
        %v1135 = vadd.f32 0.0, %v1134
        %v1136 = vpop.f32.mrb[0].mxu0
        %v1137 = vadd.f32 0.0, %v1136
        %v1138 = vpop.f32.mrb[0].mxu0
        %v1139 = vadd.f32 0.0, %v1138
        %1140 = vmatprep.mubr.bf16.mxu0 0
        %1141 = vmatmul.mubr.bf16.gmra.mrb[0].mxu0 %v879
        %v1142 = vpop.f32.mrb[0].mxu0
        %v1143 = vadd.f32 0.0, %v1142
        %v1144 = vpop.f32.mrb[0].mxu0
        %v1145 = vadd.f32 0.0, %v1144
        %v1146 = vpop.f32.mrb[0].mxu0
        %v1147 = vadd.f32 0.0, %v1146
        %v1148 = vpop.f32.mrb[0].mxu0
        %v1149 = vadd.f32 0.0, %v1148
        %1150 = vmatprep.mubr.bf16.mxu0 0
        %1151 = vmatmul.mubr.bf16.gmra.mrb[0].mxu0 %v880
        %v1152 = vpop.f32.mrb[0].mxu0
        %v1153 = vadd.f32 0.0, %v1152
        %v1154 = vpop.f32.mrb[0].mxu0
        %v1155 = vadd.f32 0.0, %v1154
        %v1156 = vpop.f32.mrb[0].mxu0
        %v1157 = vadd.f32 0.0, %v1156
        %v1158 = vpop.f32.mrb[0].mxu0
        %v1159 = vadd.f32 0.0, %v1158
        %1160 = vmatprep.mubr.bf16.mxu0 0
        %1161 = vmatmul.mubr.bf16.gmra.mrb[0].mxu0 %v881
        %v1162 = vpop.f32.mrb[0].mxu0
        %v1163 = vadd.f32 0.0, %v1162
        %v1164 = vpop.f32.mrb[0].mxu0
        %v1165 = vadd.f32 0.0, %v1164
        %v1166 = vpop.f32.mrb[0].mxu0
        %v1167 = vadd.f32 0.0, %v1166
        %v1168 = vpop.f32.mrb[0].mxu0
        %v1169 = vadd.f32 0.0, %v1168
        %1170 = vdwg.mxu0
        %v1171 = vld [vmem:[%s248 + $0x20] sm:$0xf]
        %v1172 = vld [vmem:[%s248 + $0x24] sm:$0xf]
        %v1173 = vld [vmem:[%s248 + $0x28] sm:$0xf]
        %v1174 = vld [vmem:[%s248 + $0x2c] sm:$0xf]
        %v1175 = vld [vmem:[%s248 + $0x30] sm:$0xf]
        %v1176 = vld [vmem:[%s248 + $0x34] sm:$0xf]
        %v1177 = vld [vmem:[%s248 + $0x38] sm:$0xf]
        %v1178 = vld [vmem:[%s248 + $0x3c] sm:$0xf]
        %v1179 = vld [vmem:[%s248 + $0x40] sm:$0xf]
        %v1180 = vld [vmem:[%s248 + $0x44] sm:$0xf]
        %v1181 = vld [vmem:[%s248 + $0x48] sm:$0xf]
        %v1182 = vld [vmem:[%s248 + $0x4c] sm:$0xf]
        %v1183 = vld [vmem:[%s248 + $0x50] sm:$0xf]
        %v1184 = vld [vmem:[%s248 + $0x54] sm:$0xf]
        %v1185 = vld [vmem:[%s248 + $0x58] sm:$0xf]
        %v1186 = vld [vmem:[%s248 + $0x5c] sm:$0xf]
        %v1187 = vld [vmem:[%s248 + $0x60] sm:$0xf]
        %v1188 = vld [vmem:[%s248 + $0x64] sm:$0xf]
        %v1189 = vld [vmem:[%s248 + $0x68] sm:$0xf]
        %v1190 = vld [vmem:[%s248 + $0x6c] sm:$0xf]
        %v1191 = vld [vmem:[%s248 + $0x70] sm:$0xf]
        %v1192 = vld [vmem:[%s248 + $0x74] sm:$0xf]
        %v1193 = vld [vmem:[%s248 + $0x78] sm:$0xf]
        %v1194 = vld [vmem:[%s248 + $0x7c] sm:$0xf]
        %v1195 = vld [vmem:[%s248 + $0x80] sm:$0xf]
        %v1196 = vld [vmem:[%s248 + $0x84] sm:$0xf]
        %v1197 = vld [vmem:[%s248 + $0x88] sm:$0xf]
        %v1198 = vld [vmem:[%s248 + $0x8c] sm:$0xf]
        %v1199 = vld [vmem:[%s248 + $0x90] sm:$0xf]
        %v1200 = vld [vmem:[%s248 + $0x94] sm:$0xf]
        %v1201 = vld [vmem:[%s248 + $0x98] sm:$0xf]
        %v1202 = vld [vmem:[%s248 + $0x9c] sm:$0xf]
        %s1203 = scalar_lea.vmem [#allocation7], 512
        %v1204 = vld [vmem:[%s1203] sm:$0xff]
        %v1205 = vld [vmem:[%s1203 + $0x8] sm:$0xff]
        %v1206 = vld [vmem:[%s1203 + $0x10] sm:$0xff]
        %v1207 = vld [vmem:[%s1203 + $0x18] sm:$0xff]
        %v1208 = vld [vmem:[%s1203 + $0x20] sm:$0xff]
        %v1209 = vld [vmem:[%s1203 + $0x28] sm:$0xff]
        %v1210 = vld [vmem:[%s1203 + $0x30] sm:$0xff]
        %v1211 = vld [vmem:[%s1203 + $0x38] sm:$0xff]
        %v1212 = vld [vmem:[%s1203 + $0x40] sm:$0xff]
        %v1213 = vld [vmem:[%s1203 + $0x48] sm:$0xff]
        %v1214 = vld [vmem:[%s1203 + $0x50] sm:$0xff]
        %v1215 = vld [vmem:[%s1203 + $0x58] sm:$0xff]
        %v1216 = vld [vmem:[%s1203 + $0x60] sm:$0xff]
        %v1217 = vld [vmem:[%s1203 + $0x68] sm:$0xff]
        %v1218 = vld [vmem:[%s1203 + $0x70] sm:$0xff]
        %v1219 = vld [vmem:[%s1203 + $0x78] sm:$0xff]
        %v1252 = vunpack.c.l.b16 %v1171
        %v1253 = vunpack.c.l.b16 %v1172
        %v1254 = vunpack.c.l.b16 %v1173
        %v1255 = vunpack.c.l.b16 %v1174
        %v1256 = vunpack.c.l.b16 %v1175
        %v1257 = vunpack.c.l.b16 %v1176
        %v1258 = vunpack.c.l.b16 %v1177
        %v1259 = vunpack.c.l.b16 %v1178
        %v1260 = vunpack.c.l.b16 %v1179
        %v1261 = vunpack.c.l.b16 %v1180
        %v1262 = vunpack.c.l.b16 %v1181
        %v1263 = vunpack.c.l.b16 %v1182
        %v1264 = vunpack.c.l.b16 %v1183
        %v1265 = vunpack.c.l.b16 %v1184
        %v1266 = vunpack.c.l.b16 %v1185
        %v1267 = vunpack.c.l.b16 %v1186
        %v1268 = vunpack.c.l.b16 %v1187
        %v1269 = vunpack.c.l.b16 %v1188
        %v1270 = vunpack.c.l.b16 %v1189
        %v1271 = vunpack.c.l.b16 %v1190
        %v1272 = vunpack.c.l.b16 %v1191
        %v1273 = vunpack.c.l.b16 %v1192
        %v1274 = vunpack.c.l.b16 %v1193
        %v1275 = vunpack.c.l.b16 %v1194
        %v1276 = vunpack.c.l.b16 %v1195
        %v1277 = vunpack.c.l.b16 %v1196
        %v1278 = vunpack.c.l.b16 %v1197
        %v1279 = vunpack.c.l.b16 %v1198
        %v1280 = vunpack.c.l.b16 %v1199
        %v1281 = vunpack.c.l.b16 %v1200
        %v1282 = vunpack.c.l.b16 %v1201
        %v1283 = vunpack.c.l.b16 %v1202
        %v1284 = vpack.c.b16 %v1253, %v1252
        %v1285 = vpack.c.b16 %v1255, %v1254
        %v1286 = vpack.c.b16 %v1257, %v1256
        %v1287 = vpack.c.b16 %v1259, %v1258
        %v1288 = vpack.c.b16 %v1261, %v1260
        %v1289 = vpack.c.b16 %v1263, %v1262
        %v1290 = vpack.c.b16 %v1265, %v1264
        %v1291 = vpack.c.b16 %v1267, %v1266
        %v1292 = vpack.c.b16 %v1269, %v1268
        %v1293 = vpack.c.b16 %v1271, %v1270
        %v1294 = vpack.c.b16 %v1273, %v1272
        %v1295 = vpack.c.b16 %v1275, %v1274
        %v1296 = vpack.c.b16 %v1277, %v1276
        %v1297 = vpack.c.b16 %v1279, %v1278
        %v1298 = vpack.c.b16 %v1281, %v1280
        %v1299 = vpack.c.b16 %v1283, %v1282
        %v1332 = vunpack.c.l.b16 %v1204
        %v1333 = vunpack.c.h.b16 %v1204
        %v1334 = vunpack.c.l.b16 %v1205
        %v1335 = vunpack.c.h.b16 %v1205
        %v1336 = vunpack.c.l.b16 %v1206
        %v1337 = vunpack.c.h.b16 %v1206
        %v1338 = vunpack.c.l.b16 %v1207
        %v1339 = vunpack.c.h.b16 %v1207
        %v1340 = vunpack.c.l.b16 %v1208
        %v1341 = vunpack.c.h.b16 %v1208
        %v1342 = vunpack.c.l.b16 %v1209
        %v1343 = vunpack.c.h.b16 %v1209
        %v1344 = vunpack.c.l.b16 %v1210
        %v1345 = vunpack.c.h.b16 %v1210
        %v1346 = vunpack.c.l.b16 %v1211
        %v1347 = vunpack.c.h.b16 %v1211
        %v1348 = vunpack.c.l.b16 %v1212
        %v1349 = vunpack.c.h.b16 %v1212
        %v1350 = vunpack.c.l.b16 %v1213
        %v1351 = vunpack.c.h.b16 %v1213
        %v1352 = vunpack.c.l.b16 %v1214
        %v1353 = vunpack.c.h.b16 %v1214
        %v1354 = vunpack.c.l.b16 %v1215
        %v1355 = vunpack.c.h.b16 %v1215
        %v1356 = vunpack.c.l.b16 %v1216
        %v1357 = vunpack.c.h.b16 %v1216
        %v1358 = vunpack.c.l.b16 %v1217
        %v1359 = vunpack.c.h.b16 %v1217
        %v1360 = vunpack.c.l.b16 %v1218
        %v1361 = vunpack.c.h.b16 %v1218
        %v1362 = vunpack.c.l.b16 %v1219
        %v1363 = vunpack.c.h.b16 %v1219
        %v1364 = vpack.c.b16 %v1334, %v1332
        %v1365 = vpack.c.b16 %v1335, %v1333
        %v1366 = vpack.c.b16 %v1338, %v1336
        %v1367 = vpack.c.b16 %v1339, %v1337
        %v1368 = vpack.c.b16 %v1342, %v1340
        %v1369 = vpack.c.b16 %v1343, %v1341
        %v1370 = vpack.c.b16 %v1346, %v1344
        %v1371 = vpack.c.b16 %v1347, %v1345
        %v1372 = vpack.c.b16 %v1350, %v1348
        %v1373 = vpack.c.b16 %v1351, %v1349
        %v1374 = vpack.c.b16 %v1354, %v1352
        %v1375 = vpack.c.b16 %v1355, %v1353
        %v1376 = vpack.c.b16 %v1358, %v1356
        %v1377 = vpack.c.b16 %v1359, %v1357
        %v1378 = vpack.c.b16 %v1362, %v1360
        %v1379 = vpack.c.b16 %v1363, %v1361
        %1396 = vmatprep.subr.bf16.mxu0 %v1365
        %1397 = vmatpush1.bf16.msra.mxu0 %v1364
        %1398 = vmatprep.subr.bf16.mxu0 %v1367
        %1399 = vmatpush1.bf16.msra.mxu0 %v1366
        %1400 = vmatprep.subr.bf16.mxu0 %v1369
        %1401 = vmatpush1.bf16.msra.mxu0 %v1368
        %1402 = vmatprep.subr.bf16.mxu0 %v1371
        %1403 = vmatpush1.bf16.msra.mxu0 %v1370
        %1404 = vmatprep.subr.bf16.mxu0 %v1373
        %1405 = vmatpush1.bf16.msra.mxu0 %v1372
        %1406 = vmatprep.subr.bf16.mxu0 %v1375
        %1407 = vmatpush1.bf16.msra.mxu0 %v1374
        %1408 = vmatprep.subr.bf16.mxu0 %v1377
        %1409 = vmatpush1.bf16.msra.mxu0 %v1376
        %1410 = vmatprep.subr.bf16.mxu0 %v1379
        %1411 = vmatpush1.bf16.msra.mxu0 %v1378
        %1412 = vmatprep.subr.bf16.mxu0 0
        %1413 = vmatpush1.bf16.msra.mxu0 0
        %1414 = vmatprep.subr.bf16.mxu0 0
        %1415 = vmatpush1.bf16.msra.mxu0 0
        %1416 = vmatprep.subr.bf16.mxu0 0
        %1417 = vmatpush1.bf16.msra.mxu0 0
        %1418 = vmatprep.subr.bf16.mxu0 0
        %1419 = vmatpush1.bf16.msra.mxu0 0
        %1420 = vmatprep.subr.bf16.mxu0 0
        %1421 = vmatpush1.bf16.msra.mxu0 0
        %1422 = vmatprep.subr.bf16.mxu0 0
        %1423 = vmatpush1.bf16.msra.mxu0 0
        %1424 = vmatprep.subr.bf16.mxu0 0
        %1425 = vmatpush1.bf16.msra.mxu0 0
        %1426 = vmatprep.subr.bf16.mxu0 0
        %1427 = vmatpush1.bf16.msra.mxu0 0
        %1428 = vmatprep.mubr.bf16.mxu0 0
        %1429 = vmatmul.mubr.bf16.gmra.mrb[0].mxu0 %v1284
        %v1430 = vpop.f32.mrb[0].mxu0
        %v1431 = vadd.f32 0.0, %v1430
        %v1432 = vpop.f32.mrb[0].mxu0
        %v1433 = vadd.f32 0.0, %v1432
        %v1434 = vpop.f32.mrb[0].mxu0
        %v1435 = vadd.f32 0.0, %v1434
        %v1436 = vpop.f32.mrb[0].mxu0
        %v1437 = vadd.f32 0.0, %v1436
        %1438 = vmatprep.mubr.bf16.mxu0 0
        %1439 = vmatmul.mubr.bf16.gmra.mrb[0].mxu0 %v1285
        %v1440 = vpop.f32.mrb[0].mxu0
        %v1441 = vadd.f32 0.0, %v1440
        %v1442 = vpop.f32.mrb[0].mxu0
        %v1443 = vadd.f32 0.0, %v1442
        %v1444 = vpop.f32.mrb[0].mxu0
        %v1445 = vadd.f32 0.0, %v1444
        %v1446 = vpop.f32.mrb[0].mxu0
        %v1447 = vadd.f32 0.0, %v1446
        %1448 = vmatprep.mubr.bf16.mxu0 0
        %1449 = vmatmul.mubr.bf16.gmra.mrb[0].mxu0 %v1286
        %v1450 = vpop.f32.mrb[0].mxu0
        %v1451 = vadd.f32 0.0, %v1450
        %v1452 = vpop.f32.mrb[0].mxu0
        %v1453 = vadd.f32 0.0, %v1452
        %v1454 = vpop.f32.mrb[0].mxu0
        %v1455 = vadd.f32 0.0, %v1454
        %v1456 = vpop.f32.mrb[0].mxu0
        %v1457 = vadd.f32 0.0, %v1456
        %1458 = vmatprep.mubr.bf16.mxu0 0
        %1459 = vmatmul.mubr.bf16.gmra.mrb[0].mxu0 %v1287
        %v1460 = vpop.f32.mrb[0].mxu0
        %v1461 = vadd.f32 0.0, %v1460
        %v1462 = vpop.f32.mrb[0].mxu0
        %v1463 = vadd.f32 0.0, %v1462
        %v1464 = vpop.f32.mrb[0].mxu0
        %v1465 = vadd.f32 0.0, %v1464
        %v1466 = vpop.f32.mrb[0].mxu0
        %v1467 = vadd.f32 0.0, %v1466
        %1468 = vmatprep.mubr.bf16.mxu0 0
        %1469 = vmatmul.mubr.bf16.gmra.mrb[0].mxu0 %v1288
        %v1470 = vpop.f32.mrb[0].mxu0
        %v1471 = vadd.f32 0.0, %v1470
        %v1472 = vpop.f32.mrb[0].mxu0
        %v1473 = vadd.f32 0.0, %v1472
        %v1474 = vpop.f32.mrb[0].mxu0
        %v1475 = vadd.f32 0.0, %v1474
        %v1476 = vpop.f32.mrb[0].mxu0
        %v1477 = vadd.f32 0.0, %v1476
        %1478 = vmatprep.mubr.bf16.mxu0 0
        %1479 = vmatmul.mubr.bf16.gmra.mrb[0].mxu0 %v1289
        %v1480 = vpop.f32.mrb[0].mxu0
        %v1481 = vadd.f32 0.0, %v1480
        %v1482 = vpop.f32.mrb[0].mxu0
        %v1483 = vadd.f32 0.0, %v1482
        %v1484 = vpop.f32.mrb[0].mxu0
        %v1485 = vadd.f32 0.0, %v1484
        %v1486 = vpop.f32.mrb[0].mxu0
        %v1487 = vadd.f32 0.0, %v1486
        %1488 = vmatprep.mubr.bf16.mxu0 0
        %1489 = vmatmul.mubr.bf16.gmra.mrb[0].mxu0 %v1290
        %v1490 = vpop.f32.mrb[0].mxu0
        %v1491 = vadd.f32 0.0, %v1490
        %v1492 = vpop.f32.mrb[0].mxu0
        %v1493 = vadd.f32 0.0, %v1492
        %v1494 = vpop.f32.mrb[0].mxu0
        %v1495 = vadd.f32 0.0, %v1494
        %v1496 = vpop.f32.mrb[0].mxu0
        %v1497 = vadd.f32 0.0, %v1496
        %1498 = vmatprep.mubr.bf16.mxu0 0
        %1499 = vmatmul.mubr.bf16.gmra.mrb[0].mxu0 %v1291
        %v1500 = vpop.f32.mrb[0].mxu0
        %v1501 = vadd.f32 0.0, %v1500
        %v1502 = vpop.f32.mrb[0].mxu0
        %v1503 = vadd.f32 0.0, %v1502
        %v1504 = vpop.f32.mrb[0].mxu0
        %v1505 = vadd.f32 0.0, %v1504
        %v1506 = vpop.f32.mrb[0].mxu0
        %v1507 = vadd.f32 0.0, %v1506
        %1508 = vmatprep.mubr.bf16.mxu0 0
        %1509 = vmatmul.mubr.bf16.gmra.mrb[0].mxu0 %v1292
        %v1510 = vpop.f32.mrb[0].mxu0
        %v1511 = vadd.f32 0.0, %v1510
        %v1512 = vpop.f32.mrb[0].mxu0
        %v1513 = vadd.f32 0.0, %v1512
        %v1514 = vpop.f32.mrb[0].mxu0
        %v1515 = vadd.f32 0.0, %v1514
        %v1516 = vpop.f32.mrb[0].mxu0
        %v1517 = vadd.f32 0.0, %v1516
        %1518 = vmatprep.mubr.bf16.mxu0 0
        %1519 = vmatmul.mubr.bf16.gmra.mrb[0].mxu0 %v1293
        %v1520 = vpop.f32.mrb[0].mxu0
        %v1521 = vadd.f32 0.0, %v1520
        %v1522 = vpop.f32.mrb[0].mxu0
        %v1523 = vadd.f32 0.0, %v1522
        %v1524 = vpop.f32.mrb[0].mxu0
        %v1525 = vadd.f32 0.0, %v1524
        %v1526 = vpop.f32.mrb[0].mxu0
        %v1527 = vadd.f32 0.0, %v1526
        %1528 = vmatprep.mubr.bf16.mxu0 0
        %1529 = vmatmul.mubr.bf16.gmra.mrb[0].mxu0 %v1294
        %v1530 = vpop.f32.mrb[0].mxu0
        %v1531 = vadd.f32 0.0, %v1530
        %v1532 = vpop.f32.mrb[0].mxu0
        %v1533 = vadd.f32 0.0, %v1532
        %v1534 = vpop.f32.mrb[0].mxu0
        %v1535 = vadd.f32 0.0, %v1534
        %v1536 = vpop.f32.mrb[0].mxu0
        %v1537 = vadd.f32 0.0, %v1536
        %1538 = vmatprep.mubr.bf16.mxu0 0
        %1539 = vmatmul.mubr.bf16.gmra.mrb[0].mxu0 %v1295
        %v1540 = vpop.f32.mrb[0].mxu0
        %v1541 = vadd.f32 0.0, %v1540
        %v1542 = vpop.f32.mrb[0].mxu0
        %v1543 = vadd.f32 0.0, %v1542
        %v1544 = vpop.f32.mrb[0].mxu0
        %v1545 = vadd.f32 0.0, %v1544
        %v1546 = vpop.f32.mrb[0].mxu0
        %v1547 = vadd.f32 0.0, %v1546
        %1548 = vmatprep.mubr.bf16.mxu0 0
        %1549 = vmatmul.mubr.bf16.gmra.mrb[0].mxu0 %v1296
        %v1550 = vpop.f32.mrb[0].mxu0
        %v1551 = vadd.f32 0.0, %v1550
        %v1552 = vpop.f32.mrb[0].mxu0
        %v1553 = vadd.f32 0.0, %v1552
        %v1554 = vpop.f32.mrb[0].mxu0
        %v1555 = vadd.f32 0.0, %v1554
        %v1556 = vpop.f32.mrb[0].mxu0
        %v1557 = vadd.f32 0.0, %v1556
        %1558 = vmatprep.mubr.bf16.mxu0 0
        %1559 = vmatmul.mubr.bf16.gmra.mrb[0].mxu0 %v1297
        %v1560 = vpop.f32.mrb[0].mxu0
        %v1561 = vadd.f32 0.0, %v1560
        %v1562 = vpop.f32.mrb[0].mxu0
        %v1563 = vadd.f32 0.0, %v1562
        %v1564 = vpop.f32.mrb[0].mxu0
        %v1565 = vadd.f32 0.0, %v1564
        %v1566 = vpop.f32.mrb[0].mxu0
        %v1567 = vadd.f32 0.0, %v1566
        %1568 = vmatprep.mubr.bf16.mxu0 0
        %1569 = vmatmul.mubr.bf16.gmra.mrb[0].mxu0 %v1298
        %v1570 = vpop.f32.mrb[0].mxu0
        %v1571 = vadd.f32 0.0, %v1570
        %v1572 = vpop.f32.mrb[0].mxu0
        %v1573 = vadd.f32 0.0, %v1572
        %v1574 = vpop.f32.mrb[0].mxu0
        %v1575 = vadd.f32 0.0, %v1574
        %v1576 = vpop.f32.mrb[0].mxu0
        %v1577 = vadd.f32 0.0, %v1576
        %1578 = vmatprep.mubr.bf16.mxu0 0
        %1579 = vmatmul.mubr.bf16.gmra.mrb[0].mxu0 %v1299
        %v1580 = vpop.f32.mrb[0].mxu0
        %v1581 = vadd.f32 0.0, %v1580
        %v1582 = vpop.f32.mrb[0].mxu0
        %v1583 = vadd.f32 0.0, %v1582
        %v1584 = vpop.f32.mrb[0].mxu0
        %v1585 = vadd.f32 0.0, %v1584
        %v1586 = vpop.f32.mrb[0].mxu0
        %v1587 = vadd.f32 0.0, %v1586
        %1588 = vdwg.mxu0
        %v1591 = vunpack.c.l.b16 %v298
        %v1592 = vunpack.c.l.b16 %v299
        %v1593 = vpack.c.b16 %v1592, %v1591
        %v1611 = vunpack.c.l.b16 %v330
        %v1612 = vunpack.c.h.b16 %v330
        %v1613 = vunpack.c.l.b16 %v331
        %v1614 = vunpack.c.h.b16 %v331
        %v1615 = vunpack.c.l.b16 %v332
        %v1616 = vunpack.c.h.b16 %v332
        %v1617 = vunpack.c.l.b16 %v333
        %v1618 = vunpack.c.h.b16 %v333
        %v1619 = vunpack.c.l.b16 %v334
        %v1620 = vunpack.c.h.b16 %v334
        %v1621 = vunpack.c.l.b16 %v335
        %v1622 = vunpack.c.h.b16 %v335
        %v1623 = vunpack.c.l.b16 %v336
        %v1624 = vunpack.c.h.b16 %v336
        %v1625 = vunpack.c.l.b16 %v337
        %v1626 = vunpack.c.h.b16 %v337
        %v1627 = vunpack.c.l.b16 %v338
        %v1628 = vunpack.c.h.b16 %v338
        %v1629 = vunpack.c.l.b16 %v339
        %v1630 = vunpack.c.h.b16 %v339
        %v1631 = vunpack.c.l.b16 %v340
        %v1632 = vunpack.c.h.b16 %v340
        %v1633 = vunpack.c.l.b16 %v341
        %v1634 = vunpack.c.h.b16 %v341
        %v1635 = vunpack.c.l.b16 %v342
        %v1636 = vunpack.c.h.b16 %v342
        %v1637 = vunpack.c.l.b16 %v343
        %v1638 = vunpack.c.h.b16 %v343
        %v1639 = vunpack.c.l.b16 %v344
        %v1640 = vunpack.c.h.b16 %v344
        %v1641 = vunpack.c.l.b16 %v345
        %v1642 = vunpack.c.h.b16 %v345
        %v1643 = vpack.c.b16 %v1613, %v1611
        %v1644 = vpack.c.b16 %v1614, %v1612
        %v1645 = vpack.c.b16 %v1617, %v1615
        %v1646 = vpack.c.b16 %v1618, %v1616
        %v1647 = vpack.c.b16 %v1621, %v1619
        %v1648 = vpack.c.b16 %v1622, %v1620
        %v1649 = vpack.c.b16 %v1625, %v1623
        %v1650 = vpack.c.b16 %v1626, %v1624
        %v1651 = vpack.c.b16 %v1629, %v1627
        %v1652 = vpack.c.b16 %v1630, %v1628
        %v1653 = vpack.c.b16 %v1633, %v1631
        %v1654 = vpack.c.b16 %v1634, %v1632
        %v1655 = vpack.c.b16 %v1637, %v1635
        %v1656 = vpack.c.b16 %v1638, %v1636
        %v1657 = vpack.c.b16 %v1641, %v1639
        %v1658 = vpack.c.b16 %v1642, %v1640
        %1675 = vmatprep.subr.bf16.mxu0 %v1644
        %1676 = vmatpush1.bf16.msra.mxu0 %v1643
        %1677 = vmatprep.subr.bf16.mxu0 %v1646
        %1678 = vmatpush1.bf16.msra.mxu0 %v1645
        %1679 = vmatprep.subr.bf16.mxu0 %v1648
        %1680 = vmatpush1.bf16.msra.mxu0 %v1647
        %1681 = vmatprep.subr.bf16.mxu0 %v1650
        %1682 = vmatpush1.bf16.msra.mxu0 %v1649
        %1683 = vmatprep.subr.bf16.mxu0 %v1652
        %1684 = vmatpush1.bf16.msra.mxu0 %v1651
        %1685 = vmatprep.subr.bf16.mxu0 %v1654
        %1686 = vmatpush1.bf16.msra.mxu0 %v1653
        %1687 = vmatprep.subr.bf16.mxu0 %v1656
        %1688 = vmatpush1.bf16.msra.mxu0 %v1655
        %1689 = vmatprep.subr.bf16.mxu0 %v1658
        %1690 = vmatpush1.bf16.msra.mxu0 %v1657
        %1691 = vmatprep.subr.bf16.mxu0 0
        %1692 = vmatpush1.bf16.msra.mxu0 0
        %1693 = vmatprep.subr.bf16.mxu0 0
        %1694 = vmatpush1.bf16.msra.mxu0 0
        %1695 = vmatprep.subr.bf16.mxu0 0
        %1696 = vmatpush1.bf16.msra.mxu0 0
        %1697 = vmatprep.subr.bf16.mxu0 0
        %1698 = vmatpush1.bf16.msra.mxu0 0
        %1699 = vmatprep.subr.bf16.mxu0 0
        %1700 = vmatpush1.bf16.msra.mxu0 0
        %1701 = vmatprep.subr.bf16.mxu0 0
        %1702 = vmatpush1.bf16.msra.mxu0 0
        %1703 = vmatprep.subr.bf16.mxu0 0
        %1704 = vmatpush1.bf16.msra.mxu0 0
        %1705 = vmatprep.subr.bf16.mxu0 0
        %1706 = vmatpush1.bf16.msra.mxu0 0
        %1707 = vmatprep.mubr.bf16.mxu0 0
        %1708 = vmatmul.mubr.bf16.gmra.mrb[0].mxu0 %v1593
        %v1709 = vpop.f32.mrb[0].mxu0
        %v1710 = vadd.f32 %v576, %v1709
        %v1711 = vpop.f32.mrb[0].mxu0
        %v1712 = vadd.f32 %v578, %v1711
        %v1713 = vpop.f32.mrb[0].mxu0
        %v1714 = vadd.f32 %v580, %v1713
        %v1715 = vpop.f32.mrb[0].mxu0
        %v1716 = vadd.f32 %v582, %v1715
        %1717 = vmatprep.mubr.bf16.mxu0 0
        %1718 = vmatmul.mubr.bf16.gmra.mrb[0].mxu0 %v429
        %v1719 = vpop.f32.mrb[0].mxu0
        %v1720 = vadd.f32 %v586, %v1719
        %v1721 = vpop.f32.mrb[0].mxu0
        %v1722 = vadd.f32 %v588, %v1721
        %v1723 = vpop.f32.mrb[0].mxu0
        %v1724 = vadd.f32 %v590, %v1723
        %v1725 = vpop.f32.mrb[0].mxu0
        %v1726 = vadd.f32 %v592, %v1725
        %1727 = vmatprep.mubr.bf16.mxu0 0
        %1728 = vmatmul.mubr.bf16.gmra.mrb[0].mxu0 %v430
        %v1729 = vpop.f32.mrb[0].mxu0
        %v1730 = vadd.f32 %v596, %v1729
        %v1731 = vpop.f32.mrb[0].mxu0
        %v1732 = vadd.f32 %v598, %v1731
        %v1733 = vpop.f32.mrb[0].mxu0
        %v1734 = vadd.f32 %v600, %v1733
        %v1735 = vpop.f32.mrb[0].mxu0
        %v1736 = vadd.f32 %v602, %v1735
        %1737 = vmatprep.mubr.bf16.mxu0 0
        %1738 = vmatmul.mubr.bf16.gmra.mrb[0].mxu0 %v431
        %v1739 = vpop.f32.mrb[0].mxu0
        %v1740 = vadd.f32 %v606, %v1739
        %v1741 = vpop.f32.mrb[0].mxu0
        %v1742 = vadd.f32 %v608, %v1741
        %v1743 = vpop.f32.mrb[0].mxu0
        %v1744 = vadd.f32 %v610, %v1743
        %v1745 = vpop.f32.mrb[0].mxu0
        %v1746 = vadd.f32 %v612, %v1745
        %1747 = vmatprep.mubr.bf16.mxu0 0
        %1748 = vmatmul.mubr.bf16.gmra.mrb[0].mxu0 %v432
        %v1749 = vpop.f32.mrb[0].mxu0
        %v1750 = vadd.f32 %v616, %v1749
        %v1751 = vpop.f32.mrb[0].mxu0
        %v1752 = vadd.f32 %v618, %v1751
        %v1753 = vpop.f32.mrb[0].mxu0
        %v1754 = vadd.f32 %v620, %v1753
        %v1755 = vpop.f32.mrb[0].mxu0
        %v1756 = vadd.f32 %v622, %v1755
        %1757 = vmatprep.mubr.bf16.mxu0 0
        %1758 = vmatmul.mubr.bf16.gmra.mrb[0].mxu0 %v433
        %v1759 = vpop.f32.mrb[0].mxu0
        %v1760 = vadd.f32 %v626, %v1759
        %v1761 = vpop.f32.mrb[0].mxu0
        %v1762 = vadd.f32 %v628, %v1761
        %v1763 = vpop.f32.mrb[0].mxu0
        %v1764 = vadd.f32 %v630, %v1763
        %v1765 = vpop.f32.mrb[0].mxu0
        %v1766 = vadd.f32 %v632, %v1765
        %1767 = vmatprep.mubr.bf16.mxu0 0
        %1768 = vmatmul.mubr.bf16.gmra.mrb[0].mxu0 %v434
        %v1769 = vpop.f32.mrb[0].mxu0
        %v1770 = vadd.f32 %v636, %v1769
        %v1771 = vpop.f32.mrb[0].mxu0
        %v1772 = vadd.f32 %v638, %v1771
        %v1773 = vpop.f32.mrb[0].mxu0
        %v1774 = vadd.f32 %v640, %v1773
        %v1775 = vpop.f32.mrb[0].mxu0
        %v1776 = vadd.f32 %v642, %v1775
        %1777 = vmatprep.mubr.bf16.mxu0 0
        %1778 = vmatmul.mubr.bf16.gmra.mrb[0].mxu0 %v435
        %v1779 = vpop.f32.mrb[0].mxu0
        %v1780 = vadd.f32 %v646, %v1779
        %v1781 = vpop.f32.mrb[0].mxu0
        %v1782 = vadd.f32 %v648, %v1781
        %v1783 = vpop.f32.mrb[0].mxu0
        %v1784 = vadd.f32 %v650, %v1783
        %v1785 = vpop.f32.mrb[0].mxu0
        %v1786 = vadd.f32 %v652, %v1785
        %1787 = vmatprep.mubr.bf16.mxu0 0
        %1788 = vmatmul.mubr.bf16.gmra.mrb[0].mxu0 %v436
        %v1789 = vpop.f32.mrb[0].mxu0
        %v1790 = vadd.f32 %v656, %v1789
        %v1791 = vpop.f32.mrb[0].mxu0
        %v1792 = vadd.f32 %v658, %v1791
        %v1793 = vpop.f32.mrb[0].mxu0
        %v1794 = vadd.f32 %v660, %v1793
        %v1795 = vpop.f32.mrb[0].mxu0
        %v1796 = vadd.f32 %v662, %v1795
        %1797 = vmatprep.mubr.bf16.mxu0 0
        %1798 = vmatmul.mubr.bf16.gmra.mrb[0].mxu0 %v437
        %v1799 = vpop.f32.mrb[0].mxu0
        %v1800 = vadd.f32 %v666, %v1799
        %v1801 = vpop.f32.mrb[0].mxu0
        %v1802 = vadd.f32 %v668, %v1801
        %v1803 = vpop.f32.mrb[0].mxu0
        %v1804 = vadd.f32 %v670, %v1803
        %v1805 = vpop.f32.mrb[0].mxu0
        %v1806 = vadd.f32 %v672, %v1805
        %1807 = vmatprep.mubr.bf16.mxu0 0
        %1808 = vmatmul.mubr.bf16.gmra.mrb[0].mxu0 %v438
        %v1809 = vpop.f32.mrb[0].mxu0
        %v1810 = vadd.f32 %v676, %v1809
        %v1811 = vpop.f32.mrb[0].mxu0
        %v1812 = vadd.f32 %v678, %v1811
        %v1813 = vpop.f32.mrb[0].mxu0
        %v1814 = vadd.f32 %v680, %v1813
        %v1815 = vpop.f32.mrb[0].mxu0
        %v1816 = vadd.f32 %v682, %v1815
        %1817 = vmatprep.mubr.bf16.mxu0 0
        %1818 = vmatmul.mubr.bf16.gmra.mrb[0].mxu0 %v439
        %v1819 = vpop.f32.mrb[0].mxu0
        %v1820 = vadd.f32 %v686, %v1819
        %v1821 = vpop.f32.mrb[0].mxu0
        %v1822 = vadd.f32 %v688, %v1821
        %v1823 = vpop.f32.mrb[0].mxu0
        %v1824 = vadd.f32 %v690, %v1823
        %v1825 = vpop.f32.mrb[0].mxu0
        %v1826 = vadd.f32 %v692, %v1825
        %1827 = vmatprep.mubr.bf16.mxu0 0
        %1828 = vmatmul.mubr.bf16.gmra.mrb[0].mxu0 %v440
        %v1829 = vpop.f32.mrb[0].mxu0
        %v1830 = vadd.f32 %v696, %v1829
        %v1831 = vpop.f32.mrb[0].mxu0
        %v1832 = vadd.f32 %v698, %v1831
        %v1833 = vpop.f32.mrb[0].mxu0
        %v1834 = vadd.f32 %v700, %v1833
        %v1835 = vpop.f32.mrb[0].mxu0
        %v1836 = vadd.f32 %v702, %v1835
        %1837 = vmatprep.mubr.bf16.mxu0 0
        %1838 = vmatmul.mubr.bf16.gmra.mrb[0].mxu0 %v441
        %v1839 = vpop.f32.mrb[0].mxu0
        %v1840 = vadd.f32 %v706, %v1839
        %v1841 = vpop.f32.mrb[0].mxu0
        %v1842 = vadd.f32 %v708, %v1841
        %v1843 = vpop.f32.mrb[0].mxu0
        %v1844 = vadd.f32 %v710, %v1843
        %v1845 = vpop.f32.mrb[0].mxu0
        %v1846 = vadd.f32 %v712, %v1845
        %1847 = vmatprep.mubr.bf16.mxu0 0
        %1848 = vmatmul.mubr.bf16.gmra.mrb[0].mxu0 %v442
        %v1849 = vpop.f32.mrb[0].mxu0
        %v1850 = vadd.f32 %v716, %v1849
        %v1851 = vpop.f32.mrb[0].mxu0
        %v1852 = vadd.f32 %v718, %v1851
        %v1853 = vpop.f32.mrb[0].mxu0
        %v1854 = vadd.f32 %v720, %v1853
        %v1855 = vpop.f32.mrb[0].mxu0
        %v1856 = vadd.f32 %v722, %v1855
        %1857 = vmatprep.mubr.bf16.mxu0 0
        %1858 = vmatmul.mubr.bf16.gmra.mrb[0].mxu0 %v443
        %v1859 = vpop.f32.mrb[0].mxu0
        %v1860 = vadd.f32 %v726, %v1859
        %v1861 = vpop.f32.mrb[0].mxu0
        %v1862 = vadd.f32 %v728, %v1861
        %v1863 = vpop.f32.mrb[0].mxu0
        %v1864 = vadd.f32 %v730, %v1863
        %v1865 = vpop.f32.mrb[0].mxu0
        %v1866 = vadd.f32 %v732, %v1865
        %1867 = vdwg.mxu0
        %v1870 = vunpack.c.l.b16 %v734
        %v1871 = vunpack.c.l.b16 %v735
        %v1872 = vpack.c.b16 %v1871, %v1870
        %v1890 = vunpack.c.l.b16 %v767
        %v1891 = vunpack.c.h.b16 %v767
        %v1892 = vunpack.c.l.b16 %v768
        %v1893 = vunpack.c.h.b16 %v768
        %v1894 = vunpack.c.l.b16 %v769
        %v1895 = vunpack.c.h.b16 %v769
        %v1896 = vunpack.c.l.b16 %v770
        %v1897 = vunpack.c.h.b16 %v770
        %v1898 = vunpack.c.l.b16 %v771
        %v1899 = vunpack.c.h.b16 %v771
        %v1900 = vunpack.c.l.b16 %v772
        %v1901 = vunpack.c.h.b16 %v772
        %v1902 = vunpack.c.l.b16 %v773
        %v1903 = vunpack.c.h.b16 %v773
        %v1904 = vunpack.c.l.b16 %v774
        %v1905 = vunpack.c.h.b16 %v774
        %v1906 = vunpack.c.l.b16 %v775
        %v1907 = vunpack.c.h.b16 %v775
        %v1908 = vunpack.c.l.b16 %v776
        %v1909 = vunpack.c.h.b16 %v776
        %v1910 = vunpack.c.l.b16 %v777
        %v1911 = vunpack.c.h.b16 %v777
        %v1912 = vunpack.c.l.b16 %v778
        %v1913 = vunpack.c.h.b16 %v778
        %v1914 = vunpack.c.l.b16 %v779
        %v1915 = vunpack.c.h.b16 %v779
        %v1916 = vunpack.c.l.b16 %v780
        %v1917 = vunpack.c.h.b16 %v780
        %v1918 = vunpack.c.l.b16 %v781
        %v1919 = vunpack.c.h.b16 %v781
        %v1920 = vunpack.c.l.b16 %v782
        %v1921 = vunpack.c.h.b16 %v782
        %v1922 = vpack.c.b16 %v1892, %v1890
        %v1923 = vpack.c.b16 %v1893, %v1891
        %v1924 = vpack.c.b16 %v1896, %v1894
        %v1925 = vpack.c.b16 %v1897, %v1895
        %v1926 = vpack.c.b16 %v1900, %v1898
        %v1927 = vpack.c.b16 %v1901, %v1899
        %v1928 = vpack.c.b16 %v1904, %v1902
        %v1929 = vpack.c.b16 %v1905, %v1903
        %v1930 = vpack.c.b16 %v1908, %v1906
        %v1931 = vpack.c.b16 %v1909, %v1907
        %v1932 = vpack.c.b16 %v1912, %v1910
        %v1933 = vpack.c.b16 %v1913, %v1911
        %v1934 = vpack.c.b16 %v1916, %v1914
        %v1935 = vpack.c.b16 %v1917, %v1915
        %v1936 = vpack.c.b16 %v1920, %v1918
        %v1937 = vpack.c.b16 %v1921, %v1919
        %1954 = vmatprep.subr.bf16.mxu0 %v1923
        %1955 = vmatpush1.bf16.msra.mxu0 %v1922
        %1956 = vmatprep.subr.bf16.mxu0 %v1925
        %1957 = vmatpush1.bf16.msra.mxu0 %v1924
        %1958 = vmatprep.subr.bf16.mxu0 %v1927
        %1959 = vmatpush1.bf16.msra.mxu0 %v1926
        %1960 = vmatprep.subr.bf16.mxu0 %v1929
        %1961 = vmatpush1.bf16.msra.mxu0 %v1928
        %1962 = vmatprep.subr.bf16.mxu0 %v1931
        %1963 = vmatpush1.bf16.msra.mxu0 %v1930
        %1964 = vmatprep.subr.bf16.mxu0 %v1933
        %1965 = vmatpush1.bf16.msra.mxu0 %v1932
        %1966 = vmatprep.subr.bf16.mxu0 %v1935
        %1967 = vmatpush1.bf16.msra.mxu0 %v1934
        %1968 = vmatprep.subr.bf16.mxu0 %v1937
        %1969 = vmatpush1.bf16.msra.mxu0 %v1936
        %1970 = vmatprep.subr.bf16.mxu0 0
        %1971 = vmatpush1.bf16.msra.mxu0 0
        %1972 = vmatprep.subr.bf16.mxu0 0
        %1973 = vmatpush1.bf16.msra.mxu0 0
        %1974 = vmatprep.subr.bf16.mxu0 0
        %1975 = vmatpush1.bf16.msra.mxu0 0
        %1976 = vmatprep.subr.bf16.mxu0 0
        %1977 = vmatpush1.bf16.msra.mxu0 0
        %1978 = vmatprep.subr.bf16.mxu0 0
        %1979 = vmatpush1.bf16.msra.mxu0 0
        %1980 = vmatprep.subr.bf16.mxu0 0
        %1981 = vmatpush1.bf16.msra.mxu0 0
        %1982 = vmatprep.subr.bf16.mxu0 0
        %1983 = vmatpush1.bf16.msra.mxu0 0
        %1984 = vmatprep.subr.bf16.mxu0 0
        %1985 = vmatpush1.bf16.msra.mxu0 0
        %1986 = vmatprep.mubr.bf16.mxu0 0
        %1987 = vmatmul.mubr.bf16.gmra.mrb[0].mxu0 %v1872
        %v1988 = vpop.f32.mrb[0].mxu0
        %v1989 = vadd.f32 %v1013, %v1988
        %v1990 = vpop.f32.mrb[0].mxu0
        %v1991 = vadd.f32 %v1015, %v1990
        %v1992 = vpop.f32.mrb[0].mxu0
        %v1993 = vadd.f32 %v1017, %v1992
        %v1994 = vpop.f32.mrb[0].mxu0
        %v1995 = vadd.f32 %v1019, %v1994
        %1996 = vmatprep.mubr.bf16.mxu0 0
        %1997 = vmatmul.mubr.bf16.gmra.mrb[0].mxu0 %v866
        %v1998 = vpop.f32.mrb[0].mxu0
        %v1999 = vadd.f32 %v1023, %v1998
        %v2000 = vpop.f32.mrb[0].mxu0
        %v2001 = vadd.f32 %v1025, %v2000
        %v2002 = vpop.f32.mrb[0].mxu0
        %v2003 = vadd.f32 %v1027, %v2002
        %v2004 = vpop.f32.mrb[0].mxu0
        %v2005 = vadd.f32 %v1029, %v2004
        %2006 = vmatprep.mubr.bf16.mxu0 0
        %2007 = vmatmul.mubr.bf16.gmra.mrb[0].mxu0 %v867
        %v2008 = vpop.f32.mrb[0].mxu0
        %v2009 = vadd.f32 %v1033, %v2008
        %v2010 = vpop.f32.mrb[0].mxu0
        %v2011 = vadd.f32 %v1035, %v2010
        %v2012 = vpop.f32.mrb[0].mxu0
        %v2013 = vadd.f32 %v1037, %v2012
        %v2014 = vpop.f32.mrb[0].mxu0
        %v2015 = vadd.f32 %v1039, %v2014
        %2016 = vmatprep.mubr.bf16.mxu0 0
        %2017 = vmatmul.mubr.bf16.gmra.mrb[0].mxu0 %v868
        %v2018 = vpop.f32.mrb[0].mxu0
        %v2019 = vadd.f32 %v1043, %v2018
        %v2020 = vpop.f32.mrb[0].mxu0
        %v2021 = vadd.f32 %v1045, %v2020
        %v2022 = vpop.f32.mrb[0].mxu0
        %v2023 = vadd.f32 %v1047, %v2022
        %v2024 = vpop.f32.mrb[0].mxu0
        %v2025 = vadd.f32 %v1049, %v2024
        %2026 = vmatprep.mubr.bf16.mxu0 0
        %2027 = vmatmul.mubr.bf16.gmra.mrb[0].mxu0 %v869
        %v2028 = vpop.f32.mrb[0].mxu0
        %v2029 = vadd.f32 %v1053, %v2028
        %v2030 = vpop.f32.mrb[0].mxu0
        %v2031 = vadd.f32 %v1055, %v2030
        %v2032 = vpop.f32.mrb[0].mxu0
        %v2033 = vadd.f32 %v1057, %v2032
        %v2034 = vpop.f32.mrb[0].mxu0
        %v2035 = vadd.f32 %v1059, %v2034
        %2036 = vmatprep.mubr.bf16.mxu0 0
        %2037 = vmatmul.mubr.bf16.gmra.mrb[0].mxu0 %v870
        %v2038 = vpop.f32.mrb[0].mxu0
        %v2039 = vadd.f32 %v1063, %v2038
        %v2040 = vpop.f32.mrb[0].mxu0
        %v2041 = vadd.f32 %v1065, %v2040
        %v2042 = vpop.f32.mrb[0].mxu0
        %v2043 = vadd.f32 %v1067, %v2042
        %v2044 = vpop.f32.mrb[0].mxu0
        %v2045 = vadd.f32 %v1069, %v2044
        %2046 = vmatprep.mubr.bf16.mxu0 0
        %2047 = vmatmul.mubr.bf16.gmra.mrb[0].mxu0 %v871
        %v2048 = vpop.f32.mrb[0].mxu0
        %v2049 = vadd.f32 %v1073, %v2048
        %v2050 = vpop.f32.mrb[0].mxu0
        %v2051 = vadd.f32 %v1075, %v2050
        %v2052 = vpop.f32.mrb[0].mxu0
        %v2053 = vadd.f32 %v1077, %v2052
        %v2054 = vpop.f32.mrb[0].mxu0
        %v2055 = vadd.f32 %v1079, %v2054
        %2056 = vmatprep.mubr.bf16.mxu0 0
        %2057 = vmatmul.mubr.bf16.gmra.mrb[0].mxu0 %v872
        %v2058 = vpop.f32.mrb[0].mxu0
        %v2059 = vadd.f32 %v1083, %v2058
        %v2060 = vpop.f32.mrb[0].mxu0
        %v2061 = vadd.f32 %v1085, %v2060
        %v2062 = vpop.f32.mrb[0].mxu0
        %v2063 = vadd.f32 %v1087, %v2062
        %v2064 = vpop.f32.mrb[0].mxu0
        %v2065 = vadd.f32 %v1089, %v2064
        %2066 = vmatprep.mubr.bf16.mxu0 0
        %2067 = vmatmul.mubr.bf16.gmra.mrb[0].mxu0 %v873
        %v2068 = vpop.f32.mrb[0].mxu0
        %v2069 = vadd.f32 %v1093, %v2068
        %v2070 = vpop.f32.mrb[0].mxu0
        %v2071 = vadd.f32 %v1095, %v2070
        %v2072 = vpop.f32.mrb[0].mxu0
        %v2073 = vadd.f32 %v1097, %v2072
        %v2074 = vpop.f32.mrb[0].mxu0
        %v2075 = vadd.f32 %v1099, %v2074
        %2076 = vmatprep.mubr.bf16.mxu0 0
        %2077 = vmatmul.mubr.bf16.gmra.mrb[0].mxu0 %v874
        %v2078 = vpop.f32.mrb[0].mxu0
        %v2079 = vadd.f32 %v1103, %v2078
        %v2080 = vpop.f32.mrb[0].mxu0
        %v2081 = vadd.f32 %v1105, %v2080
        %v2082 = vpop.f32.mrb[0].mxu0
        %v2083 = vadd.f32 %v1107, %v2082
        %v2084 = vpop.f32.mrb[0].mxu0
        %v2085 = vadd.f32 %v1109, %v2084
        %2086 = vmatprep.mubr.bf16.mxu0 0
        %2087 = vmatmul.mubr.bf16.gmra.mrb[0].mxu0 %v875
        %v2088 = vpop.f32.mrb[0].mxu0
        %v2089 = vadd.f32 %v1113, %v2088
        %v2090 = vpop.f32.mrb[0].mxu0
        %v2091 = vadd.f32 %v1115, %v2090
        %v2092 = vpop.f32.mrb[0].mxu0
        %v2093 = vadd.f32 %v1117, %v2092
        %v2094 = vpop.f32.mrb[0].mxu0
        %v2095 = vadd.f32 %v1119, %v2094
        %2096 = vmatprep.mubr.bf16.mxu0 0
        %2097 = vmatmul.mubr.bf16.gmra.mrb[0].mxu0 %v876
        %v2098 = vpop.f32.mrb[0].mxu0
        %v2099 = vadd.f32 %v1123, %v2098
        %v2100 = vpop.f32.mrb[0].mxu0
        %v2101 = vadd.f32 %v1125, %v2100
        %v2102 = vpop.f32.mrb[0].mxu0
        %v2103 = vadd.f32 %v1127, %v2102
        %v2104 = vpop.f32.mrb[0].mxu0
        %v2105 = vadd.f32 %v1129, %v2104
        %2106 = vmatprep.mubr.bf16.mxu0 0
        %2107 = vmatmul.mubr.bf16.gmra.mrb[0].mxu0 %v877
        %v2108 = vpop.f32.mrb[0].mxu0
        %v2109 = vadd.f32 %v1133, %v2108
        %v2110 = vpop.f32.mrb[0].mxu0
        %v2111 = vadd.f32 %v1135, %v2110
        %v2112 = vpop.f32.mrb[0].mxu0
        %v2113 = vadd.f32 %v1137, %v2112
        %v2114 = vpop.f32.mrb[0].mxu0
        %v2115 = vadd.f32 %v1139, %v2114
        %2116 = vmatprep.mubr.bf16.mxu0 0
        %2117 = vmatmul.mubr.bf16.gmra.mrb[0].mxu0 %v878
        %v2118 = vpop.f32.mrb[0].mxu0
        %v2119 = vadd.f32 %v1143, %v2118
        %v2120 = vpop.f32.mrb[0].mxu0
        %v2121 = vadd.f32 %v1145, %v2120
        %v2122 = vpop.f32.mrb[0].mxu0
        %v2123 = vadd.f32 %v1147, %v2122
        %v2124 = vpop.f32.mrb[0].mxu0
        %v2125 = vadd.f32 %v1149, %v2124
        %2126 = vmatprep.mubr.bf16.mxu0 0
        %2127 = vmatmul.mubr.bf16.gmra.mrb[0].mxu0 %v879
        %v2128 = vpop.f32.mrb[0].mxu0
        %v2129 = vadd.f32 %v1153, %v2128
        %v2130 = vpop.f32.mrb[0].mxu0
        %v2131 = vadd.f32 %v1155, %v2130
        %v2132 = vpop.f32.mrb[0].mxu0
        %v2133 = vadd.f32 %v1157, %v2132
        %v2134 = vpop.f32.mrb[0].mxu0
        %v2135 = vadd.f32 %v1159, %v2134
        %2136 = vmatprep.mubr.bf16.mxu0 0
        %2137 = vmatmul.mubr.bf16.gmra.mrb[0].mxu0 %v880
        %v2138 = vpop.f32.mrb[0].mxu0
        %v2139 = vadd.f32 %v1163, %v2138
        %v2140 = vpop.f32.mrb[0].mxu0
        %v2141 = vadd.f32 %v1165, %v2140
        %v2142 = vpop.f32.mrb[0].mxu0
        %v2143 = vadd.f32 %v1167, %v2142
        %v2144 = vpop.f32.mrb[0].mxu0
        %v2145 = vadd.f32 %v1169, %v2144
        %2146 = vdwg.mxu0
        %v2147 = vadd.f32 %v1710, %v1989
        %v2148 = vadd.f32 %v1712, %v1991
        %v2149 = vadd.f32 %v1714, %v1993
        %v2150 = vadd.f32 %v1716, %v1995
        %v2151 = vadd.f32 %v1720, %v1999
        %v2152 = vadd.f32 %v1722, %v2001
        %v2153 = vadd.f32 %v1724, %v2003
        %v2154 = vadd.f32 %v1726, %v2005
        %v2155 = vadd.f32 %v1730, %v2009
        %v2156 = vadd.f32 %v1732, %v2011
        %v2157 = vadd.f32 %v1734, %v2013
        %v2158 = vadd.f32 %v1736, %v2015
        %v2159 = vadd.f32 %v1740, %v2019
        %v2160 = vadd.f32 %v1742, %v2021
        %v2161 = vadd.f32 %v1744, %v2023
        %v2162 = vadd.f32 %v1746, %v2025
        %v2163 = vadd.f32 %v1750, %v2029
        %v2164 = vadd.f32 %v1752, %v2031
        %v2165 = vadd.f32 %v1754, %v2033
        %v2166 = vadd.f32 %v1756, %v2035
        %v2167 = vadd.f32 %v1760, %v2039
        %v2168 = vadd.f32 %v1762, %v2041
        %v2169 = vadd.f32 %v1764, %v2043
        %v2170 = vadd.f32 %v1766, %v2045
        %v2171 = vadd.f32 %v1770, %v2049
        %v2172 = vadd.f32 %v1772, %v2051
        %v2173 = vadd.f32 %v1774, %v2053
        %v2174 = vadd.f32 %v1776, %v2055
        %v2175 = vadd.f32 %v1780, %v2059
        %v2176 = vadd.f32 %v1782, %v2061
        %v2177 = vadd.f32 %v1784, %v2063
        %v2178 = vadd.f32 %v1786, %v2065
        %v2179 = vadd.f32 %v1790, %v2069
        %v2180 = vadd.f32 %v1792, %v2071
        %v2181 = vadd.f32 %v1794, %v2073
        %v2182 = vadd.f32 %v1796, %v2075
        %v2183 = vadd.f32 %v1800, %v2079
        %v2184 = vadd.f32 %v1802, %v2081
        %v2185 = vadd.f32 %v1804, %v2083
        %v2186 = vadd.f32 %v1806, %v2085
        %v2187 = vadd.f32 %v1810, %v2089
        %v2188 = vadd.f32 %v1812, %v2091
        %v2189 = vadd.f32 %v1814, %v2093
        %v2190 = vadd.f32 %v1816, %v2095
        %v2191 = vadd.f32 %v1820, %v2099
        %v2192 = vadd.f32 %v1822, %v2101
        %v2193 = vadd.f32 %v1824, %v2103
        %v2194 = vadd.f32 %v1826, %v2105
        %v2195 = vadd.f32 %v1830, %v2109
        %v2196 = vadd.f32 %v1832, %v2111
        %v2197 = vadd.f32 %v1834, %v2113
        %v2198 = vadd.f32 %v1836, %v2115
        %v2199 = vadd.f32 %v1840, %v2119
        %v2200 = vadd.f32 %v1842, %v2121
        %v2201 = vadd.f32 %v1844, %v2123
        %v2202 = vadd.f32 %v1846, %v2125
        %v2203 = vadd.f32 %v1850, %v2129
        %v2204 = vadd.f32 %v1852, %v2131
        %v2205 = vadd.f32 %v1854, %v2133
        %v2206 = vadd.f32 %v1856, %v2135
        %v2207 = vadd.f32 %v1860, %v2139
        %v2208 = vadd.f32 %v1862, %v2141
        %v2209 = vadd.f32 %v1864, %v2143
        %v2210 = vadd.f32 %v1866, %v2145
        %v2211 = vadd.f32 %v2147, %v1431
        %v2212 = vadd.f32 %v2148, %v1433
        %v2213 = vadd.f32 %v2149, %v1435
        %v2214 = vadd.f32 %v2150, %v1437
        %v2215 = vadd.f32 %v2151, %v1441
        %v2216 = vadd.f32 %v2152, %v1443
        %v2217 = vadd.f32 %v2153, %v1445
        %v2218 = vadd.f32 %v2154, %v1447
        %v2219 = vadd.f32 %v2155, %v1451
        %v2220 = vadd.f32 %v2156, %v1453
        %v2221 = vadd.f32 %v2157, %v1455
        %v2222 = vadd.f32 %v2158, %v1457
        %v2223 = vadd.f32 %v2159, %v1461
        %v2224 = vadd.f32 %v2160, %v1463
        %v2225 = vadd.f32 %v2161, %v1465
        %v2226 = vadd.f32 %v2162, %v1467
        %v2227 = vadd.f32 %v2163, %v1471
        %v2228 = vadd.f32 %v2164, %v1473
        %v2229 = vadd.f32 %v2165, %v1475
        %v2230 = vadd.f32 %v2166, %v1477
        %v2231 = vadd.f32 %v2167, %v1481
        %v2232 = vadd.f32 %v2168, %v1483
        %v2233 = vadd.f32 %v2169, %v1485
        %v2234 = vadd.f32 %v2170, %v1487
        %v2235 = vadd.f32 %v2171, %v1491
        %v2236 = vadd.f32 %v2172, %v1493
        %v2237 = vadd.f32 %v2173, %v1495
        %v2238 = vadd.f32 %v2174, %v1497
        %v2239 = vadd.f32 %v2175, %v1501
        %v2240 = vadd.f32 %v2176, %v1503
        %v2241 = vadd.f32 %v2177, %v1505
        %v2242 = vadd.f32 %v2178, %v1507
        %v2243 = vadd.f32 %v2179, %v1511
        %v2244 = vadd.f32 %v2180, %v1513
        %v2245 = vadd.f32 %v2181, %v1515
        %v2246 = vadd.f32 %v2182, %v1517
        %v2247 = vadd.f32 %v2183, %v1521
        %v2248 = vadd.f32 %v2184, %v1523
        %v2249 = vadd.f32 %v2185, %v1525
        %v2250 = vadd.f32 %v2186, %v1527
        %v2251 = vadd.f32 %v2187, %v1531
        %v2252 = vadd.f32 %v2188, %v1533
        %v2253 = vadd.f32 %v2189, %v1535
        %v2254 = vadd.f32 %v2190, %v1537
        %v2255 = vadd.f32 %v2191, %v1541
        %v2256 = vadd.f32 %v2192, %v1543
        %v2257 = vadd.f32 %v2193, %v1545
        %v2258 = vadd.f32 %v2194, %v1547
        %v2259 = vadd.f32 %v2195, %v1551
        %v2260 = vadd.f32 %v2196, %v1553
        %v2261 = vadd.f32 %v2197, %v1555
        %v2262 = vadd.f32 %v2198, %v1557
        %v2263 = vadd.f32 %v2199, %v1561
        %v2264 = vadd.f32 %v2200, %v1563
        %v2265 = vadd.f32 %v2201, %v1565
        %v2266 = vadd.f32 %v2202, %v1567
        %v2267 = vadd.f32 %v2203, %v1571
        %v2268 = vadd.f32 %v2204, %v1573
        %v2269 = vadd.f32 %v2205, %v1575
        %v2270 = vadd.f32 %v2206, %v1577
        %v2271 = vadd.f32 %v2207, %v1581
        %v2272 = vadd.f32 %v2208, %v1583
        %v2273 = vadd.f32 %v2209, %v1585
        %v2274 = vadd.f32 %v2210, %v1587
        %v2275 = vtanh.pop %v2211
        %v2276 = vtanh.pop %v2212
        %v2277 = vtanh.pop %v2213
        %v2278 = vtanh.pop %v2214
        %v2279 = vtanh.pop %v2215
        %v2280 = vtanh.pop %v2216
        %v2281 = vtanh.pop %v2217
        %v2282 = vtanh.pop %v2218
        %v2283 = vtanh.pop %v2219
        %v2284 = vtanh.pop %v2220
        %v2285 = vtanh.pop %v2221
        %v2286 = vtanh.pop %v2222
        %v2287 = vtanh.pop %v2223
        %v2288 = vtanh.pop %v2224
        %v2289 = vtanh.pop %v2225
        %v2290 = vtanh.pop %v2226
        %v2291 = vtanh.pop %v2227
        %v2292 = vtanh.pop %v2228
        %v2293 = vtanh.pop %v2229
        %v2294 = vtanh.pop %v2230
        %v2295 = vtanh.pop %v2231
        %v2296 = vtanh.pop %v2232
        %v2297 = vtanh.pop %v2233
        %v2298 = vtanh.pop %v2234
        %v2299 = vtanh.pop %v2235
        %v2300 = vtanh.pop %v2236
        %v2301 = vtanh.pop %v2237
        %v2302 = vtanh.pop %v2238
        %v2303 = vtanh.pop %v2239
        %v2304 = vtanh.pop %v2240
        %v2305 = vtanh.pop %v2241
        %v2306 = vtanh.pop %v2242
        %v2307 = vtanh.pop %v2243
        %v2308 = vtanh.pop %v2244
        %v2309 = vtanh.pop %v2245
        %v2310 = vtanh.pop %v2246
        %v2311 = vtanh.pop %v2247
        %v2312 = vtanh.pop %v2248
        %v2313 = vtanh.pop %v2249
        %v2314 = vtanh.pop %v2250
        %v2315 = vtanh.pop %v2251
        %v2316 = vtanh.pop %v2252
        %v2317 = vtanh.pop %v2253
        %v2318 = vtanh.pop %v2254
        %v2319 = vtanh.pop %v2255
        %v2320 = vtanh.pop %v2256
        %v2321 = vtanh.pop %v2257
        %v2322 = vtanh.pop %v2258
        %v2323 = vtanh.pop %v2259
        %v2324 = vtanh.pop %v2260
        %v2325 = vtanh.pop %v2261
        %v2326 = vtanh.pop %v2262
        %v2327 = vtanh.pop %v2263
        %v2328 = vtanh.pop %v2264
        %v2329 = vtanh.pop %v2265
        %v2330 = vtanh.pop %v2266
        %v2331 = vtanh.pop %v2267
        %v2332 = vtanh.pop %v2268
        %v2333 = vtanh.pop %v2269
        %v2334 = vtanh.pop %v2270
        %v2335 = vtanh.pop %v2271
        %v2336 = vtanh.pop %v2272
        %v2337 = vtanh.pop %v2273
        %v2338 = vtanh.pop %v2274
        %v2339 = vpack.c.bf16 %v2277, %v2275
        %v2340 = vpack.c.bf16 %v2278, %v2276
        %v2341 = vpack.c.bf16 %v2281, %v2279
        %v2342 = vpack.c.bf16 %v2282, %v2280
        %v2343 = vpack.c.bf16 %v2285, %v2283
        %v2344 = vpack.c.bf16 %v2286, %v2284
        %v2345 = vpack.c.bf16 %v2289, %v2287
        %v2346 = vpack.c.bf16 %v2290, %v2288
        %v2347 = vpack.c.bf16 %v2293, %v2291
        %v2348 = vpack.c.bf16 %v2294, %v2292
        %v2349 = vpack.c.bf16 %v2297, %v2295
        %v2350 = vpack.c.bf16 %v2298, %v2296
        %v2351 = vpack.c.bf16 %v2301, %v2299
        %v2352 = vpack.c.bf16 %v2302, %v2300
        %v2353 = vpack.c.bf16 %v2305, %v2303
        %v2354 = vpack.c.bf16 %v2306, %v2304
        %v2355 = vpack.c.bf16 %v2309, %v2307
        %v2356 = vpack.c.bf16 %v2310, %v2308
        %v2357 = vpack.c.bf16 %v2313, %v2311
        %v2358 = vpack.c.bf16 %v2314, %v2312
        %v2359 = vpack.c.bf16 %v2317, %v2315
        %v2360 = vpack.c.bf16 %v2318, %v2316
        %v2361 = vpack.c.bf16 %v2321, %v2319
        %v2362 = vpack.c.bf16 %v2322, %v2320
        %v2363 = vpack.c.bf16 %v2325, %v2323
        %v2364 = vpack.c.bf16 %v2326, %v2324
        %v2365 = vpack.c.bf16 %v2329, %v2327
        %v2366 = vpack.c.bf16 %v2330, %v2328
        %v2367 = vpack.c.bf16 %v2333, %v2331
        %v2368 = vpack.c.bf16 %v2334, %v2332
        %v2369 = vpack.c.bf16 %v2337, %v2335
        %v2370 = vpack.c.bf16 %v2338, %v2336
        %2371 = vst [vmem:[#allocation2 + $0x10] sm:$0xff] %v2339
        %2372 = vst [vmem:[#allocation2 + $0x18] sm:$0xff] %v2340
        %2373 = vst [vmem:[#allocation3 + $0x10] sm:$0xff] %v2341
        %2374 = vst [vmem:[#allocation3 + $0x18] sm:$0xff] %v2342
        %2375 = vst [vmem:[#allocation2 + $0x20] sm:$0xff] %v2343
        %2376 = vst [vmem:[#allocation2 + $0x28] sm:$0xff] %v2344
        %2377 = vst [vmem:[#allocation3 + $0x20] sm:$0xff] %v2345
        %2378 = vst [vmem:[#allocation3 + $0x28] sm:$0xff] %v2346
        %2379 = vst [vmem:[#allocation2 + $0x30] sm:$0xff] %v2347
        %2380 = vst [vmem:[#allocation2 + $0x38] sm:$0xff] %v2348
        %2381 = vst [vmem:[#allocation3 + $0x30] sm:$0xff] %v2349
        %2382 = vst [vmem:[#allocation3 + $0x38] sm:$0xff] %v2350
        %2383 = vst [vmem:[#allocation2 + $0x40] sm:$0xff] %v2351
        %2384 = vst [vmem:[#allocation2 + $0x48] sm:$0xff] %v2352
        %2385 = vst [vmem:[#allocation3 + $0x40] sm:$0xff] %v2353
        %2386 = vst [vmem:[#allocation3 + $0x48] sm:$0xff] %v2354
        %2387 = vst [vmem:[#allocation2 + $0x50] sm:$0xff] %v2355
        %2388 = vst [vmem:[#allocation2 + $0x58] sm:$0xff] %v2356
        %2389 = vst [vmem:[#allocation3 + $0x50] sm:$0xff] %v2357
        %2390 = vst [vmem:[#allocation3 + $0x58] sm:$0xff] %v2358
        %2391 = vst [vmem:[#allocation2 + $0x60] sm:$0xff] %v2359
        %2392 = vst [vmem:[#allocation2 + $0x68] sm:$0xff] %v2360
        %2393 = vst [vmem:[#allocation3 + $0x60] sm:$0xff] %v2361
        %2394 = vst [vmem:[#allocation3 + $0x68] sm:$0xff] %v2362
        %2395 = vst [vmem:[#allocation2 + $0x70] sm:$0xff] %v2363
        %2396 = vst [vmem:[#allocation2 + $0x78] sm:$0xff] %v2364
        %2397 = vst [vmem:[#allocation3 + $0x70] sm:$0xff] %v2365
        %2398 = vst [vmem:[#allocation3 + $0x78] sm:$0xff] %v2366
        %2399 = vst [vmem:[#allocation2 + $0x80] sm:$0xff] %v2367
        %2400 = vst [vmem:[#allocation2 + $0x88] sm:$0xff] %v2368
        %2401 = vst [vmem:[#allocation3 + $0x80] sm:$0xff] %v2369
        %2402 = vst [vmem:[#allocation3 + $0x88] sm:$0xff] %v2370
        %v2403 = vld [vmem:[#allocation2] sm:$0xff]
        %v2404 = vld [vmem:[#allocation2 + $0x8] sm:$0xff]
        %v2405 = vld [vmem:[#allocation2 + $0x10] sm:$0xff]
        %v2406 = vld [vmem:[#allocation2 + $0x18] sm:$0xff]
        %v2407 = vld [vmem:[#allocation2 + $0x20] sm:$0xff]
        %v2408 = vld [vmem:[#allocation2 + $0x28] sm:$0xff]
        %v2409 = vld [vmem:[#allocation2 + $0x30] sm:$0xff]
        %v2410 = vld [vmem:[#allocation2 + $0x38] sm:$0xff]
        %v2411 = vld [vmem:[#allocation2 + $0x40] sm:$0xff]
        %v2412 = vld [vmem:[#allocation2 + $0x48] sm:$0xff]
        %v2413 = vld [vmem:[#allocation2 + $0x50] sm:$0xff]
        %v2414 = vld [vmem:[#allocation2 + $0x58] sm:$0xff]
        %v2415 = vld [vmem:[#allocation2 + $0x60] sm:$0xff]
        %v2416 = vld [vmem:[#allocation2 + $0x68] sm:$0xff]
        %v2417 = vld [vmem:[#allocation2 + $0x70] sm:$0xff]
        %v2418 = vld [vmem:[#allocation2 + $0x78] sm:$0xff]
        %v2419 = vld [vmem:[#allocation9] sm:$0xf]
        %v2420 = vld [vmem:[#allocation9 + $0x4] sm:$0xf]
        %v2421 = vld [vmem:[#allocation9 + $0x8] sm:$0xf]
        %v2422 = vld [vmem:[#allocation9 + $0xc] sm:$0xf]
        %v2423 = vld [vmem:[#allocation9 + $0x10] sm:$0xf]
        %v2424 = vld [vmem:[#allocation9 + $0x14] sm:$0xf]
        %v2425 = vld [vmem:[#allocation9 + $0x18] sm:$0xf]
        %v2426 = vld [vmem:[#allocation9 + $0x1c] sm:$0xf]
        %v2427 = vld [vmem:[#allocation9 + $0x20] sm:$0xf]
        %v2428 = vld [vmem:[#allocation9 + $0x24] sm:$0xf]
        %v2429 = vld [vmem:[#allocation9 + $0x28] sm:$0xf]
        %v2430 = vld [vmem:[#allocation9 + $0x2c] sm:$0xf]
        %v2431 = vld [vmem:[#allocation9 + $0x30] sm:$0xf]
        %v2432 = vld [vmem:[#allocation9 + $0x34] sm:$0xf]
        %v2433 = vld [vmem:[#allocation9 + $0x38] sm:$0xf]
        %v2434 = vld [vmem:[#allocation9 + $0x3c] sm:$0xf]
        %v2435 = vld [vmem:[#allocation9 + $0x40] sm:$0xf]
        %v2436 = vld [vmem:[#allocation9 + $0x44] sm:$0xf]
        %v2437 = vld [vmem:[#allocation9 + $0x48] sm:$0xf]
        %v2438 = vld [vmem:[#allocation9 + $0x4c] sm:$0xf]
        %v2439 = vld [vmem:[#allocation9 + $0x50] sm:$0xf]
        %v2440 = vld [vmem:[#allocation9 + $0x54] sm:$0xf]
        %v2441 = vld [vmem:[#allocation9 + $0x58] sm:$0xf]
        %v2442 = vld [vmem:[#allocation9 + $0x5c] sm:$0xf]
        %v2443 = vld [vmem:[#allocation9 + $0x60] sm:$0xf]
        %v2444 = vld [vmem:[#allocation9 + $0x64] sm:$0xf]
        %v2445 = vld [vmem:[#allocation9 + $0x68] sm:$0xf]
        %v2446 = vld [vmem:[#allocation9 + $0x6c] sm:$0xf]
        %v2447 = vld [vmem:[#allocation9 + $0x70] sm:$0xf]
        %v2448 = vld [vmem:[#allocation9 + $0x74] sm:$0xf]
        %v2449 = vld [vmem:[#allocation9 + $0x78] sm:$0xf]
        %v2450 = vld [vmem:[#allocation9 + $0x7c] sm:$0xf]
        %v2451 = vld [vmem:[#allocation3] sm:$0xff]
        %v2452 = vld [vmem:[#allocation3 + $0x8] sm:$0xff]
        %v2453 = vld [vmem:[#allocation3 + $0x10] sm:$0xff]
        %v2454 = vld [vmem:[#allocation3 + $0x18] sm:$0xff]
        %v2455 = vld [vmem:[#allocation3 + $0x20] sm:$0xff]
        %v2456 = vld [vmem:[#allocation3 + $0x28] sm:$0xff]
        %v2457 = vld [vmem:[#allocation3 + $0x30] sm:$0xff]
        %v2458 = vld [vmem:[#allocation3 + $0x38] sm:$0xff]
        %v2459 = vld [vmem:[#allocation3 + $0x40] sm:$0xff]
        %v2460 = vld [vmem:[#allocation3 + $0x48] sm:$0xff]
        %v2461 = vld [vmem:[#allocation3 + $0x50] sm:$0xff]
        %v2462 = vld [vmem:[#allocation3 + $0x58] sm:$0xff]
        %v2463 = vld [vmem:[#allocation3 + $0x60] sm:$0xff]
        %v2464 = vld [vmem:[#allocation3 + $0x68] sm:$0xff]
        %v2465 = vld [vmem:[#allocation3 + $0x70] sm:$0xff]
        %v2466 = vld [vmem:[#allocation3 + $0x78] sm:$0xff]
        %s2467 = scalar_lea.vmem [#allocation9], 128
        %v2468 = vld [vmem:[%s2467] sm:$0xf]
        %v2469 = vld [vmem:[%s2467 + $0x4] sm:$0xf]
        %v2470 = vld [vmem:[%s2467 + $0x8] sm:$0xf]
        %v2471 = vld [vmem:[%s2467 + $0xc] sm:$0xf]
        %v2472 = vld [vmem:[%s2467 + $0x10] sm:$0xf]
        %v2473 = vld [vmem:[%s2467 + $0x14] sm:$0xf]
        %v2474 = vld [vmem:[%s2467 + $0x18] sm:$0xf]
        %v2475 = vld [vmem:[%s2467 + $0x1c] sm:$0xf]
        %v2476 = vld [vmem:[%s2467 + $0x20] sm:$0xf]
        %v2477 = vld [vmem:[%s2467 + $0x24] sm:$0xf]
        %v2478 = vld [vmem:[%s2467 + $0x28] sm:$0xf]
        %v2479 = vld [vmem:[%s2467 + $0x2c] sm:$0xf]
        %v2480 = vld [vmem:[%s2467 + $0x30] sm:$0xf]
        %v2481 = vld [vmem:[%s2467 + $0x34] sm:$0xf]
        %v2482 = vld [vmem:[%s2467 + $0x38] sm:$0xf]
        %v2483 = vld [vmem:[%s2467 + $0x3c] sm:$0xf]
        %v2484 = vld [vmem:[%s2467 + $0x40] sm:$0xf]
        %v2485 = vld [vmem:[%s2467 + $0x44] sm:$0xf]
        %v2486 = vld [vmem:[%s2467 + $0x48] sm:$0xf]
        %v2487 = vld [vmem:[%s2467 + $0x4c] sm:$0xf]
        %v2488 = vld [vmem:[%s2467 + $0x50] sm:$0xf]
        %v2489 = vld [vmem:[%s2467 + $0x54] sm:$0xf]
        %v2490 = vld [vmem:[%s2467 + $0x58] sm:$0xf]
        %v2491 = vld [vmem:[%s2467 + $0x5c] sm:$0xf]
        %v2492 = vld [vmem:[%s2467 + $0x60] sm:$0xf]
        %v2493 = vld [vmem:[%s2467 + $0x64] sm:$0xf]
        %v2494 = vld [vmem:[%s2467 + $0x68] sm:$0xf]
        %v2495 = vld [vmem:[%s2467 + $0x6c] sm:$0xf]
        %v2496 = vld [vmem:[%s2467 + $0x70] sm:$0xf]
        %v2497 = vld [vmem:[%s2467 + $0x74] sm:$0xf]
        %v2498 = vld [vmem:[%s2467 + $0x78] sm:$0xf]
        %v2499 = vld [vmem:[%s2467 + $0x7c] sm:$0xf]
        %v2532 = vunpack.c.l.b16 %v2468
        %v2533 = vunpack.c.l.b16 %v2469
        %v2534 = vunpack.c.l.b16 %v2470
        %v2535 = vunpack.c.l.b16 %v2471
        %v2536 = vunpack.c.l.b16 %v2472
        %v2537 = vunpack.c.l.b16 %v2473
        %v2538 = vunpack.c.l.b16 %v2474
        %v2539 = vunpack.c.l.b16 %v2475
        %v2540 = vunpack.c.l.b16 %v2476
        %v2541 = vunpack.c.l.b16 %v2477
        %v2542 = vunpack.c.l.b16 %v2478
        %v2543 = vunpack.c.l.b16 %v2479
        %v2544 = vunpack.c.l.b16 %v2480
        %v2545 = vunpack.c.l.b16 %v2481
        %v2546 = vunpack.c.l.b16 %v2482
        %v2547 = vunpack.c.l.b16 %v2483
        %v2548 = vunpack.c.l.b16 %v2484
        %v2549 = vunpack.c.l.b16 %v2485
        %v2550 = vunpack.c.l.b16 %v2486
        %v2551 = vunpack.c.l.b16 %v2487
        %v2552 = vunpack.c.l.b16 %v2488
        %v2553 = vunpack.c.l.b16 %v2489
        %v2554 = vunpack.c.l.b16 %v2490
        %v2555 = vunpack.c.l.b16 %v2491
        %v2556 = vunpack.c.l.b16 %v2492
        %v2557 = vunpack.c.l.b16 %v2493
        %v2558 = vunpack.c.l.b16 %v2494
        %v2559 = vunpack.c.l.b16 %v2495
        %v2560 = vunpack.c.l.b16 %v2496
        %v2561 = vunpack.c.l.b16 %v2497
        %v2562 = vunpack.c.l.b16 %v2498
        %v2563 = vunpack.c.l.b16 %v2499
        %v2564 = vpack.c.b16 %v2533, %v2532
        %v2565 = vpack.c.b16 %v2535, %v2534
        %v2566 = vpack.c.b16 %v2537, %v2536
        %v2567 = vpack.c.b16 %v2539, %v2538
        %v2568 = vpack.c.b16 %v2541, %v2540
        %v2569 = vpack.c.b16 %v2543, %v2542
        %v2570 = vpack.c.b16 %v2545, %v2544
        %v2571 = vpack.c.b16 %v2547, %v2546
        %v2572 = vpack.c.b16 %v2549, %v2548
        %v2573 = vpack.c.b16 %v2551, %v2550
        %v2574 = vpack.c.b16 %v2553, %v2552
        %v2575 = vpack.c.b16 %v2555, %v2554
        %v2576 = vpack.c.b16 %v2557, %v2556
        %v2577 = vpack.c.b16 %v2559, %v2558
        %v2578 = vpack.c.b16 %v2561, %v2560
        %v2579 = vpack.c.b16 %v2563, %v2562
        %2596 = vmatprep.subr.bf16.mxu0 0
        %2597 = vmatpush1.bf16.msra.mxu0 %v2564
        %2598 = vmatprep.subr.bf16.mxu0 0
        %2599 = vmatpush1.bf16.msra.mxu0 %v2565
        %2600 = vmatprep.subr.bf16.mxu0 0
        %2601 = vmatpush1.bf16.msra.mxu0 %v2566
        %2602 = vmatprep.subr.bf16.mxu0 0
        %2603 = vmatpush1.bf16.msra.mxu0 %v2567
        %2604 = vmatprep.subr.bf16.mxu0 0
        %2605 = vmatpush1.bf16.msra.mxu0 %v2568
        %2606 = vmatprep.subr.bf16.mxu0 0
        %2607 = vmatpush1.bf16.msra.mxu0 %v2569
        %2608 = vmatprep.subr.bf16.mxu0 0
        %2609 = vmatpush1.bf16.msra.mxu0 %v2570
        %2610 = vmatprep.subr.bf16.mxu0 0
        %2611 = vmatpush1.bf16.msra.mxu0 %v2571
        %2612 = vmatprep.subr.bf16.mxu0 0
        %2613 = vmatpush1.bf16.msra.mxu0 %v2572
        %2614 = vmatprep.subr.bf16.mxu0 0
        %2615 = vmatpush1.bf16.msra.mxu0 %v2573
        %2616 = vmatprep.subr.bf16.mxu0 0
        %2617 = vmatpush1.bf16.msra.mxu0 %v2574
        %2618 = vmatprep.subr.bf16.mxu0 0
        %2619 = vmatpush1.bf16.msra.mxu0 %v2575
        %2620 = vmatprep.subr.bf16.mxu0 0
        %2621 = vmatpush1.bf16.msra.mxu0 %v2576
        %2622 = vmatprep.subr.bf16.mxu0 0
        %2623 = vmatpush1.bf16.msra.mxu0 %v2577
        %2624 = vmatprep.subr.bf16.mxu0 0
        %2625 = vmatpush1.bf16.msra.mxu0 %v2578
        %2626 = vmatprep.subr.bf16.mxu0 0
        %2627 = vmatpush1.bf16.msra.mxu0 %v2579
        %2628 = vmatprep.mubr.bf16.mxu0 %v2452
        %2629 = vmatmul.mubr.bf16.gmra.mrb[0].mxu0 %v2451
        %v2630 = vpop.f32.mrb[0].mxu0
        %v2631 = vadd.f32 0.0, %v2630
        %v2632 = vpop.f32.mrb[0].mxu0
        %v2633 = vpop.f32.mrb[0].mxu0
        %v2634 = vadd.f32 0.0, %v2633
        %v2635 = vpop.f32.mrb[0].mxu0
        %2636 = vmatprep.mubr.bf16.mxu0 %v2454
        %2637 = vmatmul.mubr.bf16.gmra.mrb[0].mxu0 %v2453
        %v2638 = vpop.f32.mrb[0].mxu0
        %v2639 = vadd.f32 0.0, %v2638
        %v2640 = vpop.f32.mrb[0].mxu0
        %v2641 = vpop.f32.mrb[0].mxu0
        %v2642 = vadd.f32 0.0, %v2641
        %v2643 = vpop.f32.mrb[0].mxu0
        %2644 = vmatprep.mubr.bf16.mxu0 %v2456
        %2645 = vmatmul.mubr.bf16.gmra.mrb[0].mxu0 %v2455
        %v2646 = vpop.f32.mrb[0].mxu0
        %v2647 = vadd.f32 0.0, %v2646
        %v2648 = vpop.f32.mrb[0].mxu0
        %v2649 = vpop.f32.mrb[0].mxu0
        %v2650 = vadd.f32 0.0, %v2649
        %v2651 = vpop.f32.mrb[0].mxu0
        %2652 = vmatprep.mubr.bf16.mxu0 %v2458
        %2653 = vmatmul.mubr.bf16.gmra.mrb[0].mxu0 %v2457
        %v2654 = vpop.f32.mrb[0].mxu0
        %v2655 = vadd.f32 0.0, %v2654
        %v2656 = vpop.f32.mrb[0].mxu0
        %v2657 = vpop.f32.mrb[0].mxu0
        %v2658 = vadd.f32 0.0, %v2657
        %v2659 = vpop.f32.mrb[0].mxu0
        %2660 = vmatprep.mubr.bf16.mxu0 %v2460
        %2661 = vmatmul.mubr.bf16.gmra.mrb[0].mxu0 %v2459
        %v2662 = vpop.f32.mrb[0].mxu0
        %v2663 = vadd.f32 0.0, %v2662
        %v2664 = vpop.f32.mrb[0].mxu0
        %v2665 = vpop.f32.mrb[0].mxu0
        %v2666 = vadd.f32 0.0, %v2665
        %v2667 = vpop.f32.mrb[0].mxu0
        %2668 = vmatprep.mubr.bf16.mxu0 %v2462
        %2669 = vmatmul.mubr.bf16.gmra.mrb[0].mxu0 %v2461
        %v2670 = vpop.f32.mrb[0].mxu0
        %v2671 = vadd.f32 0.0, %v2670
        %v2672 = vpop.f32.mrb[0].mxu0
        %v2673 = vpop.f32.mrb[0].mxu0
        %v2674 = vadd.f32 0.0, %v2673
        %v2675 = vpop.f32.mrb[0].mxu0
        %2676 = vmatprep.mubr.bf16.mxu0 %v2464
        %2677 = vmatmul.mubr.bf16.gmra.mrb[0].mxu0 %v2463
        %v2678 = vpop.f32.mrb[0].mxu0
        %v2679 = vadd.f32 0.0, %v2678
        %v2680 = vpop.f32.mrb[0].mxu0
        %v2681 = vpop.f32.mrb[0].mxu0
        %v2682 = vadd.f32 0.0, %v2681
        %v2683 = vpop.f32.mrb[0].mxu0
        %2684 = vmatprep.mubr.bf16.mxu0 %v2466
        %2685 = vmatmul.mubr.bf16.gmra.mrb[0].mxu0 %v2465
        %v2686 = vpop.f32.mrb[0].mxu0
        %v2687 = vadd.f32 0.0, %v2686
        %v2688 = vpop.f32.mrb[0].mxu0
        %v2689 = vpop.f32.mrb[0].mxu0
        %v2690 = vadd.f32 0.0, %v2689
        %v2691 = vpop.f32.mrb[0].mxu0
        %2692 = vdwg.mxu0
        %v2693 = vld [vmem:[#allocation2 + $0x10] sm:$0xff]
        %v2694 = vld [vmem:[#allocation2 + $0x18] sm:$0xff]
        %v2695 = vld [vmem:[#allocation2 + $0x20] sm:$0xff]
        %v2696 = vld [vmem:[#allocation2 + $0x28] sm:$0xff]
        %v2697 = vld [vmem:[#allocation2 + $0x30] sm:$0xff]
        %v2698 = vld [vmem:[#allocation2 + $0x38] sm:$0xff]
        %v2699 = vld [vmem:[#allocation2 + $0x40] sm:$0xff]
        %v2700 = vld [vmem:[#allocation2 + $0x48] sm:$0xff]
        %v2701 = vld [vmem:[#allocation2 + $0x50] sm:$0xff]
        %v2702 = vld [vmem:[#allocation2 + $0x58] sm:$0xff]
        %v2703 = vld [vmem:[#allocation2 + $0x60] sm:$0xff]
        %v2704 = vld [vmem:[#allocation2 + $0x68] sm:$0xff]
        %v2705 = vld [vmem:[#allocation2 + $0x70] sm:$0xff]
        %v2706 = vld [vmem:[#allocation2 + $0x78] sm:$0xff]
        %v2707 = vld [vmem:[#allocation2 + $0x80] sm:$0xff]
        %v2708 = vld [vmem:[#allocation2 + $0x88] sm:$0xff]
        %s2709 = scalar_lea.vmem [#allocation9], 256
        %v2710 = vld [vmem:[%s2709] sm:$0xf]
        %v2711 = vld [vmem:[%s2709 + $0x4] sm:$0xf]
        %v2712 = vld [vmem:[%s2709 + $0x8] sm:$0xf]
        %v2713 = vld [vmem:[%s2709 + $0xc] sm:$0xf]
        %v2714 = vld [vmem:[%s2709 + $0x10] sm:$0xf]
        %v2715 = vld [vmem:[%s2709 + $0x14] sm:$0xf]
        %v2716 = vld [vmem:[%s2709 + $0x18] sm:$0xf]
        %v2717 = vld [vmem:[%s2709 + $0x1c] sm:$0xf]
        %v2718 = vld [vmem:[%s2709 + $0x20] sm:$0xf]
        %v2719 = vld [vmem:[%s2709 + $0x24] sm:$0xf]
        %v2720 = vld [vmem:[%s2709 + $0x28] sm:$0xf]
        %v2721 = vld [vmem:[%s2709 + $0x2c] sm:$0xf]
        %v2722 = vld [vmem:[%s2709 + $0x30] sm:$0xf]
        %v2723 = vld [vmem:[%s2709 + $0x34] sm:$0xf]
        %v2724 = vld [vmem:[%s2709 + $0x38] sm:$0xf]
        %v2725 = vld [vmem:[%s2709 + $0x3c] sm:$0xf]
        %v2726 = vld [vmem:[%s2709 + $0x40] sm:$0xf]
        %v2727 = vld [vmem:[%s2709 + $0x44] sm:$0xf]
        %v2728 = vld [vmem:[%s2709 + $0x48] sm:$0xf]
        %v2729 = vld [vmem:[%s2709 + $0x4c] sm:$0xf]
        %v2730 = vld [vmem:[%s2709 + $0x50] sm:$0xf]
        %v2731 = vld [vmem:[%s2709 + $0x54] sm:$0xf]
        %v2732 = vld [vmem:[%s2709 + $0x58] sm:$0xf]
        %v2733 = vld [vmem:[%s2709 + $0x5c] sm:$0xf]
        %v2734 = vld [vmem:[%s2709 + $0x60] sm:$0xf]
        %v2735 = vld [vmem:[%s2709 + $0x64] sm:$0xf]
        %v2736 = vld [vmem:[%s2709 + $0x68] sm:$0xf]
        %v2737 = vld [vmem:[%s2709 + $0x6c] sm:$0xf]
        %v2738 = vld [vmem:[%s2709 + $0x70] sm:$0xf]
        %v2739 = vld [vmem:[%s2709 + $0x74] sm:$0xf]
        %v2740 = vld [vmem:[%s2709 + $0x78] sm:$0xf]
        %v2741 = vld [vmem:[%s2709 + $0x7c] sm:$0xf]
        %v2742 = vld [vmem:[#allocation3 + $0x10] sm:$0xff]
        %v2743 = vld [vmem:[#allocation3 + $0x18] sm:$0xff]
        %v2744 = vld [vmem:[#allocation3 + $0x20] sm:$0xff]
        %v2745 = vld [vmem:[#allocation3 + $0x28] sm:$0xff]
        %v2746 = vld [vmem:[#allocation3 + $0x30] sm:$0xff]
        %v2747 = vld [vmem:[#allocation3 + $0x38] sm:$0xff]
        %v2748 = vld [vmem:[#allocation3 + $0x40] sm:$0xff]
        %v2749 = vld [vmem:[#allocation3 + $0x48] sm:$0xff]
        %v2750 = vld [vmem:[#allocation3 + $0x50] sm:$0xff]
        %v2751 = vld [vmem:[#allocation3 + $0x58] sm:$0xff]
        %v2752 = vld [vmem:[#allocation3 + $0x60] sm:$0xff]
        %v2753 = vld [vmem:[#allocation3 + $0x68] sm:$0xff]
        %v2754 = vld [vmem:[#allocation3 + $0x70] sm:$0xff]
        %v2755 = vld [vmem:[#allocation3 + $0x78] sm:$0xff]
        %v2756 = vld [vmem:[#allocation3 + $0x80] sm:$0xff]
        %v2757 = vld [vmem:[#allocation3 + $0x88] sm:$0xff]
        %s2758 = scalar_lea.vmem [#allocation9], 384
        %v2759 = vld [vmem:[%s2758] sm:$0xf]
        %v2760 = vld [vmem:[%s2758 + $0x4] sm:$0xf]
        %v2761 = vld [vmem:[%s2758 + $0x8] sm:$0xf]
        %v2762 = vld [vmem:[%s2758 + $0xc] sm:$0xf]
        %v2763 = vld [vmem:[%s2758 + $0x10] sm:$0xf]
        %v2764 = vld [vmem:[%s2758 + $0x14] sm:$0xf]
        %v2765 = vld [vmem:[%s2758 + $0x18] sm:$0xf]
        %v2766 = vld [vmem:[%s2758 + $0x1c] sm:$0xf]
        %v2767 = vld [vmem:[%s2758 + $0x20] sm:$0xf]
        %v2768 = vld [vmem:[%s2758 + $0x24] sm:$0xf]
        %v2769 = vld [vmem:[%s2758 + $0x28] sm:$0xf]
        %v2770 = vld [vmem:[%s2758 + $0x2c] sm:$0xf]
        %v2771 = vld [vmem:[%s2758 + $0x30] sm:$0xf]
        %v2772 = vld [vmem:[%s2758 + $0x34] sm:$0xf]
        %v2773 = vld [vmem:[%s2758 + $0x38] sm:$0xf]
        %v2774 = vld [vmem:[%s2758 + $0x3c] sm:$0xf]
        %v2775 = vld [vmem:[%s2758 + $0x40] sm:$0xf]
        %v2776 = vld [vmem:[%s2758 + $0x44] sm:$0xf]
        %v2777 = vld [vmem:[%s2758 + $0x48] sm:$0xf]
        %v2778 = vld [vmem:[%s2758 + $0x4c] sm:$0xf]
        %v2779 = vld [vmem:[%s2758 + $0x50] sm:$0xf]
        %v2780 = vld [vmem:[%s2758 + $0x54] sm:$0xf]
        %v2781 = vld [vmem:[%s2758 + $0x58] sm:$0xf]
        %v2782 = vld [vmem:[%s2758 + $0x5c] sm:$0xf]
        %v2783 = vld [vmem:[%s2758 + $0x60] sm:$0xf]
        %v2784 = vld [vmem:[%s2758 + $0x64] sm:$0xf]
        %v2785 = vld [vmem:[%s2758 + $0x68] sm:$0xf]
        %v2786 = vld [vmem:[%s2758 + $0x6c] sm:$0xf]
        %v2787 = vld [vmem:[%s2758 + $0x70] sm:$0xf]
        %v2788 = vld [vmem:[%s2758 + $0x74] sm:$0xf]
        %v2789 = vld [vmem:[%s2758 + $0x78] sm:$0xf]
        %v2790 = vld [vmem:[%s2758 + $0x7c] sm:$0xf]
        %v2823 = vunpack.c.l.b16 %v2759
        %v2824 = vunpack.c.l.b16 %v2760
        %v2825 = vunpack.c.l.b16 %v2761
        %v2826 = vunpack.c.l.b16 %v2762
        %v2827 = vunpack.c.l.b16 %v2763
        %v2828 = vunpack.c.l.b16 %v2764
        %v2829 = vunpack.c.l.b16 %v2765
        %v2830 = vunpack.c.l.b16 %v2766
        %v2831 = vunpack.c.l.b16 %v2767
        %v2832 = vunpack.c.l.b16 %v2768
        %v2833 = vunpack.c.l.b16 %v2769
        %v2834 = vunpack.c.l.b16 %v2770
        %v2835 = vunpack.c.l.b16 %v2771
        %v2836 = vunpack.c.l.b16 %v2772
        %v2837 = vunpack.c.l.b16 %v2773
        %v2838 = vunpack.c.l.b16 %v2774
        %v2839 = vunpack.c.l.b16 %v2775
        %v2840 = vunpack.c.l.b16 %v2776
        %v2841 = vunpack.c.l.b16 %v2777
        %v2842 = vunpack.c.l.b16 %v2778
        %v2843 = vunpack.c.l.b16 %v2779
        %v2844 = vunpack.c.l.b16 %v2780
        %v2845 = vunpack.c.l.b16 %v2781
        %v2846 = vunpack.c.l.b16 %v2782
        %v2847 = vunpack.c.l.b16 %v2783
        %v2848 = vunpack.c.l.b16 %v2784
        %v2849 = vunpack.c.l.b16 %v2785
        %v2850 = vunpack.c.l.b16 %v2786
        %v2851 = vunpack.c.l.b16 %v2787
        %v2852 = vunpack.c.l.b16 %v2788
        %v2853 = vunpack.c.l.b16 %v2789
        %v2854 = vunpack.c.l.b16 %v2790
        %v2855 = vpack.c.b16 %v2824, %v2823
        %v2856 = vpack.c.b16 %v2826, %v2825
        %v2857 = vpack.c.b16 %v2828, %v2827
        %v2858 = vpack.c.b16 %v2830, %v2829
        %v2859 = vpack.c.b16 %v2832, %v2831
        %v2860 = vpack.c.b16 %v2834, %v2833
        %v2861 = vpack.c.b16 %v2836, %v2835
        %v2862 = vpack.c.b16 %v2838, %v2837
        %v2863 = vpack.c.b16 %v2840, %v2839
        %v2864 = vpack.c.b16 %v2842, %v2841
        %v2865 = vpack.c.b16 %v2844, %v2843
        %v2866 = vpack.c.b16 %v2846, %v2845
        %v2867 = vpack.c.b16 %v2848, %v2847
        %v2868 = vpack.c.b16 %v2850, %v2849
        %v2869 = vpack.c.b16 %v2852, %v2851
        %v2870 = vpack.c.b16 %v2854, %v2853
        %2887 = vmatprep.subr.bf16.mxu0 0
        %2888 = vmatpush1.bf16.msra.mxu0 %v2855
        %2889 = vmatprep.subr.bf16.mxu0 0
        %2890 = vmatpush1.bf16.msra.mxu0 %v2856
        %2891 = vmatprep.subr.bf16.mxu0 0
        %2892 = vmatpush1.bf16.msra.mxu0 %v2857
        %2893 = vmatprep.subr.bf16.mxu0 0
        %2894 = vmatpush1.bf16.msra.mxu0 %v2858
        %2895 = vmatprep.subr.bf16.mxu0 0
        %2896 = vmatpush1.bf16.msra.mxu0 %v2859
        %2897 = vmatprep.subr.bf16.mxu0 0
        %2898 = vmatpush1.bf16.msra.mxu0 %v2860
        %2899 = vmatprep.subr.bf16.mxu0 0
        %2900 = vmatpush1.bf16.msra.mxu0 %v2861
        %2901 = vmatprep.subr.bf16.mxu0 0
        %2902 = vmatpush1.bf16.msra.mxu0 %v2862
        %2903 = vmatprep.subr.bf16.mxu0 0
        %2904 = vmatpush1.bf16.msra.mxu0 %v2863
        %2905 = vmatprep.subr.bf16.mxu0 0
        %2906 = vmatpush1.bf16.msra.mxu0 %v2864
        %2907 = vmatprep.subr.bf16.mxu0 0
        %2908 = vmatpush1.bf16.msra.mxu0 %v2865
        %2909 = vmatprep.subr.bf16.mxu0 0
        %2910 = vmatpush1.bf16.msra.mxu0 %v2866
        %2911 = vmatprep.subr.bf16.mxu0 0
        %2912 = vmatpush1.bf16.msra.mxu0 %v2867
        %2913 = vmatprep.subr.bf16.mxu0 0
        %2914 = vmatpush1.bf16.msra.mxu0 %v2868
        %2915 = vmatprep.subr.bf16.mxu0 0
        %2916 = vmatpush1.bf16.msra.mxu0 %v2869
        %2917 = vmatprep.subr.bf16.mxu0 0
        %2918 = vmatpush1.bf16.msra.mxu0 %v2870
        %2919 = vmatprep.mubr.bf16.mxu0 %v2743
        %2920 = vmatmul.mubr.bf16.gmra.mrb[0].mxu0 %v2742
        %v2921 = vpop.f32.mrb[0].mxu0
        %v2922 = vadd.f32 0.0, %v2921
        %v2923 = vpop.f32.mrb[0].mxu0
        %v2924 = vpop.f32.mrb[0].mxu0
        %v2925 = vadd.f32 0.0, %v2924
        %v2926 = vpop.f32.mrb[0].mxu0
        %2927 = vmatprep.mubr.bf16.mxu0 %v2745
        %2928 = vmatmul.mubr.bf16.gmra.mrb[0].mxu0 %v2744
        %v2929 = vpop.f32.mrb[0].mxu0
        %v2930 = vadd.f32 0.0, %v2929
        %v2931 = vpop.f32.mrb[0].mxu0
        %v2932 = vpop.f32.mrb[0].mxu0
        %v2933 = vadd.f32 0.0, %v2932
        %v2934 = vpop.f32.mrb[0].mxu0
        %2935 = vmatprep.mubr.bf16.mxu0 %v2747
        %2936 = vmatmul.mubr.bf16.gmra.mrb[0].mxu0 %v2746
        %v2937 = vpop.f32.mrb[0].mxu0
        %v2938 = vadd.f32 0.0, %v2937
        %v2939 = vpop.f32.mrb[0].mxu0
        %v2940 = vpop.f32.mrb[0].mxu0
        %v2941 = vadd.f32 0.0, %v2940
        %v2942 = vpop.f32.mrb[0].mxu0
        %2943 = vmatprep.mubr.bf16.mxu0 %v2749
        %2944 = vmatmul.mubr.bf16.gmra.mrb[0].mxu0 %v2748
        %v2945 = vpop.f32.mrb[0].mxu0
        %v2946 = vadd.f32 0.0, %v2945
        %v2947 = vpop.f32.mrb[0].mxu0
        %v2948 = vpop.f32.mrb[0].mxu0
        %v2949 = vadd.f32 0.0, %v2948
        %v2950 = vpop.f32.mrb[0].mxu0
        %2951 = vmatprep.mubr.bf16.mxu0 %v2751
        %2952 = vmatmul.mubr.bf16.gmra.mrb[0].mxu0 %v2750
        %v2953 = vpop.f32.mrb[0].mxu0
        %v2954 = vadd.f32 0.0, %v2953
        %v2955 = vpop.f32.mrb[0].mxu0
        %v2956 = vpop.f32.mrb[0].mxu0
        %v2957 = vadd.f32 0.0, %v2956
        %v2958 = vpop.f32.mrb[0].mxu0
        %2959 = vmatprep.mubr.bf16.mxu0 %v2753
        %2960 = vmatmul.mubr.bf16.gmra.mrb[0].mxu0 %v2752
        %v2961 = vpop.f32.mrb[0].mxu0
        %v2962 = vadd.f32 0.0, %v2961
        %v2963 = vpop.f32.mrb[0].mxu0
        %v2964 = vpop.f32.mrb[0].mxu0
        %v2965 = vadd.f32 0.0, %v2964
        %v2966 = vpop.f32.mrb[0].mxu0
        %2967 = vmatprep.mubr.bf16.mxu0 %v2755
        %2968 = vmatmul.mubr.bf16.gmra.mrb[0].mxu0 %v2754
        %v2969 = vpop.f32.mrb[0].mxu0
        %v2970 = vadd.f32 0.0, %v2969
        %v2971 = vpop.f32.mrb[0].mxu0
        %v2972 = vpop.f32.mrb[0].mxu0
        %v2973 = vadd.f32 0.0, %v2972
        %v2974 = vpop.f32.mrb[0].mxu0
        %2975 = vmatprep.mubr.bf16.mxu0 %v2757
        %2976 = vmatmul.mubr.bf16.gmra.mrb[0].mxu0 %v2756
        %v2977 = vpop.f32.mrb[0].mxu0
        %v2978 = vadd.f32 0.0, %v2977
        %v2979 = vpop.f32.mrb[0].mxu0
        %v2980 = vpop.f32.mrb[0].mxu0
        %v2981 = vadd.f32 0.0, %v2980
        %v2982 = vpop.f32.mrb[0].mxu0
        %2983 = vdwg.mxu0
        %v2984 = vld [vmem:[#allocation2 + $0x20] sm:$0xff]
        %v2985 = vld [vmem:[#allocation2 + $0x28] sm:$0xff]
        %v2986 = vld [vmem:[#allocation2 + $0x30] sm:$0xff]
        %v2987 = vld [vmem:[#allocation2 + $0x38] sm:$0xff]
        %v2988 = vld [vmem:[#allocation2 + $0x40] sm:$0xff]
        %v2989 = vld [vmem:[#allocation2 + $0x48] sm:$0xff]
        %v2990 = vld [vmem:[#allocation2 + $0x50] sm:$0xff]
        %v2991 = vld [vmem:[#allocation2 + $0x58] sm:$0xff]
        %v2992 = vld [vmem:[#allocation2 + $0x60] sm:$0xff]
        %v2993 = vld [vmem:[#allocation2 + $0x68] sm:$0xff]
        %v2994 = vld [vmem:[#allocation2 + $0x70] sm:$0xff]
        %v2995 = vld [vmem:[#allocation2 + $0x78] sm:$0xff]
        %v2996 = vld [vmem:[#allocation2 + $0x80] sm:$0xff]
        %v2997 = vld [vmem:[#allocation2 + $0x88] sm:$0xff]
        %v2998 = vld [vmem:[#allocation2 + $0x90] sm:$0xff]
        %v2999 = vld [vmem:[#allocation2 + $0x98] sm:$0xff]
        %s3000 = scalar_lea.vmem [#allocation9], 512
        %v3001 = vld [vmem:[%s3000] sm:$0xf]
        %v3002 = vld [vmem:[%s3000 + $0x4] sm:$0xf]
        %v3003 = vld [vmem:[%s3000 + $0x8] sm:$0xf]
        %v3004 = vld [vmem:[%s3000 + $0xc] sm:$0xf]
        %v3005 = vld [vmem:[%s3000 + $0x10] sm:$0xf]
        %v3006 = vld [vmem:[%s3000 + $0x14] sm:$0xf]
        %v3007 = vld [vmem:[%s3000 + $0x18] sm:$0xf]
        %v3008 = vld [vmem:[%s3000 + $0x1c] sm:$0xf]
        %v3009 = vld [vmem:[%s3000 + $0x20] sm:$0xf]
        %v3010 = vld [vmem:[%s3000 + $0x24] sm:$0xf]
        %v3011 = vld [vmem:[%s3000 + $0x28] sm:$0xf]
        %v3012 = vld [vmem:[%s3000 + $0x2c] sm:$0xf]
        %v3013 = vld [vmem:[%s3000 + $0x30] sm:$0xf]
        %v3014 = vld [vmem:[%s3000 + $0x34] sm:$0xf]
        %v3015 = vld [vmem:[%s3000 + $0x38] sm:$0xf]
        %v3016 = vld [vmem:[%s3000 + $0x3c] sm:$0xf]
        %v3017 = vld [vmem:[%s3000 + $0x40] sm:$0xf]
        %v3018 = vld [vmem:[%s3000 + $0x44] sm:$0xf]
        %v3019 = vld [vmem:[%s3000 + $0x48] sm:$0xf]
        %v3020 = vld [vmem:[%s3000 + $0x4c] sm:$0xf]
        %v3021 = vld [vmem:[%s3000 + $0x50] sm:$0xf]
        %v3022 = vld [vmem:[%s3000 + $0x54] sm:$0xf]
        %v3023 = vld [vmem:[%s3000 + $0x58] sm:$0xf]
        %v3024 = vld [vmem:[%s3000 + $0x5c] sm:$0xf]
        %v3025 = vld [vmem:[%s3000 + $0x60] sm:$0xf]
        %v3026 = vld [vmem:[%s3000 + $0x64] sm:$0xf]
        %v3027 = vld [vmem:[%s3000 + $0x68] sm:$0xf]
        %v3028 = vld [vmem:[%s3000 + $0x6c] sm:$0xf]
        %v3029 = vld [vmem:[%s3000 + $0x70] sm:$0xf]
        %v3030 = vld [vmem:[%s3000 + $0x74] sm:$0xf]
        %v3031 = vld [vmem:[%s3000 + $0x78] sm:$0xf]
        %v3032 = vld [vmem:[%s3000 + $0x7c] sm:$0xf]
        %v3065 = vunpack.c.l.b16 %v3001
        %v3066 = vunpack.c.l.b16 %v3002
        %v3067 = vunpack.c.l.b16 %v3003
        %v3068 = vunpack.c.l.b16 %v3004
        %v3069 = vunpack.c.l.b16 %v3005
        %v3070 = vunpack.c.l.b16 %v3006
        %v3071 = vunpack.c.l.b16 %v3007
        %v3072 = vunpack.c.l.b16 %v3008
        %v3073 = vunpack.c.l.b16 %v3009
        %v3074 = vunpack.c.l.b16 %v3010
        %v3075 = vunpack.c.l.b16 %v3011
        %v3076 = vunpack.c.l.b16 %v3012
        %v3077 = vunpack.c.l.b16 %v3013
        %v3078 = vunpack.c.l.b16 %v3014
        %v3079 = vunpack.c.l.b16 %v3015
        %v3080 = vunpack.c.l.b16 %v3016
        %v3081 = vunpack.c.l.b16 %v3017
        %v3082 = vunpack.c.l.b16 %v3018
        %v3083 = vunpack.c.l.b16 %v3019
        %v3084 = vunpack.c.l.b16 %v3020
        %v3085 = vunpack.c.l.b16 %v3021
        %v3086 = vunpack.c.l.b16 %v3022
        %v3087 = vunpack.c.l.b16 %v3023
        %v3088 = vunpack.c.l.b16 %v3024
        %v3089 = vunpack.c.l.b16 %v3025
        %v3090 = vunpack.c.l.b16 %v3026
        %v3091 = vunpack.c.l.b16 %v3027
        %v3092 = vunpack.c.l.b16 %v3028
        %v3093 = vunpack.c.l.b16 %v3029
        %v3094 = vunpack.c.l.b16 %v3030
        %v3095 = vunpack.c.l.b16 %v3031
        %v3096 = vunpack.c.l.b16 %v3032
        %v3097 = vpack.c.b16 %v3066, %v3065
        %v3098 = vpack.c.b16 %v3068, %v3067
        %v3099 = vpack.c.b16 %v3070, %v3069
        %v3100 = vpack.c.b16 %v3072, %v3071
        %v3101 = vpack.c.b16 %v3074, %v3073
        %v3102 = vpack.c.b16 %v3076, %v3075
        %v3103 = vpack.c.b16 %v3078, %v3077
        %v3104 = vpack.c.b16 %v3080, %v3079
        %v3105 = vpack.c.b16 %v3082, %v3081
        %v3106 = vpack.c.b16 %v3084, %v3083
        %v3107 = vpack.c.b16 %v3086, %v3085
        %v3108 = vpack.c.b16 %v3088, %v3087
        %v3109 = vpack.c.b16 %v3090, %v3089
        %v3110 = vpack.c.b16 %v3092, %v3091
        %v3111 = vpack.c.b16 %v3094, %v3093
        %v3112 = vpack.c.b16 %v3096, %v3095
        %3129 = vmatprep.subr.bf16.mxu0 0
        %3130 = vmatpush1.bf16.msra.mxu0 %v3097
        %3131 = vmatprep.subr.bf16.mxu0 0
        %3132 = vmatpush1.bf16.msra.mxu0 %v3098
        %3133 = vmatprep.subr.bf16.mxu0 0
        %3134 = vmatpush1.bf16.msra.mxu0 %v3099
        %3135 = vmatprep.subr.bf16.mxu0 0
        %3136 = vmatpush1.bf16.msra.mxu0 %v3100
        %3137 = vmatprep.subr.bf16.mxu0 0
        %3138 = vmatpush1.bf16.msra.mxu0 %v3101
        %3139 = vmatprep.subr.bf16.mxu0 0
        %3140 = vmatpush1.bf16.msra.mxu0 %v3102
        %3141 = vmatprep.subr.bf16.mxu0 0
        %3142 = vmatpush1.bf16.msra.mxu0 %v3103
        %3143 = vmatprep.subr.bf16.mxu0 0
        %3144 = vmatpush1.bf16.msra.mxu0 %v3104
        %3145 = vmatprep.subr.bf16.mxu0 0
        %3146 = vmatpush1.bf16.msra.mxu0 %v3105
        %3147 = vmatprep.subr.bf16.mxu0 0
        %3148 = vmatpush1.bf16.msra.mxu0 %v3106
        %3149 = vmatprep.subr.bf16.mxu0 0
        %3150 = vmatpush1.bf16.msra.mxu0 %v3107
        %3151 = vmatprep.subr.bf16.mxu0 0
        %3152 = vmatpush1.bf16.msra.mxu0 %v3108
        %3153 = vmatprep.subr.bf16.mxu0 0
        %3154 = vmatpush1.bf16.msra.mxu0 %v3109
        %3155 = vmatprep.subr.bf16.mxu0 0
        %3156 = vmatpush1.bf16.msra.mxu0 %v3110
        %3157 = vmatprep.subr.bf16.mxu0 0
        %3158 = vmatpush1.bf16.msra.mxu0 %v3111
        %3159 = vmatprep.subr.bf16.mxu0 0
        %3160 = vmatpush1.bf16.msra.mxu0 %v3112
        %3161 = vmatprep.mubr.bf16.mxu0 %v2985
        %3162 = vmatmul.mubr.bf16.gmra.mrb[0].mxu0 %v2984
        %v3163 = vpop.f32.mrb[0].mxu0
        %v3164 = vadd.f32 0.0, %v3163
        %v3165 = vpop.f32.mrb[0].mxu0
        %v3166 = vpop.f32.mrb[0].mxu0
        %v3167 = vadd.f32 0.0, %v3166
        %v3168 = vpop.f32.mrb[0].mxu0
        %3169 = vmatprep.mubr.bf16.mxu0 %v2987
        %3170 = vmatmul.mubr.bf16.gmra.mrb[0].mxu0 %v2986
        %v3171 = vpop.f32.mrb[0].mxu0
        %v3172 = vadd.f32 0.0, %v3171
        %v3173 = vpop.f32.mrb[0].mxu0
        %v3174 = vpop.f32.mrb[0].mxu0
        %v3175 = vadd.f32 0.0, %v3174
        %v3176 = vpop.f32.mrb[0].mxu0
        %3177 = vmatprep.mubr.bf16.mxu0 %v2989
        %3178 = vmatmul.mubr.bf16.gmra.mrb[0].mxu0 %v2988
        %v3179 = vpop.f32.mrb[0].mxu0
        %v3180 = vadd.f32 0.0, %v3179
        %v3181 = vpop.f32.mrb[0].mxu0
        %v3182 = vpop.f32.mrb[0].mxu0
        %v3183 = vadd.f32 0.0, %v3182
        %v3184 = vpop.f32.mrb[0].mxu0
        %3185 = vmatprep.mubr.bf16.mxu0 %v2991
        %3186 = vmatmul.mubr.bf16.gmra.mrb[0].mxu0 %v2990
        %v3187 = vpop.f32.mrb[0].mxu0
        %v3188 = vadd.f32 0.0, %v3187
        %v3189 = vpop.f32.mrb[0].mxu0
        %v3190 = vpop.f32.mrb[0].mxu0
        %v3191 = vadd.f32 0.0, %v3190
        %v3192 = vpop.f32.mrb[0].mxu0
        %3193 = vmatprep.mubr.bf16.mxu0 %v2993
        %3194 = vmatmul.mubr.bf16.gmra.mrb[0].mxu0 %v2992
        %v3195 = vpop.f32.mrb[0].mxu0
        %v3196 = vadd.f32 0.0, %v3195
        %v3197 = vpop.f32.mrb[0].mxu0
        %v3198 = vpop.f32.mrb[0].mxu0
        %v3199 = vadd.f32 0.0, %v3198
        %v3200 = vpop.f32.mrb[0].mxu0
        %3201 = vmatprep.mubr.bf16.mxu0 %v2995
        %3202 = vmatmul.mubr.bf16.gmra.mrb[0].mxu0 %v2994
        %v3203 = vpop.f32.mrb[0].mxu0
        %v3204 = vadd.f32 0.0, %v3203
        %v3205 = vpop.f32.mrb[0].mxu0
        %v3206 = vpop.f32.mrb[0].mxu0
        %v3207 = vadd.f32 0.0, %v3206
        %v3208 = vpop.f32.mrb[0].mxu0
        %3209 = vmatprep.mubr.bf16.mxu0 %v2997
        %3210 = vmatmul.mubr.bf16.gmra.mrb[0].mxu0 %v2996
        %v3211 = vpop.f32.mrb[0].mxu0
        %v3212 = vadd.f32 0.0, %v3211
        %v3213 = vpop.f32.mrb[0].mxu0
        %v3214 = vpop.f32.mrb[0].mxu0
        %v3215 = vadd.f32 0.0, %v3214
        %v3216 = vpop.f32.mrb[0].mxu0
        %3217 = vmatprep.mubr.bf16.mxu0 %v2999
        %3218 = vmatmul.mubr.bf16.gmra.mrb[0].mxu0 %v2998
        %v3219 = vpop.f32.mrb[0].mxu0
        %v3220 = vadd.f32 0.0, %v3219
        %v3221 = vpop.f32.mrb[0].mxu0
        %v3222 = vpop.f32.mrb[0].mxu0
        %v3223 = vadd.f32 0.0, %v3222
        %v3224 = vpop.f32.mrb[0].mxu0
        %3225 = vdwg.mxu0
        %v3258 = vunpack.c.l.b16 %v2419
        %v3259 = vunpack.c.l.b16 %v2420
        %v3260 = vunpack.c.l.b16 %v2421
        %v3261 = vunpack.c.l.b16 %v2422
        %v3262 = vunpack.c.l.b16 %v2423
        %v3263 = vunpack.c.l.b16 %v2424
        %v3264 = vunpack.c.l.b16 %v2425
        %v3265 = vunpack.c.l.b16 %v2426
        %v3266 = vunpack.c.l.b16 %v2427
        %v3267 = vunpack.c.l.b16 %v2428
        %v3268 = vunpack.c.l.b16 %v2429
        %v3269 = vunpack.c.l.b16 %v2430
        %v3270 = vunpack.c.l.b16 %v2431
        %v3271 = vunpack.c.l.b16 %v2432
        %v3272 = vunpack.c.l.b16 %v2433
        %v3273 = vunpack.c.l.b16 %v2434
        %v3274 = vunpack.c.l.b16 %v2435
        %v3275 = vunpack.c.l.b16 %v2436
        %v3276 = vunpack.c.l.b16 %v2437
        %v3277 = vunpack.c.l.b16 %v2438
        %v3278 = vunpack.c.l.b16 %v2439
        %v3279 = vunpack.c.l.b16 %v2440
        %v3280 = vunpack.c.l.b16 %v2441
        %v3281 = vunpack.c.l.b16 %v2442
        %v3282 = vunpack.c.l.b16 %v2443
        %v3283 = vunpack.c.l.b16 %v2444
        %v3284 = vunpack.c.l.b16 %v2445
        %v3285 = vunpack.c.l.b16 %v2446
        %v3286 = vunpack.c.l.b16 %v2447
        %v3287 = vunpack.c.l.b16 %v2448
        %v3288 = vunpack.c.l.b16 %v2449
        %v3289 = vunpack.c.l.b16 %v2450
        %v3290 = vpack.c.b16 %v3259, %v3258
        %v3291 = vpack.c.b16 %v3261, %v3260
        %v3292 = vpack.c.b16 %v3263, %v3262
        %v3293 = vpack.c.b16 %v3265, %v3264
        %v3294 = vpack.c.b16 %v3267, %v3266
        %v3295 = vpack.c.b16 %v3269, %v3268
        %v3296 = vpack.c.b16 %v3271, %v3270
        %v3297 = vpack.c.b16 %v3273, %v3272
        %v3298 = vpack.c.b16 %v3275, %v3274
        %v3299 = vpack.c.b16 %v3277, %v3276
        %v3300 = vpack.c.b16 %v3279, %v3278
        %v3301 = vpack.c.b16 %v3281, %v3280
        %v3302 = vpack.c.b16 %v3283, %v3282
        %v3303 = vpack.c.b16 %v3285, %v3284
        %v3304 = vpack.c.b16 %v3287, %v3286
        %v3305 = vpack.c.b16 %v3289, %v3288
        %3322 = vmatprep.subr.bf16.mxu0 0
        %3323 = vmatpush1.bf16.msra.mxu0 %v3290
        %3324 = vmatprep.subr.bf16.mxu0 0
        %3325 = vmatpush1.bf16.msra.mxu0 %v3291
        %3326 = vmatprep.subr.bf16.mxu0 0
        %3327 = vmatpush1.bf16.msra.mxu0 %v3292
        %3328 = vmatprep.subr.bf16.mxu0 0
        %3329 = vmatpush1.bf16.msra.mxu0 %v3293
        %3330 = vmatprep.subr.bf16.mxu0 0
        %3331 = vmatpush1.bf16.msra.mxu0 %v3294
        %3332 = vmatprep.subr.bf16.mxu0 0
        %3333 = vmatpush1.bf16.msra.mxu0 %v3295
        %3334 = vmatprep.subr.bf16.mxu0 0
        %3335 = vmatpush1.bf16.msra.mxu0 %v3296
        %3336 = vmatprep.subr.bf16.mxu0 0
        %3337 = vmatpush1.bf16.msra.mxu0 %v3297
        %3338 = vmatprep.subr.bf16.mxu0 0
        %3339 = vmatpush1.bf16.msra.mxu0 %v3298
        %3340 = vmatprep.subr.bf16.mxu0 0
        %3341 = vmatpush1.bf16.msra.mxu0 %v3299
        %3342 = vmatprep.subr.bf16.mxu0 0
        %3343 = vmatpush1.bf16.msra.mxu0 %v3300
        %3344 = vmatprep.subr.bf16.mxu0 0
        %3345 = vmatpush1.bf16.msra.mxu0 %v3301
        %3346 = vmatprep.subr.bf16.mxu0 0
        %3347 = vmatpush1.bf16.msra.mxu0 %v3302
        %3348 = vmatprep.subr.bf16.mxu0 0
        %3349 = vmatpush1.bf16.msra.mxu0 %v3303
        %3350 = vmatprep.subr.bf16.mxu0 0
        %3351 = vmatpush1.bf16.msra.mxu0 %v3304
        %3352 = vmatprep.subr.bf16.mxu0 0
        %3353 = vmatpush1.bf16.msra.mxu0 %v3305
        %3354 = vmatprep.mubr.bf16.mxu0 %v2404
        %3355 = vmatmul.mubr.bf16.gmra.mrb[0].mxu0 %v2403
        %v3356 = vpop.f32.mrb[0].mxu0
        %v3357 = vadd.f32 %v2631, %v3356
        %v3358 = vpop.f32.mrb[0].mxu0
        %v3359 = vpop.f32.mrb[0].mxu0
        %v3360 = vadd.f32 %v2634, %v3359
        %v3361 = vpop.f32.mrb[0].mxu0
        %3362 = vmatprep.mubr.bf16.mxu0 %v2406
        %3363 = vmatmul.mubr.bf16.gmra.mrb[0].mxu0 %v2405
        %v3364 = vpop.f32.mrb[0].mxu0
        %v3365 = vadd.f32 %v2639, %v3364
        %v3366 = vpop.f32.mrb[0].mxu0
        %v3367 = vpop.f32.mrb[0].mxu0
        %v3368 = vadd.f32 %v2642, %v3367
        %v3369 = vpop.f32.mrb[0].mxu0
        %3370 = vmatprep.mubr.bf16.mxu0 %v2408
        %3371 = vmatmul.mubr.bf16.gmra.mrb[0].mxu0 %v2407
        %v3372 = vpop.f32.mrb[0].mxu0
        %v3373 = vadd.f32 %v2647, %v3372
        %v3374 = vpop.f32.mrb[0].mxu0
        %v3375 = vpop.f32.mrb[0].mxu0
        %v3376 = vadd.f32 %v2650, %v3375
        %v3377 = vpop.f32.mrb[0].mxu0
        %3378 = vmatprep.mubr.bf16.mxu0 %v2410
        %3379 = vmatmul.mubr.bf16.gmra.mrb[0].mxu0 %v2409
        %v3380 = vpop.f32.mrb[0].mxu0
        %v3381 = vadd.f32 %v2655, %v3380
        %v3382 = vpop.f32.mrb[0].mxu0
        %v3383 = vpop.f32.mrb[0].mxu0
        %v3384 = vadd.f32 %v2658, %v3383
        %v3385 = vpop.f32.mrb[0].mxu0
        %3386 = vmatprep.mubr.bf16.mxu0 %v2412
        %3387 = vmatmul.mubr.bf16.gmra.mrb[0].mxu0 %v2411
        %v3388 = vpop.f32.mrb[0].mxu0
        %v3389 = vadd.f32 %v2663, %v3388
        %v3390 = vpop.f32.mrb[0].mxu0
        %v3391 = vpop.f32.mrb[0].mxu0
        %v3392 = vadd.f32 %v2666, %v3391
        %v3393 = vpop.f32.mrb[0].mxu0
        %3394 = vmatprep.mubr.bf16.mxu0 %v2414
        %3395 = vmatmul.mubr.bf16.gmra.mrb[0].mxu0 %v2413
        %v3396 = vpop.f32.mrb[0].mxu0
        %v3397 = vadd.f32 %v2671, %v3396
        %v3398 = vpop.f32.mrb[0].mxu0
        %v3399 = vpop.f32.mrb[0].mxu0
        %v3400 = vadd.f32 %v2674, %v3399
        %v3401 = vpop.f32.mrb[0].mxu0
        %3402 = vmatprep.mubr.bf16.mxu0 %v2416
        %3403 = vmatmul.mubr.bf16.gmra.mrb[0].mxu0 %v2415
        %v3404 = vpop.f32.mrb[0].mxu0
        %v3405 = vadd.f32 %v2679, %v3404
        %v3406 = vpop.f32.mrb[0].mxu0
        %v3407 = vpop.f32.mrb[0].mxu0
        %v3408 = vadd.f32 %v2682, %v3407
        %v3409 = vpop.f32.mrb[0].mxu0
        %3410 = vmatprep.mubr.bf16.mxu0 %v2418
        %3411 = vmatmul.mubr.bf16.gmra.mrb[0].mxu0 %v2417
        %v3412 = vpop.f32.mrb[0].mxu0
        %v3413 = vadd.f32 %v2687, %v3412
        %v3414 = vpop.f32.mrb[0].mxu0
        %v3415 = vpop.f32.mrb[0].mxu0
        %v3416 = vadd.f32 %v2690, %v3415
        %v3417 = vpop.f32.mrb[0].mxu0
        %3418 = vdwg.mxu0
        %v3451 = vunpack.c.l.b16 %v2710
        %v3452 = vunpack.c.l.b16 %v2711
        %v3453 = vunpack.c.l.b16 %v2712
        %v3454 = vunpack.c.l.b16 %v2713
        %v3455 = vunpack.c.l.b16 %v2714
        %v3456 = vunpack.c.l.b16 %v2715
        %v3457 = vunpack.c.l.b16 %v2716
        %v3458 = vunpack.c.l.b16 %v2717
        %v3459 = vunpack.c.l.b16 %v2718
        %v3460 = vunpack.c.l.b16 %v2719
        %v3461 = vunpack.c.l.b16 %v2720
        %v3462 = vunpack.c.l.b16 %v2721
        %v3463 = vunpack.c.l.b16 %v2722
        %v3464 = vunpack.c.l.b16 %v2723
        %v3465 = vunpack.c.l.b16 %v2724
        %v3466 = vunpack.c.l.b16 %v2725
        %v3467 = vunpack.c.l.b16 %v2726
        %v3468 = vunpack.c.l.b16 %v2727
        %v3469 = vunpack.c.l.b16 %v2728
        %v3470 = vunpack.c.l.b16 %v2729
        %v3471 = vunpack.c.l.b16 %v2730
        %v3472 = vunpack.c.l.b16 %v2731
        %v3473 = vunpack.c.l.b16 %v2732
        %v3474 = vunpack.c.l.b16 %v2733
        %v3475 = vunpack.c.l.b16 %v2734
        %v3476 = vunpack.c.l.b16 %v2735
        %v3477 = vunpack.c.l.b16 %v2736
        %v3478 = vunpack.c.l.b16 %v2737
        %v3479 = vunpack.c.l.b16 %v2738
        %v3480 = vunpack.c.l.b16 %v2739
        %v3481 = vunpack.c.l.b16 %v2740
        %v3482 = vunpack.c.l.b16 %v2741
        %v3483 = vpack.c.b16 %v3452, %v3451
        %v3484 = vpack.c.b16 %v3454, %v3453
        %v3485 = vpack.c.b16 %v3456, %v3455
        %v3486 = vpack.c.b16 %v3458, %v3457
        %v3487 = vpack.c.b16 %v3460, %v3459
        %v3488 = vpack.c.b16 %v3462, %v3461
        %v3489 = vpack.c.b16 %v3464, %v3463
        %v3490 = vpack.c.b16 %v3466, %v3465
        %v3491 = vpack.c.b16 %v3468, %v3467
        %v3492 = vpack.c.b16 %v3470, %v3469
        %v3493 = vpack.c.b16 %v3472, %v3471
        %v3494 = vpack.c.b16 %v3474, %v3473
        %v3495 = vpack.c.b16 %v3476, %v3475
        %v3496 = vpack.c.b16 %v3478, %v3477
        %v3497 = vpack.c.b16 %v3480, %v3479
        %v3498 = vpack.c.b16 %v3482, %v3481
        %3515 = vmatprep.subr.bf16.mxu0 0
        %3516 = vmatpush1.bf16.msra.mxu0 %v3483
        %3517 = vmatprep.subr.bf16.mxu0 0
        %3518 = vmatpush1.bf16.msra.mxu0 %v3484
        %3519 = vmatprep.subr.bf16.mxu0 0
        %3520 = vmatpush1.bf16.msra.mxu0 %v3485
        %3521 = vmatprep.subr.bf16.mxu0 0
        %3522 = vmatpush1.bf16.msra.mxu0 %v3486
        %3523 = vmatprep.subr.bf16.mxu0 0
        %3524 = vmatpush1.bf16.msra.mxu0 %v3487
        %3525 = vmatprep.subr.bf16.mxu0 0
        %3526 = vmatpush1.bf16.msra.mxu0 %v3488
        %3527 = vmatprep.subr.bf16.mxu0 0
        %3528 = vmatpush1.bf16.msra.mxu0 %v3489
        %3529 = vmatprep.subr.bf16.mxu0 0
        %3530 = vmatpush1.bf16.msra.mxu0 %v3490
        %3531 = vmatprep.subr.bf16.mxu0 0
        %3532 = vmatpush1.bf16.msra.mxu0 %v3491
        %3533 = vmatprep.subr.bf16.mxu0 0
        %3534 = vmatpush1.bf16.msra.mxu0 %v3492
        %3535 = vmatprep.subr.bf16.mxu0 0
        %3536 = vmatpush1.bf16.msra.mxu0 %v3493
        %3537 = vmatprep.subr.bf16.mxu0 0
        %3538 = vmatpush1.bf16.msra.mxu0 %v3494
        %3539 = vmatprep.subr.bf16.mxu0 0
        %3540 = vmatpush1.bf16.msra.mxu0 %v3495
        %3541 = vmatprep.subr.bf16.mxu0 0
        %3542 = vmatpush1.bf16.msra.mxu0 %v3496
        %3543 = vmatprep.subr.bf16.mxu0 0
        %3544 = vmatpush1.bf16.msra.mxu0 %v3497
        %3545 = vmatprep.subr.bf16.mxu0 0
        %3546 = vmatpush1.bf16.msra.mxu0 %v3498
        %3547 = vmatprep.mubr.bf16.mxu0 %v2694
        %3548 = vmatmul.mubr.bf16.gmra.mrb[0].mxu0 %v2693
        %v3549 = vpop.f32.mrb[0].mxu0
        %v3550 = vadd.f32 %v2922, %v3549
        %v3551 = vpop.f32.mrb[0].mxu0
        %v3552 = vpop.f32.mrb[0].mxu0
        %v3553 = vadd.f32 %v2925, %v3552
        %v3554 = vpop.f32.mrb[0].mxu0
        %3555 = vmatprep.mubr.bf16.mxu0 %v2696
        %3556 = vmatmul.mubr.bf16.gmra.mrb[0].mxu0 %v2695
        %v3557 = vpop.f32.mrb[0].mxu0
        %v3558 = vadd.f32 %v2930, %v3557
        %v3559 = vpop.f32.mrb[0].mxu0
        %v3560 = vpop.f32.mrb[0].mxu0
        %v3561 = vadd.f32 %v2933, %v3560
        %v3562 = vpop.f32.mrb[0].mxu0
        %3563 = vmatprep.mubr.bf16.mxu0 %v2698
        %3564 = vmatmul.mubr.bf16.gmra.mrb[0].mxu0 %v2697
        %v3565 = vpop.f32.mrb[0].mxu0
        %v3566 = vadd.f32 %v2938, %v3565
        %v3567 = vpop.f32.mrb[0].mxu0
        %v3568 = vpop.f32.mrb[0].mxu0
        %v3569 = vadd.f32 %v2941, %v3568
        %v3570 = vpop.f32.mrb[0].mxu0
        %3571 = vmatprep.mubr.bf16.mxu0 %v2700
        %3572 = vmatmul.mubr.bf16.gmra.mrb[0].mxu0 %v2699
        %v3573 = vpop.f32.mrb[0].mxu0
        %v3574 = vadd.f32 %v2946, %v3573
        %v3575 = vpop.f32.mrb[0].mxu0
        %v3576 = vpop.f32.mrb[0].mxu0
        %v3577 = vadd.f32 %v2949, %v3576
        %v3578 = vpop.f32.mrb[0].mxu0
        %3579 = vmatprep.mubr.bf16.mxu0 %v2702
        %3580 = vmatmul.mubr.bf16.gmra.mrb[0].mxu0 %v2701
        %v3581 = vpop.f32.mrb[0].mxu0
        %v3582 = vadd.f32 %v2954, %v3581
        %v3583 = vpop.f32.mrb[0].mxu0
        %v3584 = vpop.f32.mrb[0].mxu0
        %v3585 = vadd.f32 %v2957, %v3584
        %v3586 = vpop.f32.mrb[0].mxu0
        %3587 = vmatprep.mubr.bf16.mxu0 %v2704
        %3588 = vmatmul.mubr.bf16.gmra.mrb[0].mxu0 %v2703
        %v3589 = vpop.f32.mrb[0].mxu0
        %v3590 = vadd.f32 %v2962, %v3589
        %v3591 = vpop.f32.mrb[0].mxu0
        %v3592 = vpop.f32.mrb[0].mxu0
        %v3593 = vadd.f32 %v2965, %v3592
        %v3594 = vpop.f32.mrb[0].mxu0
        %3595 = vmatprep.mubr.bf16.mxu0 %v2706
        %3596 = vmatmul.mubr.bf16.gmra.mrb[0].mxu0 %v2705
        %v3597 = vpop.f32.mrb[0].mxu0
        %v3598 = vadd.f32 %v2970, %v3597
        %v3599 = vpop.f32.mrb[0].mxu0
        %v3600 = vpop.f32.mrb[0].mxu0
        %v3601 = vadd.f32 %v2973, %v3600
        %v3602 = vpop.f32.mrb[0].mxu0
        %3603 = vmatprep.mubr.bf16.mxu0 %v2708
        %3604 = vmatmul.mubr.bf16.gmra.mrb[0].mxu0 %v2707
        %v3605 = vpop.f32.mrb[0].mxu0
        %v3606 = vadd.f32 %v2978, %v3605
        %v3607 = vpop.f32.mrb[0].mxu0
        %v3608 = vpop.f32.mrb[0].mxu0
        %v3609 = vadd.f32 %v2981, %v3608
        %v3610 = vpop.f32.mrb[0].mxu0
        %3611 = vdwg.mxu0
        %v3612 = vadd.f32 %v3357, %v3550
        %v3613 = vadd.f32 %v3360, %v3553
        %v3614 = vadd.f32 %v3365, %v3558
        %v3615 = vadd.f32 %v3368, %v3561
        %v3616 = vadd.f32 %v3373, %v3566
        %v3617 = vadd.f32 %v3376, %v3569
        %v3618 = vadd.f32 %v3381, %v3574
        %v3619 = vadd.f32 %v3384, %v3577
        %v3620 = vadd.f32 %v3389, %v3582
        %v3621 = vadd.f32 %v3392, %v3585
        %v3622 = vadd.f32 %v3397, %v3590
        %v3623 = vadd.f32 %v3400, %v3593
        %v3624 = vadd.f32 %v3405, %v3598
        %v3625 = vadd.f32 %v3408, %v3601
        %v3626 = vadd.f32 %v3413, %v3606
        %v3627 = vadd.f32 %v3416, %v3609
        %v3628 = vadd.f32 %v3612, %v3164
        %v3629 = vadd.f32 %v3613, %v3167
        %v3630 = vadd.f32 %v3614, %v3172
        %v3631 = vadd.f32 %v3615, %v3175
        %v3632 = vadd.f32 %v3616, %v3180
        %v3633 = vadd.f32 %v3617, %v3183
        %v3634 = vadd.f32 %v3618, %v3188
        %v3635 = vadd.f32 %v3619, %v3191
        %v3636 = vadd.f32 %v3620, %v3196
        %v3637 = vadd.f32 %v3621, %v3199
        %v3638 = vadd.f32 %v3622, %v3204
        %v3639 = vadd.f32 %v3623, %v3207
        %v3640 = vadd.f32 %v3624, %v3212
        %v3641 = vadd.f32 %v3625, %v3215
        %v3642 = vadd.f32 %v3626, %v3220
        %v3643 = vadd.f32 %v3627, %v3223
        %v3644 = vtanh.pop %v3628
        %v3645 = vtanh.pop %v3629
        %v3646 = vtanh.pop %v3630
        %v3647 = vtanh.pop %v3631
        %v3648 = vtanh.pop %v3632
        %v3649 = vtanh.pop %v3633
        %v3650 = vtanh.pop %v3634
        %v3651 = vtanh.pop %v3635
        %v3652 = vtanh.pop %v3636
        %v3653 = vtanh.pop %v3637
        %v3654 = vtanh.pop %v3638
        %v3655 = vtanh.pop %v3639
        %v3656 = vtanh.pop %v3640
        %v3657 = vtanh.pop %v3641
        %v3658 = vtanh.pop %v3642
        %v3659 = vtanh.pop %v3643
        %v3660 = vpack.c.bf16 %v3645, %v3644
        %v3661 = vpack.c.bf16 %v3647, %v3646
        %v3662 = vpack.c.bf16 %v3649, %v3648
        %v3663 = vpack.c.bf16 %v3651, %v3650
        %v3664 = vpack.c.bf16 %v3653, %v3652
        %v3665 = vpack.c.bf16 %v3655, %v3654
        %v3666 = vpack.c.bf16 %v3657, %v3656
        %v3667 = vpack.c.bf16 %v3659, %v3658
        %v3668 = vld [vmem:[#allocation10] sm:$0xf]
        %v3669 = vld [vmem:[#allocation10 + $0x4] sm:$0xf]
        %v3670 = vld [vmem:[#allocation10 + $0x8] sm:$0xf]
        %v3671 = vld [vmem:[#allocation10 + $0xc] sm:$0xf]
        %v3672 = vld [vmem:[#allocation10 + $0x10] sm:$0xf]
        %v3673 = vld [vmem:[#allocation10 + $0x14] sm:$0xf]
        %v3674 = vld [vmem:[#allocation10 + $0x18] sm:$0xf]
        %v3675 = vld [vmem:[#allocation10 + $0x1c] sm:$0xf]
        %v3676 = vld [vmem:[#allocation10 + $0x20] sm:$0xf]
        %v3677 = vld [vmem:[#allocation10 + $0x24] sm:$0xf]
        %v3678 = vld [vmem:[#allocation10 + $0x28] sm:$0xf]
        %v3679 = vld [vmem:[#allocation10 + $0x2c] sm:$0xf]
        %v3680 = vld [vmem:[#allocation10 + $0x30] sm:$0xf]
        %v3681 = vld [vmem:[#allocation10 + $0x34] sm:$0xf]
        %v3682 = vld [vmem:[#allocation10 + $0x38] sm:$0xf]
        %v3683 = vld [vmem:[#allocation10 + $0x3c] sm:$0xf]
        %s3684 = scalar_lea.vmem [#allocation10], 64
        %v3685 = vld [vmem:[%s3684] sm:$0xf]
        %v3686 = vld [vmem:[%s3684 + $0x4] sm:$0xf]
        %v3687 = vld [vmem:[%s3684 + $0x8] sm:$0xf]
        %v3688 = vld [vmem:[%s3684 + $0xc] sm:$0xf]
        %v3689 = vld [vmem:[%s3684 + $0x10] sm:$0xf]
        %v3690 = vld [vmem:[%s3684 + $0x14] sm:$0xf]
        %v3691 = vld [vmem:[%s3684 + $0x18] sm:$0xf]
        %v3692 = vld [vmem:[%s3684 + $0x1c] sm:$0xf]
        %v3693 = vld [vmem:[%s3684 + $0x20] sm:$0xf]
        %v3694 = vld [vmem:[%s3684 + $0x24] sm:$0xf]
        %v3695 = vld [vmem:[%s3684 + $0x28] sm:$0xf]
        %v3696 = vld [vmem:[%s3684 + $0x2c] sm:$0xf]
        %v3697 = vld [vmem:[%s3684 + $0x30] sm:$0xf]
        %v3698 = vld [vmem:[%s3684 + $0x34] sm:$0xf]
        %v3699 = vld [vmem:[%s3684 + $0x38] sm:$0xf]
        %v3700 = vld [vmem:[%s3684 + $0x3c] sm:$0xf]
        %v3717 = vunpack.c.l.b16 %v3685
        %v3718 = vunpack.c.l.b16 %v3686
        %v3719 = vunpack.c.l.b16 %v3687
        %v3720 = vunpack.c.l.b16 %v3688
        %v3721 = vunpack.c.l.b16 %v3689
        %v3722 = vunpack.c.l.b16 %v3690
        %v3723 = vunpack.c.l.b16 %v3691
        %v3724 = vunpack.c.l.b16 %v3692
        %v3725 = vunpack.c.l.b16 %v3693
        %v3726 = vunpack.c.l.b16 %v3694
        %v3727 = vunpack.c.l.b16 %v3695
        %v3728 = vunpack.c.l.b16 %v3696
        %v3729 = vunpack.c.l.b16 %v3697
        %v3730 = vunpack.c.l.b16 %v3698
        %v3731 = vunpack.c.l.b16 %v3699
        %v3732 = vunpack.c.l.b16 %v3700
        %v3733 = vpack.c.b16 %v3718, %v3717
        %v3734 = vpack.c.b16 %v3720, %v3719
        %v3735 = vpack.c.b16 %v3722, %v3721
        %v3736 = vpack.c.b16 %v3724, %v3723
        %v3737 = vpack.c.b16 %v3726, %v3725
        %v3738 = vpack.c.b16 %v3728, %v3727
        %v3739 = vpack.c.b16 %v3730, %v3729
        %v3740 = vpack.c.b16 %v3732, %v3731
        %3749 = vmatprep.subr.bf16.mxu0 0
        %3750 = vmatpush1.bf16.msra.mxu0 %v3733
        %3751 = vmatprep.subr.bf16.mxu0 0
        %3752 = vmatpush1.bf16.msra.mxu0 %v3734
        %3753 = vmatprep.subr.bf16.mxu0 0
        %3754 = vmatpush1.bf16.msra.mxu0 %v3735
        %3755 = vmatprep.subr.bf16.mxu0 0
        %3756 = vmatpush1.bf16.msra.mxu0 %v3736
        %3757 = vmatprep.subr.bf16.mxu0 0
        %3758 = vmatpush1.bf16.msra.mxu0 %v3737
        %3759 = vmatprep.subr.bf16.mxu0 0
        %3760 = vmatpush1.bf16.msra.mxu0 %v3738
        %3761 = vmatprep.subr.bf16.mxu0 0
        %3762 = vmatpush1.bf16.msra.mxu0 %v3739
        %3763 = vmatprep.subr.bf16.mxu0 0
        %3764 = vmatpush1.bf16.msra.mxu0 %v3740
        %3765 = vmatprep.subr.bf16.mxu0 0
        %3766 = vmatpush1.bf16.msra.mxu0 0
        %3767 = vmatprep.subr.bf16.mxu0 0
        %3768 = vmatpush1.bf16.msra.mxu0 0
        %3769 = vmatprep.subr.bf16.mxu0 0
        %3770 = vmatpush1.bf16.msra.mxu0 0
        %3771 = vmatprep.subr.bf16.mxu0 0
        %3772 = vmatpush1.bf16.msra.mxu0 0
        %3773 = vmatprep.subr.bf16.mxu0 0
        %3774 = vmatpush1.bf16.msra.mxu0 0
        %3775 = vmatprep.subr.bf16.mxu0 0
        %3776 = vmatpush1.bf16.msra.mxu0 0
        %3777 = vmatprep.subr.bf16.mxu0 0
        %3778 = vmatpush1.bf16.msra.mxu0 0
        %3779 = vmatprep.subr.bf16.mxu0 0
        %3780 = vmatpush1.bf16.msra.mxu0 0
        %3781 = vmatprep.mubr.bf16.mxu0 0
        %3782 = vmatmul.mubr.bf16.gmra.mrb[0].mxu0 %v3661
        %v3783 = vpop.f32.mrb[0].mxu0
        %v3784 = vadd.f32 0.0, %v3783
        %v3785 = vpop.f32.mrb[0].mxu0
        %v3786 = vpop.f32.mrb[0].mxu0
        %v3787 = vadd.f32 0.0, %v3786
        %v3788 = vpop.f32.mrb[0].mxu0
        %3789 = vdwg.mxu0
        %s3790 = scalar_lea.vmem [#allocation10], 128
        %v3791 = vld [vmem:[%s3790] sm:$0xf]
        %v3792 = vld [vmem:[%s3790 + $0x4] sm:$0xf]
        %v3793 = vld [vmem:[%s3790 + $0x8] sm:$0xf]
        %v3794 = vld [vmem:[%s3790 + $0xc] sm:$0xf]
        %v3795 = vld [vmem:[%s3790 + $0x10] sm:$0xf]
        %v3796 = vld [vmem:[%s3790 + $0x14] sm:$0xf]
        %v3797 = vld [vmem:[%s3790 + $0x18] sm:$0xf]
        %v3798 = vld [vmem:[%s3790 + $0x1c] sm:$0xf]
        %v3799 = vld [vmem:[%s3790 + $0x20] sm:$0xf]
        %v3800 = vld [vmem:[%s3790 + $0x24] sm:$0xf]
        %v3801 = vld [vmem:[%s3790 + $0x28] sm:$0xf]
        %v3802 = vld [vmem:[%s3790 + $0x2c] sm:$0xf]
        %v3803 = vld [vmem:[%s3790 + $0x30] sm:$0xf]
        %v3804 = vld [vmem:[%s3790 + $0x34] sm:$0xf]
        %v3805 = vld [vmem:[%s3790 + $0x38] sm:$0xf]
        %v3806 = vld [vmem:[%s3790 + $0x3c] sm:$0xf]
        %s3807 = scalar_lea.vmem [#allocation10], 192
        %v3808 = vld [vmem:[%s3807] sm:$0xf]
        %v3809 = vld [vmem:[%s3807 + $0x4] sm:$0xf]
        %v3810 = vld [vmem:[%s3807 + $0x8] sm:$0xf]
        %v3811 = vld [vmem:[%s3807 + $0xc] sm:$0xf]
        %v3812 = vld [vmem:[%s3807 + $0x10] sm:$0xf]
        %v3813 = vld [vmem:[%s3807 + $0x14] sm:$0xf]
        %v3814 = vld [vmem:[%s3807 + $0x18] sm:$0xf]
        %v3815 = vld [vmem:[%s3807 + $0x1c] sm:$0xf]
        %v3816 = vld [vmem:[%s3807 + $0x20] sm:$0xf]
        %v3817 = vld [vmem:[%s3807 + $0x24] sm:$0xf]
        %v3818 = vld [vmem:[%s3807 + $0x28] sm:$0xf]
        %v3819 = vld [vmem:[%s3807 + $0x2c] sm:$0xf]
        %v3820 = vld [vmem:[%s3807 + $0x30] sm:$0xf]
        %v3821 = vld [vmem:[%s3807 + $0x34] sm:$0xf]
        %v3822 = vld [vmem:[%s3807 + $0x38] sm:$0xf]
        %v3823 = vld [vmem:[%s3807 + $0x3c] sm:$0xf]
        %v3840 = vunpack.c.l.b16 %v3808
        %v3841 = vunpack.c.l.b16 %v3809
        %v3842 = vunpack.c.l.b16 %v3810
        %v3843 = vunpack.c.l.b16 %v3811
        %v3844 = vunpack.c.l.b16 %v3812
        %v3845 = vunpack.c.l.b16 %v3813
        %v3846 = vunpack.c.l.b16 %v3814
        %v3847 = vunpack.c.l.b16 %v3815
        %v3848 = vunpack.c.l.b16 %v3816
        %v3849 = vunpack.c.l.b16 %v3817
        %v3850 = vunpack.c.l.b16 %v3818
        %v3851 = vunpack.c.l.b16 %v3819
        %v3852 = vunpack.c.l.b16 %v3820
        %v3853 = vunpack.c.l.b16 %v3821
        %v3854 = vunpack.c.l.b16 %v3822
        %v3855 = vunpack.c.l.b16 %v3823
        %v3856 = vpack.c.b16 %v3841, %v3840
        %v3857 = vpack.c.b16 %v3843, %v3842
        %v3858 = vpack.c.b16 %v3845, %v3844
        %v3859 = vpack.c.b16 %v3847, %v3846
        %v3860 = vpack.c.b16 %v3849, %v3848
        %v3861 = vpack.c.b16 %v3851, %v3850
        %v3862 = vpack.c.b16 %v3853, %v3852
        %v3863 = vpack.c.b16 %v3855, %v3854
        %3872 = vmatprep.subr.bf16.mxu0 0
        %3873 = vmatpush1.bf16.msra.mxu0 %v3856
        %3874 = vmatprep.subr.bf16.mxu0 0
        %3875 = vmatpush1.bf16.msra.mxu0 %v3857
        %3876 = vmatprep.subr.bf16.mxu0 0
        %3877 = vmatpush1.bf16.msra.mxu0 %v3858
        %3878 = vmatprep.subr.bf16.mxu0 0
        %3879 = vmatpush1.bf16.msra.mxu0 %v3859
        %3880 = vmatprep.subr.bf16.mxu0 0
        %3881 = vmatpush1.bf16.msra.mxu0 %v3860
        %3882 = vmatprep.subr.bf16.mxu0 0
        %3883 = vmatpush1.bf16.msra.mxu0 %v3861
        %3884 = vmatprep.subr.bf16.mxu0 0
        %3885 = vmatpush1.bf16.msra.mxu0 %v3862
        %3886 = vmatprep.subr.bf16.mxu0 0
        %3887 = vmatpush1.bf16.msra.mxu0 %v3863
        %3888 = vmatprep.subr.bf16.mxu0 0
        %3889 = vmatpush1.bf16.msra.mxu0 0
        %3890 = vmatprep.subr.bf16.mxu0 0
        %3891 = vmatpush1.bf16.msra.mxu0 0
        %3892 = vmatprep.subr.bf16.mxu0 0
        %3893 = vmatpush1.bf16.msra.mxu0 0
        %3894 = vmatprep.subr.bf16.mxu0 0
        %3895 = vmatpush1.bf16.msra.mxu0 0
        %3896 = vmatprep.subr.bf16.mxu0 0
        %3897 = vmatpush1.bf16.msra.mxu0 0
        %3898 = vmatprep.subr.bf16.mxu0 0
        %3899 = vmatpush1.bf16.msra.mxu0 0
        %3900 = vmatprep.subr.bf16.mxu0 0
        %3901 = vmatpush1.bf16.msra.mxu0 0
        %3902 = vmatprep.subr.bf16.mxu0 0
        %3903 = vmatpush1.bf16.msra.mxu0 0
        %3904 = vmatprep.mubr.bf16.mxu0 0
        %3905 = vmatmul.mubr.bf16.gmra.mrb[0].mxu0 %v3663
        %v3906 = vpop.f32.mrb[0].mxu0
        %v3907 = vadd.f32 0.0, %v3906
        %v3908 = vpop.f32.mrb[0].mxu0
        %v3909 = vpop.f32.mrb[0].mxu0
        %v3910 = vadd.f32 0.0, %v3909
        %v3911 = vpop.f32.mrb[0].mxu0
        %3912 = vdwg.mxu0
        %s3913 = scalar_lea.vmem [#allocation10], 256
        %v3914 = vld [vmem:[%s3913] sm:$0xf]
        %v3915 = vld [vmem:[%s3913 + $0x4] sm:$0xf]
        %v3916 = vld [vmem:[%s3913 + $0x8] sm:$0xf]
        %v3917 = vld [vmem:[%s3913 + $0xc] sm:$0xf]
        %v3918 = vld [vmem:[%s3913 + $0x10] sm:$0xf]
        %v3919 = vld [vmem:[%s3913 + $0x14] sm:$0xf]
        %v3920 = vld [vmem:[%s3913 + $0x18] sm:$0xf]
        %v3921 = vld [vmem:[%s3913 + $0x1c] sm:$0xf]
        %v3922 = vld [vmem:[%s3913 + $0x20] sm:$0xf]
        %v3923 = vld [vmem:[%s3913 + $0x24] sm:$0xf]
        %v3924 = vld [vmem:[%s3913 + $0x28] sm:$0xf]
        %v3925 = vld [vmem:[%s3913 + $0x2c] sm:$0xf]
        %v3926 = vld [vmem:[%s3913 + $0x30] sm:$0xf]
        %v3927 = vld [vmem:[%s3913 + $0x34] sm:$0xf]
        %v3928 = vld [vmem:[%s3913 + $0x38] sm:$0xf]
        %v3929 = vld [vmem:[%s3913 + $0x3c] sm:$0xf]
        %s3930 = scalar_lea.vmem [#allocation10], 320
        %v3931 = vld [vmem:[%s3930] sm:$0xf]
        %v3932 = vld [vmem:[%s3930 + $0x4] sm:$0xf]
        %v3933 = vld [vmem:[%s3930 + $0x8] sm:$0xf]
        %v3934 = vld [vmem:[%s3930 + $0xc] sm:$0xf]
        %v3935 = vld [vmem:[%s3930 + $0x10] sm:$0xf]
        %v3936 = vld [vmem:[%s3930 + $0x14] sm:$0xf]
        %v3937 = vld [vmem:[%s3930 + $0x18] sm:$0xf]
        %v3938 = vld [vmem:[%s3930 + $0x1c] sm:$0xf]
        %v3939 = vld [vmem:[%s3930 + $0x20] sm:$0xf]
        %v3940 = vld [vmem:[%s3930 + $0x24] sm:$0xf]
        %v3941 = vld [vmem:[%s3930 + $0x28] sm:$0xf]
        %v3942 = vld [vmem:[%s3930 + $0x2c] sm:$0xf]
        %v3943 = vld [vmem:[%s3930 + $0x30] sm:$0xf]
        %v3944 = vld [vmem:[%s3930 + $0x34] sm:$0xf]
        %v3945 = vld [vmem:[%s3930 + $0x38] sm:$0xf]
        %v3946 = vld [vmem:[%s3930 + $0x3c] sm:$0xf]
        %v3963 = vunpack.c.l.b16 %v3931
        %v3964 = vunpack.c.l.b16 %v3932
        %v3965 = vunpack.c.l.b16 %v3933
        %v3966 = vunpack.c.l.b16 %v3934
        %v3967 = vunpack.c.l.b16 %v3935
        %v3968 = vunpack.c.l.b16 %v3936
        %v3969 = vunpack.c.l.b16 %v3937
        %v3970 = vunpack.c.l.b16 %v3938
        %v3971 = vunpack.c.l.b16 %v3939
        %v3972 = vunpack.c.l.b16 %v3940
        %v3973 = vunpack.c.l.b16 %v3941
        %v3974 = vunpack.c.l.b16 %v3942
        %v3975 = vunpack.c.l.b16 %v3943
        %v3976 = vunpack.c.l.b16 %v3944
        %v3977 = vunpack.c.l.b16 %v3945
        %v3978 = vunpack.c.l.b16 %v3946
        %v3979 = vpack.c.b16 %v3964, %v3963
        %v3980 = vpack.c.b16 %v3966, %v3965
        %v3981 = vpack.c.b16 %v3968, %v3967
        %v3982 = vpack.c.b16 %v3970, %v3969
        %v3983 = vpack.c.b16 %v3972, %v3971
        %v3984 = vpack.c.b16 %v3974, %v3973
        %v3985 = vpack.c.b16 %v3976, %v3975
        %v3986 = vpack.c.b16 %v3978, %v3977
        %3995 = vmatprep.subr.bf16.mxu0 0
        %3996 = vmatpush1.bf16.msra.mxu0 %v3979
        %3997 = vmatprep.subr.bf16.mxu0 0
        %3998 = vmatpush1.bf16.msra.mxu0 %v3980
        %3999 = vmatprep.subr.bf16.mxu0 0
        %4000 = vmatpush1.bf16.msra.mxu0 %v3981
        %4001 = vmatprep.subr.bf16.mxu0 0
        %4002 = vmatpush1.bf16.msra.mxu0 %v3982
        %4003 = vmatprep.subr.bf16.mxu0 0
        %4004 = vmatpush1.bf16.msra.mxu0 %v3983
        %4005 = vmatprep.subr.bf16.mxu0 0
        %4006 = vmatpush1.bf16.msra.mxu0 %v3984
        %4007 = vmatprep.subr.bf16.mxu0 0
        %4008 = vmatpush1.bf16.msra.mxu0 %v3985
        %4009 = vmatprep.subr.bf16.mxu0 0
        %4010 = vmatpush1.bf16.msra.mxu0 %v3986
        %4011 = vmatprep.subr.bf16.mxu0 0
        %4012 = vmatpush1.bf16.msra.mxu0 0
        %4013 = vmatprep.subr.bf16.mxu0 0
        %4014 = vmatpush1.bf16.msra.mxu0 0
        %4015 = vmatprep.subr.bf16.mxu0 0
        %4016 = vmatpush1.bf16.msra.mxu0 0
        %4017 = vmatprep.subr.bf16.mxu0 0
        %4018 = vmatpush1.bf16.msra.mxu0 0
        %4019 = vmatprep.subr.bf16.mxu0 0
        %4020 = vmatpush1.bf16.msra.mxu0 0
        %4021 = vmatprep.subr.bf16.mxu0 0
        %4022 = vmatpush1.bf16.msra.mxu0 0
        %4023 = vmatprep.subr.bf16.mxu0 0
        %4024 = vmatpush1.bf16.msra.mxu0 0
        %4025 = vmatprep.subr.bf16.mxu0 0
        %4026 = vmatpush1.bf16.msra.mxu0 0
        %4027 = vmatprep.mubr.bf16.mxu0 0
        %4028 = vmatmul.mubr.bf16.gmra.mrb[0].mxu0 %v3665
        %v4029 = vpop.f32.mrb[0].mxu0
        %v4030 = vadd.f32 0.0, %v4029
        %v4031 = vpop.f32.mrb[0].mxu0
        %v4032 = vpop.f32.mrb[0].mxu0
        %v4033 = vadd.f32 0.0, %v4032
        %v4034 = vpop.f32.mrb[0].mxu0
        %4035 = vdwg.mxu0
        %s4036 = scalar_lea.vmem [#allocation10], 384
        %v4037 = vld [vmem:[%s4036] sm:$0xf]
        %v4038 = vld [vmem:[%s4036 + $0x4] sm:$0xf]
        %v4039 = vld [vmem:[%s4036 + $0x8] sm:$0xf]
        %v4040 = vld [vmem:[%s4036 + $0xc] sm:$0xf]
        %v4041 = vld [vmem:[%s4036 + $0x10] sm:$0xf]
        %v4042 = vld [vmem:[%s4036 + $0x14] sm:$0xf]
        %v4043 = vld [vmem:[%s4036 + $0x18] sm:$0xf]
        %v4044 = vld [vmem:[%s4036 + $0x1c] sm:$0xf]
        %v4045 = vld [vmem:[%s4036 + $0x20] sm:$0xf]
        %v4046 = vld [vmem:[%s4036 + $0x24] sm:$0xf]
        %v4047 = vld [vmem:[%s4036 + $0x28] sm:$0xf]
        %v4048 = vld [vmem:[%s4036 + $0x2c] sm:$0xf]
        %v4049 = vld [vmem:[%s4036 + $0x30] sm:$0xf]
        %v4050 = vld [vmem:[%s4036 + $0x34] sm:$0xf]
        %v4051 = vld [vmem:[%s4036 + $0x38] sm:$0xf]
        %v4052 = vld [vmem:[%s4036 + $0x3c] sm:$0xf]
        %s4053 = scalar_lea.vmem [#allocation10], 448
        %v4054 = vld [vmem:[%s4053] sm:$0xf]
        %v4055 = vld [vmem:[%s4053 + $0x4] sm:$0xf]
        %v4056 = vld [vmem:[%s4053 + $0x8] sm:$0xf]
        %v4057 = vld [vmem:[%s4053 + $0xc] sm:$0xf]
        %v4058 = vld [vmem:[%s4053 + $0x10] sm:$0xf]
        %v4059 = vld [vmem:[%s4053 + $0x14] sm:$0xf]
        %v4060 = vld [vmem:[%s4053 + $0x18] sm:$0xf]
        %v4061 = vld [vmem:[%s4053 + $0x1c] sm:$0xf]
        %v4062 = vld [vmem:[%s4053 + $0x20] sm:$0xf]
        %v4063 = vld [vmem:[%s4053 + $0x24] sm:$0xf]
        %v4064 = vld [vmem:[%s4053 + $0x28] sm:$0xf]
        %v4065 = vld [vmem:[%s4053 + $0x2c] sm:$0xf]
        %v4066 = vld [vmem:[%s4053 + $0x30] sm:$0xf]
        %v4067 = vld [vmem:[%s4053 + $0x34] sm:$0xf]
        %v4068 = vld [vmem:[%s4053 + $0x38] sm:$0xf]
        %v4069 = vld [vmem:[%s4053 + $0x3c] sm:$0xf]
        %v4086 = vunpack.c.l.b16 %v4054
        %v4087 = vunpack.c.l.b16 %v4055
        %v4088 = vunpack.c.l.b16 %v4056
        %v4089 = vunpack.c.l.b16 %v4057
        %v4090 = vunpack.c.l.b16 %v4058
        %v4091 = vunpack.c.l.b16 %v4059
        %v4092 = vunpack.c.l.b16 %v4060
        %v4093 = vunpack.c.l.b16 %v4061
        %v4094 = vunpack.c.l.b16 %v4062
        %v4095 = vunpack.c.l.b16 %v4063
        %v4096 = vunpack.c.l.b16 %v4064
        %v4097 = vunpack.c.l.b16 %v4065
        %v4098 = vunpack.c.l.b16 %v4066
        %v4099 = vunpack.c.l.b16 %v4067
        %v4100 = vunpack.c.l.b16 %v4068
        %v4101 = vunpack.c.l.b16 %v4069
        %v4102 = vpack.c.b16 %v4087, %v4086
        %v4103 = vpack.c.b16 %v4089, %v4088
        %v4104 = vpack.c.b16 %v4091, %v4090
        %v4105 = vpack.c.b16 %v4093, %v4092
        %v4106 = vpack.c.b16 %v4095, %v4094
        %v4107 = vpack.c.b16 %v4097, %v4096
        %v4108 = vpack.c.b16 %v4099, %v4098
        %v4109 = vpack.c.b16 %v4101, %v4100
        %4118 = vmatprep.subr.bf16.mxu0 0
        %4119 = vmatpush1.bf16.msra.mxu0 %v4102
        %4120 = vmatprep.subr.bf16.mxu0 0
        %4121 = vmatpush1.bf16.msra.mxu0 %v4103
        %4122 = vmatprep.subr.bf16.mxu0 0
        %4123 = vmatpush1.bf16.msra.mxu0 %v4104
        %4124 = vmatprep.subr.bf16.mxu0 0
        %4125 = vmatpush1.bf16.msra.mxu0 %v4105
        %4126 = vmatprep.subr.bf16.mxu0 0
        %4127 = vmatpush1.bf16.msra.mxu0 %v4106
        %4128 = vmatprep.subr.bf16.mxu0 0
        %4129 = vmatpush1.bf16.msra.mxu0 %v4107
        %4130 = vmatprep.subr.bf16.mxu0 0
        %4131 = vmatpush1.bf16.msra.mxu0 %v4108
        %4132 = vmatprep.subr.bf16.mxu0 0
        %4133 = vmatpush1.bf16.msra.mxu0 %v4109
        %4134 = vmatprep.subr.bf16.mxu0 0
        %4135 = vmatpush1.bf16.msra.mxu0 0
        %4136 = vmatprep.subr.bf16.mxu0 0
        %4137 = vmatpush1.bf16.msra.mxu0 0
        %4138 = vmatprep.subr.bf16.mxu0 0
        %4139 = vmatpush1.bf16.msra.mxu0 0
        %4140 = vmatprep.subr.bf16.mxu0 0
        %4141 = vmatpush1.bf16.msra.mxu0 0
        %4142 = vmatprep.subr.bf16.mxu0 0
        %4143 = vmatpush1.bf16.msra.mxu0 0
        %4144 = vmatprep.subr.bf16.mxu0 0
        %4145 = vmatpush1.bf16.msra.mxu0 0
        %4146 = vmatprep.subr.bf16.mxu0 0
        %4147 = vmatpush1.bf16.msra.mxu0 0
        %4148 = vmatprep.subr.bf16.mxu0 0
        %4149 = vmatpush1.bf16.msra.mxu0 0
        %4150 = vmatprep.mubr.bf16.mxu0 0
        %4151 = vmatmul.mubr.bf16.gmra.mrb[0].mxu0 %v3667
        %v4152 = vpop.f32.mrb[0].mxu0
        %v4153 = vadd.f32 0.0, %v4152
        %v4154 = vpop.f32.mrb[0].mxu0
        %v4155 = vpop.f32.mrb[0].mxu0
        %v4156 = vadd.f32 0.0, %v4155
        %v4157 = vpop.f32.mrb[0].mxu0
        %4158 = vdwg.mxu0
        %v4175 = vunpack.c.l.b16 %v3668
        %v4176 = vunpack.c.l.b16 %v3669
        %v4177 = vunpack.c.l.b16 %v3670
        %v4178 = vunpack.c.l.b16 %v3671
        %v4179 = vunpack.c.l.b16 %v3672
        %v4180 = vunpack.c.l.b16 %v3673
        %v4181 = vunpack.c.l.b16 %v3674
        %v4182 = vunpack.c.l.b16 %v3675
        %v4183 = vunpack.c.l.b16 %v3676
        %v4184 = vunpack.c.l.b16 %v3677
        %v4185 = vunpack.c.l.b16 %v3678
        %v4186 = vunpack.c.l.b16 %v3679
        %v4187 = vunpack.c.l.b16 %v3680
        %v4188 = vunpack.c.l.b16 %v3681
        %v4189 = vunpack.c.l.b16 %v3682
        %v4190 = vunpack.c.l.b16 %v3683
        %v4191 = vpack.c.b16 %v4176, %v4175
        %v4192 = vpack.c.b16 %v4178, %v4177
        %v4193 = vpack.c.b16 %v4180, %v4179
        %v4194 = vpack.c.b16 %v4182, %v4181
        %v4195 = vpack.c.b16 %v4184, %v4183
        %v4196 = vpack.c.b16 %v4186, %v4185
        %v4197 = vpack.c.b16 %v4188, %v4187
        %v4198 = vpack.c.b16 %v4190, %v4189
        %4207 = vmatprep.subr.bf16.mxu0 0
        %4208 = vmatpush1.bf16.msra.mxu0 %v4191
        %4209 = vmatprep.subr.bf16.mxu0 0
        %4210 = vmatpush1.bf16.msra.mxu0 %v4192
        %4211 = vmatprep.subr.bf16.mxu0 0
        %4212 = vmatpush1.bf16.msra.mxu0 %v4193
        %4213 = vmatprep.subr.bf16.mxu0 0
        %4214 = vmatpush1.bf16.msra.mxu0 %v4194
        %4215 = vmatprep.subr.bf16.mxu0 0
        %4216 = vmatpush1.bf16.msra.mxu0 %v4195
        %4217 = vmatprep.subr.bf16.mxu0 0
        %4218 = vmatpush1.bf16.msra.mxu0 %v4196
        %4219 = vmatprep.subr.bf16.mxu0 0
        %4220 = vmatpush1.bf16.msra.mxu0 %v4197
        %4221 = vmatprep.subr.bf16.mxu0 0
        %4222 = vmatpush1.bf16.msra.mxu0 %v4198
        %4223 = vmatprep.subr.bf16.mxu0 0
        %4224 = vmatpush1.bf16.msra.mxu0 0
        %4225 = vmatprep.subr.bf16.mxu0 0
        %4226 = vmatpush1.bf16.msra.mxu0 0
        %4227 = vmatprep.subr.bf16.mxu0 0
        %4228 = vmatpush1.bf16.msra.mxu0 0
        %4229 = vmatprep.subr.bf16.mxu0 0
        %4230 = vmatpush1.bf16.msra.mxu0 0
        %4231 = vmatprep.subr.bf16.mxu0 0
        %4232 = vmatpush1.bf16.msra.mxu0 0
        %4233 = vmatprep.subr.bf16.mxu0 0
        %4234 = vmatpush1.bf16.msra.mxu0 0
        %4235 = vmatprep.subr.bf16.mxu0 0
        %4236 = vmatpush1.bf16.msra.mxu0 0
        %4237 = vmatprep.subr.bf16.mxu0 0
        %4238 = vmatpush1.bf16.msra.mxu0 0
        %4239 = vmatprep.mubr.bf16.mxu0 0
        %4240 = vmatmul.mubr.bf16.gmra.mrb[0].mxu0 %v3660
        %v4241 = vpop.f32.mrb[0].mxu0
        %v4242 = vadd.f32 %v3784, %v4241
        %v4243 = vpop.f32.mrb[0].mxu0
        %v4244 = vpop.f32.mrb[0].mxu0
        %v4245 = vadd.f32 %v3787, %v4244
        %v4246 = vpop.f32.mrb[0].mxu0
        %4247 = vdwg.mxu0
        %v4264 = vunpack.c.l.b16 %v3791
        %v4265 = vunpack.c.l.b16 %v3792
        %v4266 = vunpack.c.l.b16 %v3793
        %v4267 = vunpack.c.l.b16 %v3794
        %v4268 = vunpack.c.l.b16 %v3795
        %v4269 = vunpack.c.l.b16 %v3796
        %v4270 = vunpack.c.l.b16 %v3797
        %v4271 = vunpack.c.l.b16 %v3798
        %v4272 = vunpack.c.l.b16 %v3799
        %v4273 = vunpack.c.l.b16 %v3800
        %v4274 = vunpack.c.l.b16 %v3801
        %v4275 = vunpack.c.l.b16 %v3802
        %v4276 = vunpack.c.l.b16 %v3803
        %v4277 = vunpack.c.l.b16 %v3804
        %v4278 = vunpack.c.l.b16 %v3805
        %v4279 = vunpack.c.l.b16 %v3806
        %v4280 = vpack.c.b16 %v4265, %v4264
        %v4281 = vpack.c.b16 %v4267, %v4266
        %v4282 = vpack.c.b16 %v4269, %v4268
        %v4283 = vpack.c.b16 %v4271, %v4270
        %v4284 = vpack.c.b16 %v4273, %v4272
        %v4285 = vpack.c.b16 %v4275, %v4274
        %v4286 = vpack.c.b16 %v4277, %v4276
        %v4287 = vpack.c.b16 %v4279, %v4278
        %4296 = vmatprep.subr.bf16.mxu0 0
        %4297 = vmatpush1.bf16.msra.mxu0 %v4280
        %4298 = vmatprep.subr.bf16.mxu0 0
        %4299 = vmatpush1.bf16.msra.mxu0 %v4281
        %4300 = vmatprep.subr.bf16.mxu0 0
        %4301 = vmatpush1.bf16.msra.mxu0 %v4282
        %4302 = vmatprep.subr.bf16.mxu0 0
        %4303 = vmatpush1.bf16.msra.mxu0 %v4283
        %4304 = vmatprep.subr.bf16.mxu0 0
        %4305 = vmatpush1.bf16.msra.mxu0 %v4284
        %4306 = vmatprep.subr.bf16.mxu0 0
        %4307 = vmatpush1.bf16.msra.mxu0 %v4285
        %4308 = vmatprep.subr.bf16.mxu0 0
        %4309 = vmatpush1.bf16.msra.mxu0 %v4286
        %4310 = vmatprep.subr.bf16.mxu0 0
        %4311 = vmatpush1.bf16.msra.mxu0 %v4287
        %4312 = vmatprep.subr.bf16.mxu0 0
        %4313 = vmatpush1.bf16.msra.mxu0 0
        %4314 = vmatprep.subr.bf16.mxu0 0
        %4315 = vmatpush1.bf16.msra.mxu0 0
        %4316 = vmatprep.subr.bf16.mxu0 0
        %4317 = vmatpush1.bf16.msra.mxu0 0
        %4318 = vmatprep.subr.bf16.mxu0 0
        %4319 = vmatpush1.bf16.msra.mxu0 0
        %4320 = vmatprep.subr.bf16.mxu0 0
        %4321 = vmatpush1.bf16.msra.mxu0 0
        %4322 = vmatprep.subr.bf16.mxu0 0
        %4323 = vmatpush1.bf16.msra.mxu0 0
        %4324 = vmatprep.subr.bf16.mxu0 0
        %4325 = vmatpush1.bf16.msra.mxu0 0
        %4326 = vmatprep.subr.bf16.mxu0 0
        %4327 = vmatpush1.bf16.msra.mxu0 0
        %4328 = vmatprep.mubr.bf16.mxu0 0
        %4329 = vmatmul.mubr.bf16.gmra.mrb[0].mxu0 %v3662
        %v4330 = vpop.f32.mrb[0].mxu0
        %v4331 = vadd.f32 %v3907, %v4330
        %v4332 = vpop.f32.mrb[0].mxu0
        %v4333 = vpop.f32.mrb[0].mxu0
        %v4334 = vadd.f32 %v3910, %v4333
        %v4335 = vpop.f32.mrb[0].mxu0
        %4336 = vdwg.mxu0
        %v4337 = vadd.f32 %v4242, %v4331
        %v4338 = vadd.f32 %v4245, %v4334
        %v4355 = vunpack.c.l.b16 %v3914
        %v4356 = vunpack.c.l.b16 %v3915
        %v4357 = vunpack.c.l.b16 %v3916
        %v4358 = vunpack.c.l.b16 %v3917
        %v4359 = vunpack.c.l.b16 %v3918
        %v4360 = vunpack.c.l.b16 %v3919
        %v4361 = vunpack.c.l.b16 %v3920
        %v4362 = vunpack.c.l.b16 %v3921
        %v4363 = vunpack.c.l.b16 %v3922
        %v4364 = vunpack.c.l.b16 %v3923
        %v4365 = vunpack.c.l.b16 %v3924
        %v4366 = vunpack.c.l.b16 %v3925
        %v4367 = vunpack.c.l.b16 %v3926
        %v4368 = vunpack.c.l.b16 %v3927
        %v4369 = vunpack.c.l.b16 %v3928
        %v4370 = vunpack.c.l.b16 %v3929
        %v4371 = vpack.c.b16 %v4356, %v4355
        %v4372 = vpack.c.b16 %v4358, %v4357
        %v4373 = vpack.c.b16 %v4360, %v4359
        %v4374 = vpack.c.b16 %v4362, %v4361
        %v4375 = vpack.c.b16 %v4364, %v4363
        %v4376 = vpack.c.b16 %v4366, %v4365
        %v4377 = vpack.c.b16 %v4368, %v4367
        %v4378 = vpack.c.b16 %v4370, %v4369
        %4387 = vmatprep.subr.bf16.mxu0 0
        %4388 = vmatpush1.bf16.msra.mxu0 %v4371
        %4389 = vmatprep.subr.bf16.mxu0 0
        %4390 = vmatpush1.bf16.msra.mxu0 %v4372
        %4391 = vmatprep.subr.bf16.mxu0 0
        %4392 = vmatpush1.bf16.msra.mxu0 %v4373
        %4393 = vmatprep.subr.bf16.mxu0 0
        %4394 = vmatpush1.bf16.msra.mxu0 %v4374
        %4395 = vmatprep.subr.bf16.mxu0 0
        %4396 = vmatpush1.bf16.msra.mxu0 %v4375
        %4397 = vmatprep.subr.bf16.mxu0 0
        %4398 = vmatpush1.bf16.msra.mxu0 %v4376
        %4399 = vmatprep.subr.bf16.mxu0 0
        %4400 = vmatpush1.bf16.msra.mxu0 %v4377
        %4401 = vmatprep.subr.bf16.mxu0 0
        %4402 = vmatpush1.bf16.msra.mxu0 %v4378
        %4403 = vmatprep.subr.bf16.mxu0 0
        %4404 = vmatpush1.bf16.msra.mxu0 0
        %4405 = vmatprep.subr.bf16.mxu0 0
        %4406 = vmatpush1.bf16.msra.mxu0 0
        %4407 = vmatprep.subr.bf16.mxu0 0
        %4408 = vmatpush1.bf16.msra.mxu0 0
        %4409 = vmatprep.subr.bf16.mxu0 0
        %4410 = vmatpush1.bf16.msra.mxu0 0
        %4411 = vmatprep.subr.bf16.mxu0 0
        %4412 = vmatpush1.bf16.msra.mxu0 0
        %4413 = vmatprep.subr.bf16.mxu0 0
        %4414 = vmatpush1.bf16.msra.mxu0 0
        %4415 = vmatprep.subr.bf16.mxu0 0
        %4416 = vmatpush1.bf16.msra.mxu0 0
        %4417 = vmatprep.subr.bf16.mxu0 0
        %4418 = vmatpush1.bf16.msra.mxu0 0
        %4419 = vmatprep.mubr.bf16.mxu0 0
        %4420 = vmatmul.mubr.bf16.gmra.mrb[0].mxu0 %v3664
        %v4421 = vpop.f32.mrb[0].mxu0
        %v4422 = vadd.f32 %v4030, %v4421
        %v4423 = vpop.f32.mrb[0].mxu0
        %v4424 = vpop.f32.mrb[0].mxu0
        %v4425 = vadd.f32 %v4033, %v4424
        %v4426 = vpop.f32.mrb[0].mxu0
        %4427 = vdwg.mxu0
        %v4444 = vunpack.c.l.b16 %v4037
        %v4445 = vunpack.c.l.b16 %v4038
        %v4446 = vunpack.c.l.b16 %v4039
        %v4447 = vunpack.c.l.b16 %v4040
        %v4448 = vunpack.c.l.b16 %v4041
        %v4449 = vunpack.c.l.b16 %v4042
        %v4450 = vunpack.c.l.b16 %v4043
        %v4451 = vunpack.c.l.b16 %v4044
        %v4452 = vunpack.c.l.b16 %v4045
        %v4453 = vunpack.c.l.b16 %v4046
        %v4454 = vunpack.c.l.b16 %v4047
        %v4455 = vunpack.c.l.b16 %v4048
        %v4456 = vunpack.c.l.b16 %v4049
        %v4457 = vunpack.c.l.b16 %v4050
        %v4458 = vunpack.c.l.b16 %v4051
        %v4459 = vunpack.c.l.b16 %v4052
        %v4460 = vpack.c.b16 %v4445, %v4444
        %v4461 = vpack.c.b16 %v4447, %v4446
        %v4462 = vpack.c.b16 %v4449, %v4448
        %v4463 = vpack.c.b16 %v4451, %v4450
        %v4464 = vpack.c.b16 %v4453, %v4452
        %v4465 = vpack.c.b16 %v4455, %v4454
        %v4466 = vpack.c.b16 %v4457, %v4456
        %v4467 = vpack.c.b16 %v4459, %v4458
        %4476 = vmatprep.subr.bf16.mxu0 0
        %4477 = vmatpush1.bf16.msra.mxu0 %v4460
        %4478 = vmatprep.subr.bf16.mxu0 0
        %4479 = vmatpush1.bf16.msra.mxu0 %v4461
        %4480 = vmatprep.subr.bf16.mxu0 0
        %4481 = vmatpush1.bf16.msra.mxu0 %v4462
        %4482 = vmatprep.subr.bf16.mxu0 0
        %4483 = vmatpush1.bf16.msra.mxu0 %v4463
        %4484 = vmatprep.subr.bf16.mxu0 0
        %4485 = vmatpush1.bf16.msra.mxu0 %v4464
        %4486 = vmatprep.subr.bf16.mxu0 0
        %4487 = vmatpush1.bf16.msra.mxu0 %v4465
        %4488 = vmatprep.subr.bf16.mxu0 0
        %4489 = vmatpush1.bf16.msra.mxu0 %v4466
        %4490 = vmatprep.subr.bf16.mxu0 0
        %4491 = vmatpush1.bf16.msra.mxu0 %v4467
        %4492 = vmatprep.subr.bf16.mxu0 0
        %4493 = vmatpush1.bf16.msra.mxu0 0
        %4494 = vmatprep.subr.bf16.mxu0 0
        %4495 = vmatpush1.bf16.msra.mxu0 0
        %4496 = vmatprep.subr.bf16.mxu0 0
        %4497 = vmatpush1.bf16.msra.mxu0 0
        %4498 = vmatprep.subr.bf16.mxu0 0
        %4499 = vmatpush1.bf16.msra.mxu0 0
        %4500 = vmatprep.subr.bf16.mxu0 0
        %4501 = vmatpush1.bf16.msra.mxu0 0
        %4502 = vmatprep.subr.bf16.mxu0 0
        %4503 = vmatpush1.bf16.msra.mxu0 0
        %4504 = vmatprep.subr.bf16.mxu0 0
        %4505 = vmatpush1.bf16.msra.mxu0 0
        %4506 = vmatprep.subr.bf16.mxu0 0
        %4507 = vmatpush1.bf16.msra.mxu0 0
        %4508 = vmatprep.mubr.bf16.mxu0 0
        %4509 = vmatmul.mubr.bf16.gmra.mrb[0].mxu0 %v3666
        %v4510 = vpop.f32.mrb[0].mxu0
        %v4511 = vadd.f32 %v4153, %v4510
        %v4512 = vpop.f32.mrb[0].mxu0
        %v4513 = vpop.f32.mrb[0].mxu0
        %v4514 = vadd.f32 %v4156, %v4513
        %v4515 = vpop.f32.mrb[0].mxu0
        %4516 = vdwg.mxu0
        %v4517 = vadd.f32 %v4422, %v4511
        %v4518 = vadd.f32 %v4425, %v4514
        %v4519 = vadd.f32 %v4337, %v4517
        %v4520 = vadd.f32 %v4338, %v4518
        %v4521 = vld [vmem:[%s4] sm:$0x1]
        %v4523 = vlaneseq
        %v4524 = vshrl.u32 %v4523, 7
        %v4525 = vsub.s32 0, %v4524
        %v4526 = vrot.slane %v4521, %v4525
        %v4528 = vadd.f32 %v4519, %v4526
        %v4529 = vadd.f32 %v4520, %v4526
        %4530 = vst [vmem:[%s286] sm:$0xff] %v4528
        %4531 = vst [vmem:[%s286 + $0x8] sm:$0xff] %v4529
        %s4532 = sand.u32 %s142, 1
        %s4533 = scalar_lea.sflag [#allocation6], %s4532
        %s4534 = sand.u32 %s142, 1
        %s4535 = smul.addr %s4534, 16
        %s4536 = scalar_lea.vmem [#allocation12], %s4535
        // Predicated region
        $region57: #{tpu_custom_call.1} parent=39 // pred_check
          %p4537 = pneg %p152
        $region58: #{tpu_custom_call.1} parent=39 // pred_check_branch
          %4539 = sbr.rel (%p4537) target = $region60
        $region59: #{tpu_custom_call.1} parent=39 // pred_region
          %s4540 = smul.u32 2, %s24
          %s4542 = ssub.s32 256, 256
          %4543 = vsyncadd %s4533, %s4542
          %s4544 = smul.addr %s4540, 128
          %s4545 = scalar_lea.hbm %s5, %s4544
          %s4546 = sshll.u32 %s4536, 4
          %s4547 = int_to_ptr.vmem [resolvable:$true] %s4546
          %4552 = dma.vmem_to_hbm [thread:$0]  %s4547, 256, %s4545, %s4533, 128, 128, 8
        $region60: #{tpu_custom_call.1} parent=39 // pred_fallthru
          _
      $region40: #{tpu_custom_call.1} parent=5 // pred_fallthru
        _
      %p4553 = scmp.le.s32.totalorder 2, %s19
      // Predicated region
      $region61: #{tpu_custom_call.1} parent=5 // pred_check
        %p4554 = pneg %p4553
      $region62: #{tpu_custom_call.1} parent=5 // pred_check_branch
        %4556 = sbr.rel (%p4554) target = $region64
      $region63: #{tpu_custom_call.1} parent=5 // pred_region
        %s4557 = ssub.s32 %s19, 2
        // Predicated region
        $region65: #{tpu_custom_call.1} parent=63 // pred_check
          %p4558 = pneg %p158
        $region66: #{tpu_custom_call.1} parent=63 // pred_check_branch
          %4560 = sbr.rel (%p4558) target = $region68
        $region67: #{tpu_custom_call.1} parent=63 // pred_region
          %s4561 = sand.u32 %s143, 1
          %s4562 = scalar_lea.sflag [#allocation6], %s4561
          %s4563 = sand.u32 %s143, 1
          %s4564 = smul.addr %s4563, 16
          %s4565 = scalar_lea.vmem [#allocation12], %s4564
          %4566 = dma.done %s4562, 256
        $region68: #{tpu_custom_call.1} parent=63 // pred_fallthru
          _
      $region64: #{tpu_custom_call.1} parent=5 // pred_fallthru
        _
    $region6: #{tpu_custom_call.1} parent=1 // loop_footer
      %s23 = sadd.s32 1, %s19
    $region7: #{tpu_custom_call.1} parent=1 // loop_footer_branch
      %18 = sbr.rel target = $region3
    $region8: #{tpu_custom_call.1} parent=1 // loop_exit
      _
    %4567 = vsyncpa [#allocation5], 1
    %s4568 = scalar_lea.sflag [#allocation5], 1
    %4569 = vsyncpa %s4568, 1
    %4570 = vsyncpa [#allocation8], 1
    %4571 = vsyncpa [#allocation11], 1
    %4572 = vsyncpa [#allocation6], 1
    %s4573 = scalar_lea.sflag [#allocation6], 1
    %4574 = vsyncpa %s4573, 1

</llo_original>
